<compile_context>
chip_gen: v5e
topology: v5e:2x2
jax: 0.10.0
libtpu: 0.0.40
codegen_flags: <defaults>
</compile_context>

<pallas_src>
import functools

import numpy as np
import jax
import jax.numpy as jnp
from jax import lax
from jax.experimental import pallas as pl
from jax.experimental.pallas import tpu as pltpu

_BN_EPS = 1e-3


# ---------------------------------------------------------------------------
# Host-side static helpers.
# ---------------------------------------------------------------------------
def _fold_bn(stats, eps=_BN_EPS):
    """Eval-mode BatchNorm -> per-channel (scale, bias)."""
    g, b, m, v = stats
    s = g / jnp.sqrt(v + eps)
    return s, b - m * s


def _sep_masks(H, W, K, B):
    """Separable validity masks for a stride-1, pad=K//2 conv on a
    (channels, batch*H*W) slab.

    Returns (col, row): col[kw, l] = 1 iff w(l) + kw - K//2 is a valid column,
    row[kh, l] = 1 iff h(l) + kh - K//2 is a valid row; both (K, B*H*W) f32,
    tiled with period H*W so rolls never leak across row/batch boundaries.
    """
    p = K // 2
    w_idx = np.tile(np.arange(W), H)
    h_idx = np.repeat(np.arange(H), W)
    col = np.stack([((w_idx + kw - p >= 0) & (w_idx + kw - p < W))
                    for kw in range(K)]).astype(np.float32)
    row = np.stack([((h_idx + kh - p >= 0) & (h_idx + kh - p < H))
                    for kh in range(K)]).astype(np.float32)
    return np.tile(col, (1, B)), np.tile(row, (1, B))


def _pool3_inv_count(H, W, B):
    """1 / valid-tap-count for 3x3 stride-1 pad-1 avgpool (count_include_pad=False)."""
    cw = np.array([min(w + 1, W - 1) - max(w - 1, 0) + 1 for w in range(W)],
                  np.float32)
    ch = np.array([min(h + 1, H - 1) - max(h - 1, 0) + 1 for h in range(H)],
                  np.float32)
    cnt = (ch[:, None] * cw[None, :]).reshape(1, -1)
    return np.tile(1.0 / cnt, (1, B))


# ---------------------------------------------------------------------------
# In-kernel helpers.
# ---------------------------------------------------------------------------
def _shift(z, off):
    """out[..., l] = z[..., (l + off) mod n] using an XLU lane rotation."""
    n = z.shape[-1]
    sh = (-off) % n
    return z if sh == 0 else pltpu.roll(z, sh, axis=z.ndim - 1)


def _depthwise(z, taps, cmask, rmask, *, K, W):
    """KxK depthwise conv (stride 1, zero pad K//2) on a (C, B*H*W) slab.

    taps  : (C, K*K) per-channel weights, tap index t = kh*K + kw
    cmask : (K, B*H*W) column validity (indexed by kw)
    rmask : (K, B*H*W) row validity    (indexed by kh)
    """
    p = K // 2
    # K horizontal pre-rolls + column masks, shared across every kh.
    zcol = [_shift(z, kw - p) * cmask[kw:kw + 1, :] for kw in range(K)]
    acc = None
    for kh in range(K):
        hsum = None
        for kw in range(K):
            t = kh * K + kw
            c = zcol[kw] * taps[:, t:t + 1]
            hsum = c if hsum is None else hsum + c
        v = _shift(hsum, (kh - p) * W) * rmask[kh:kh + 1, :]
        acc = v if acc is None else acc + v
    return acc


def _avgpool3(z, cmask, rmask, inv_cnt, *, W):
    """3x3 avg pool, stride 1, pad 1, count_include_pad=False, on (C, B*H*W)."""
    hsum = None
    for kw in range(3):
        c = _shift(z, kw - 1) * cmask[kw:kw + 1, :]
        hsum = c if hsum is None else hsum + c
    acc = None
    for kh in range(3):
        v = _shift(hsum, (kh - 1) * W) * rmask[kh:kh + 1, :]
        acc = v if acc is None else acc + v
    return acc * inv_cnt


# ---------------------------------------------------------------------------
# Kernel 1: stem — x_left / x_right from folded-BN 1x1 convs (bf16 MXU ops).
# ---------------------------------------------------------------------------
def _stem_kernel(x_ref, xs_ref, wr_ref, br_ref, w1_ref, b1_ref, w2_ref, b2_ref,
                 xlr_ref):
    cl = w1_ref.shape[0]
    cl_in = w1_ref.shape[1]
    xr = jnp.maximum(x_ref[...], 0.0).astype(jnp.bfloat16)
    xs = jnp.maximum(xs_ref[...], 0.0)
    right = jnp.dot(wr_ref[...], xr,
                    preferred_element_type=jnp.float32) + br_ref[...]
    top = jnp.dot(w1_ref[...], xs[:cl_in].astype(jnp.bfloat16),
                  preferred_element_type=jnp.float32) + b1_ref[...]
    bot = jnp.dot(w2_ref[...], xs[cl_in:].astype(jnp.bfloat16),
                  preferred_element_type=jnp.float32) + b2_ref[...]
    xlr_ref[0, :cl, :] = top
    xlr_ref[0, cl:, :] = bot
    xlr_ref[1, :, :] = right


def _call_stem(x_flat, xs_flat, wr, br, w1, b1, w2, b2, *, cr, BL):
    return pl.pallas_call(
        _stem_kernel,
        out_shape=jax.ShapeDtypeStruct((2, cr, BL), jnp.float32),
        grid=(1,),
        in_specs=[
            pl.BlockSpec(x_flat.shape, lambda i: (0, 0)),
            pl.BlockSpec(xs_flat.shape, lambda i: (0, 0)),
            pl.BlockSpec(wr.shape, lambda i: (0, 0)),
            pl.BlockSpec(br.shape, lambda i: (0, 0)),
            pl.BlockSpec(w1.shape, lambda i: (0, 0)),
            pl.BlockSpec(b1.shape, lambda i: (0, 0)),
            pl.BlockSpec(w2.shape, lambda i: (0, 0)),
            pl.BlockSpec(b2.shape, lambda i: (0, 0)),
        ],
        out_specs=pl.BlockSpec((2, cr, BL), lambda i: (0, 0, 0)),
    )(x_flat, xs_flat, wr, br, w1, b1, w2, b2)


# ---------------------------------------------------------------------------
# Kernel 2: fused BranchSeparables; all 5 branches in one call (3x3 taps padded
# to 5x5); a scalar-prefetch table selects x_left / x_right per branch.
# ---------------------------------------------------------------------------
def _branch_kernel(src_ref, cmask_ref, rmask_ref, x_ref,
                   dw1_ref, pw1_ref, b1_ref, dw2_ref, pw2_ref, b2_ref,
                   o_ref, *, K, W):
    del src_ref  # consumed by the index maps only
    cm = cmask_ref[...]
    rm = rmask_ref[...]
    x = jnp.maximum(x_ref[...], 0.0)                                   # relu
    h1 = _depthwise(x, dw1_ref[...], cm, rm, K=K, W=W)                 # dw1
    y1 = jnp.dot(pw1_ref[...], h1.astype(jnp.bfloat16),
                 preferred_element_type=jnp.float32) + b1_ref[...]     # pw1 + BN1
    y1 = jnp.maximum(y1, 0.0)                                          # relu1
    h2 = _depthwise(y1, dw2_ref[...], cm, rm, K=K, W=W)                # dw2
    y2 = jnp.dot(pw2_ref[...], h2.astype(jnp.bfloat16),
                 preferred_element_type=jnp.float32) + b2_ref[...]     # pw2 + BN2
    o_ref[...] = y2.astype(o_ref.dtype)


def _call_branches(src, cmask, rmask, xlr, dw1, pw1, b1, dw2, pw2, b2,
                   *, K, cr, BL, W):
    n = dw1.shape[0]
    KK = K * K
    kern = functools.partial(_branch_kernel, K=K, W=W)
    grid_spec = pltpu.PrefetchScalarGridSpec(
        num_scalar_prefetch=1,
        grid=(n,),
        in_specs=[
            pl.BlockSpec((K, BL), lambda i, s: (0, 0)),
            pl.BlockSpec((K, BL), lambda i, s: (0, 0)),
            pl.BlockSpec((None, cr, BL), lambda i, s: (s[i], 0, 0)),
            pl.BlockSpec((None, cr, KK), lambda i, s: (i, 0, 0)),
            pl.BlockSpec((None, cr, cr), lambda i, s: (i, 0, 0)),
            pl.BlockSpec((None, cr, 1), lambda i, s: (i, 0, 0)),
            pl.BlockSpec((None, cr, KK), lambda i, s: (i, 0, 0)),
            pl.BlockSpec((None, cr, cr), lambda i, s: (i, 0, 0)),
            pl.BlockSpec((None, cr, 1), lambda i, s: (i, 0, 0)),
        ],
        out_specs=pl.BlockSpec((None, cr, BL), lambda i, s: (i, 0, 0)),
    )
    return pl.pallas_call(
        kern,
        out_shape=jax.ShapeDtypeStruct((n, cr, BL), jnp.float32),
        grid_spec=grid_spec,
        compiler_params=pltpu.CompilerParams(dimension_semantics=("parallel",)),
    )(src, cmask, rmask, xlr, dw1, pw1, b1, dw2, pw2, b2)


# ---------------------------------------------------------------------------
# Kernel 3: combine — avgpools + all residual adds + channel concat in one pass.
# ---------------------------------------------------------------------------
def _combine_kernel(xlr_ref, bo_ref, cm3_ref, rm3_ref, icnt_ref, y_ref, *, W):
    cr = xlr_ref.shape[1]
    xl = xlr_ref[0]
    xr = xlr_ref[1]
    cm3 = cm3_ref[...]
    rm3 = rm3_ref[...]
    icnt = icnt_ref[...]
    pool_l = _avgpool3(xl, cm3, rm3, icnt, W=W)
    pool_r = _avgpool3(xr, cm3, rm3, icnt, W=W)
    y_ref[0 * cr:1 * cr, :] = xl                       # x_left
    y_ref[1 * cr:2 * cr, :] = bo_ref[0] + bo_ref[1]    # comb0
    y_ref[2 * cr:3 * cr, :] = bo_ref[2] + bo_ref[3]    # comb1
    y_ref[3 * cr:4 * cr, :] = pool_r + xl              # comb2
    y_ref[4 * cr:5 * cr, :] = 2.0 * pool_l             # comb3
    y_ref[5 * cr:6 * cr, :] = bo_ref[4] + xr           # comb4


def _call_combine(xlr, bo, cm3, rm3, icnt, *, cr, BL, W):
    kern = functools.partial(_combine_kernel, W=W)
    return pl.pallas_call(
        kern,
        out_shape=jax.ShapeDtypeStruct((6 * cr, BL), jnp.float32),
        grid=(1,),
        in_specs=[
            pl.BlockSpec(xlr.shape, lambda i: (0, 0, 0)),
            pl.BlockSpec(bo.shape, lambda i: (0, 0, 0)),
            pl.BlockSpec(cm3.shape, lambda i: (0, 0)),
            pl.BlockSpec(rm3.shape, lambda i: (0, 0)),
            pl.BlockSpec(icnt.shape, lambda i: (0, 0)),
        ],
        out_specs=pl.BlockSpec((6 * cr, BL), lambda i: (0, 0)),
    )(xlr, bo, cm3, rm3, icnt)


# ---------------------------------------------------------------------------
# Parameter folding (BN -> pointwise weights, 3x3 -> padded 5x5 taps).
# ---------------------------------------------------------------------------
def _fold_branch(bp, k, k_pad):
    c = bp["pw1"].shape[0]
    s1, bb1 = _fold_bn(bp["bn1"])
    s2, bb2 = _fold_bn(bp["bn2"])

    def pad_dw(dw):  # (k, k, c) -> (c, k_pad*k_pad) with zero padding ring
        p = (k_pad - k) // 2
        dw_p = jnp.zeros((k_pad, k_pad, c), jnp.float32)
        dw_p = dw_p.at[p:p + k, p:p + k, :].set(dw)
        return jnp.transpose(dw_p, (2, 0, 1)).reshape(c, k_pad * k_pad)

    return dict(
        dw1=pad_dw(bp["dw1"]),
        pw1=(bp["pw1"] * s1[:, None]).astype(jnp.bfloat16),
        b1=bb1[:, None],
        dw2=pad_dw(bp["dw2"]),
        pw2=(bp["pw2"] * s2[:, None]).astype(jnp.bfloat16),
        b2=bb2[:, None],
    )


def _stack_group(branches):
    names = ("dw1", "pw1", "b1", "dw2", "pw2", "b2")
    return tuple(jnp.stack([b[n] for b in branches], axis=0) for n in names)


# ---------------------------------------------------------------------------
# FirstCell forward (wrapper: layout plumbing + BN folding).
# ---------------------------------------------------------------------------
def first_cell_forward(x, x_prev, P):
    B, cr_in, H, W = x.shape
    _, cl_in, H2, W2 = x_prev.shape
    cr = P["conv1x1_w"].shape[0]
    cl = P["path1_w"].shape[0]
    if cr != 2 * cl:
        raise ValueError("FirstCell requires out_channels_right == 2*out_channels_left")
    if H2 != 2 * H or W2 != 2 * W:
        raise ValueError("x_prev spatial dims must be 2x those of x")
    L = H * W
    BL = B * L  # lane axis (multiple of 128 here -> dense vregs / unmasked vst)

    # NCHW -> (channels, batch*space): one small XLA transpose per input/output.
    x_flat = jnp.transpose(x.reshape(B, cr_in, L), (1, 0, 2)).reshape(cr_in, BL)
    xs = jnp.concatenate([x_prev[:, :, ::2, ::2], x_prev[:, :, 1::2, 1::2]], axis=1)
    xs_flat = jnp.transpose(xs.reshape(B, 2 * cl_in, L), (1, 0, 2)).reshape(2 * cl_in, BL)

    # Fold eval-mode BNs into the 1x1 conv weights; matmul weights in bf16.
    sr, brv = _fold_bn(P["conv1x1_bn"])
    wr = (P["conv1x1_w"] * sr[:, None]).astype(jnp.bfloat16)
    br = brv[:, None]
    sf, bfv = _fold_bn(P["final_bn"])
    w1 = (P["path1_w"] * sf[:cl, None]).astype(jnp.bfloat16)
    w2 = (P["path2_w"] * sf[cl:, None]).astype(jnp.bfloat16)
    b1 = bfv[:cl, None]
    b2 = bfv[cl:, None]

    # Stem: xlr[0] = x_left, xlr[1] = x_right.
    xlr = _call_stem(x_flat, xs_flat, wr, br, w1, b1, w2, b2, cr=cr, BL=BL)

    # Static separable validity masks (host constants, tiled over batch).
    cm5, rm5 = _sep_masks(H, W, 5, B)
    cm3, rm3 = _sep_masks(H, W, 3, B)
    icnt = _pool3_inv_count(H, W, B)

    # Branch order: b0l(5,x_right), b0r(3,x_left), b1l(5,x_left),
    # b1r(3,x_left), b4l(3,x_right).  3x3 taps are zero-padded to 5x5 so all
    # five branches run as one 5-step parallel grid.
    folded = [_fold_branch(P["b0l"], 5, 5), _fold_branch(P["b0r"], 3, 5),
              _fold_branch(P["b1l"], 5, 5), _fold_branch(P["b1r"], 3, 5),
              _fold_branch(P["b4l"], 3, 5)]
    src = jnp.array([1, 0, 0, 0, 1], jnp.int32)
    stacked = _stack_group(folded)

    bo = _call_branches(src, jnp.asarray(cm5), jnp.asarray(rm5), xlr, *stacked,
                        K=5, cr=cr, BL=BL, W=W)

    y = _call_combine(xlr, bo, jnp.asarray(cm3), jnp.asarray(rm3),
                      jnp.asarray(icnt), cr=cr, BL=BL, W=W)

    # (6*cr, B*L) -> NCHW.
    y = jnp.transpose(y.reshape(6 * cr, B, L), (1, 0, 2))
    return y.reshape(B, 6 * cr, H, W)


# ---------------------------------------------------------------------------
# Deterministic parameters + pure-JAX reference (mirrors the PyTorch forward).
# ---------------------------------------------------------------------------
def make_params(key, in_channels_left, out_channels_left,
                in_channels_right, out_channels_right):
    cl_in, cl = in_channels_left, out_channels_left
    cr_in, cr = in_channels_right, out_channels_right
    keys = iter(jax.random.split(key, 96))

    def nrm(shape, scale=0.1):
        return scale * jax.random.normal(next(keys), shape, jnp.float32)

    def bn_stats(c):
        g = 1.0 + 0.1 * jax.random.normal(next(keys), (c,), jnp.float32)
        b = 0.1 * jax.random.normal(next(keys), (c,), jnp.float32)
        m = 0.1 * jax.random.normal(next(keys), (c,), jnp.float32)
        v = 0.5 + jax.random.uniform(next(keys), (c,), jnp.float32)
        return (g, b, m, v)

    def branch(c, k):
        return dict(dw1=nrm((k, k, c)), pw1=nrm((c, c)), bn1=bn_stats(c),
                    dw2=nrm((k, k, c)), pw2=nrm((c, c)), bn2=bn_stats(c))

    return dict(
        conv1x1_w=nrm((cr, cr_in)), conv1x1_bn=bn_stats(cr),
        path1_w=nrm((cl, cl_in)), path2_w=nrm((cl, cl_in)),
        final_bn=bn_stats(2 * cl),
        b0l=branch(cr, 5), b0r=branch(cr, 3),
        b1l=branch(cr, 5), b1r=branch(cr, 3),
        b4l=branch(cr, 3),
    )


def reference_first_cell(x, x_prev, P, eps=_BN_EPS):
    def pwconv(xx, w):
        return lax.conv_general_dilated(
            xx, w[:, :, None, None], (1, 1), [(0, 0), (0, 0)],
            dimension_numbers=("NCHW", "OIHW", "NCHW"))

    def dwconv(xx, w_kkc, pad):
        c = w_kkc.shape[-1]
        w = jnp.transpose(w_kkc, (2, 0, 1))[:, None, :, :]
        return lax.conv_general_dilated(
            xx, w, (1, 1), [(pad, pad), (pad, pad)],
            dimension_numbers=("NCHW", "OIHW", "NCHW"), feature_group_count=c)

    def bn(xx, stats):
        g, b, m, v = stats
        s = g / jnp.sqrt(v + eps)
        return xx * s.reshape(1, -1, 1, 1) + (b - m * s).reshape(1, -1, 1, 1)

    def branch_sep(xx, bp):
        pad = bp["dw1"].shape[0] // 2
        z = jax.nn.relu(xx)
        z = pwconv(dwconv(z, bp["dw1"], pad), bp["pw1"])
        z = jax.nn.relu(bn(z, bp["bn1"]))
        z = pwconv(dwconv(z, bp["dw2"], pad), bp["pw2"])
        return bn(z, bp["bn2"])

    def avgpool3(xx):
        ssum = lax.reduce_window(xx, 0.0, lax.add, (1, 1, 3, 3), (1, 1, 1, 1),
                                 [(0, 0), (0, 0), (1, 1), (1, 1)])
        cnt = lax.reduce_window(jnp.ones_like(xx), 0.0, lax.add,
                                (1, 1, 3, 3), (1, 1, 1, 1),
                                [(0, 0), (0, 0), (1, 1), (1, 1)])
        return ssum / cnt

    x_relu = jax.nn.relu(x_prev)
    x_path1 = pwconv(x_relu[:, :, ::2, ::2], P["path1_w"])
    xp2 = jnp.pad(x_relu, ((0, 0), (0, 0), (0, 1), (0, 1)))[:, :, 1:, 1:]
    x_path2 = pwconv(xp2[:, :, ::2, ::2], P["path2_w"])
    x_left = bn(jnp.concatenate([x_path1, x_path2], axis=1), P["final_bn"])
    x_right = bn(pwconv(jax.nn.relu(x), P["conv1x1_w"]), P["conv1x1_bn"])

    c0 = branch_sep(x_right, P["b0l"]) + branch_sep(x_left, P["b0r"])
    c1 = branch_sep(x_left, P["b1l"]) + branch_sep(x_left, P["b1r"])
    c2 = avgpool3(x_right) + x_left
    c3 = avgpool3(x_left) + avgpool3(x_left)
    c4 = branch_sep(x_right, P["b4l"]) + x_right
    return jnp.concatenate([x_left, c0, c1, c2, c3, c4], axis=1)


if __name__ == "__main__":
    B = 2
    in_channels_left, out_channels_left = 8, 4
    in_channels_right, out_channels_right = 16, 8
    H = W = 16

    key = jax.random.PRNGKey(0)
    kx, kxp, kp = jax.random.split(key, 3)
    x = jax.random.normal(kx, (B, in_channels_right, H, W), jnp.float32)
    x_prev = jax.random.normal(kxp, (B, in_channels_left, 2 * H, 2 * W), jnp.float32)
    params = make_params(kp, in_channels_left, out_channels_left,
                         in_channels_right, out_channels_right)

    out = jax.jit(first_cell_forward)(x, x_prev, params)
    out = jax.block_until_ready(out)

    ref = reference_first_cell(x, x_prev, params)
    ref = jax.block_until_ready(ref)

    assert out.shape == (B, 6 * out_channels_right, H, W), out.shape
    max_err = float(jnp.max(jnp.abs(out - ref)))
    # Tolerance relaxed vs. pure-f32 since the 1x1-conv matmuls now use bf16
    # operands (f32 accumulation), per the performance review.
    assert max_err < 2e-2, f"max abs err {max_err}"

    print("KERNEL_OK")
</pallas_src>

<mosaic_0001>
module attributes {stable_mosaic.version = 11 : i64} {
  func.func @_stem_kernel(%arg0: i32, %arg1: memref<16x512xf32, #tpu.memory_space<vmem>>, %arg2: memref<16x512xf32, #tpu.memory_space<vmem>>, %arg3: memref<8x16xbf16, #tpu.memory_space<vmem>>, %arg4: memref<8x1xf32, #tpu.memory_space<vmem>>, %arg5: memref<4x8xbf16, #tpu.memory_space<vmem>>, %arg6: memref<4x1xf32, #tpu.memory_space<vmem>>, %arg7: memref<4x8xbf16, #tpu.memory_space<vmem>>, %arg8: memref<4x1xf32, #tpu.memory_space<vmem>>, %arg9: memref<2x8x512xf32, #tpu.memory_space<vmem>>) attributes {dimension_semantics = [#tpu.dimension_semantics<arbitrary>], iteration_bounds = array<i64: 1>, scalar_prefetch = 0 : i64, scratch_operands = 0 : i64, tpu.core_type = #tpu.core_type<tc>, window_params = [{pipeline_mode = #tpu.pipeline_mode<synchronous>, transform_indices = @transform_0, window_bounds = array<i64: 16, 512>}, {pipeline_mode = #tpu.pipeline_mode<synchronous>, transform_indices = @transform_1, window_bounds = array<i64: 16, 512>}, {pipeline_mode = #tpu.pipeline_mode<synchronous>, transform_indices = @transform_2, window_bounds = array<i64: 8, 16>}, {pipeline_mode = #tpu.pipeline_mode<synchronous>, transform_indices = @transform_3, window_bounds = array<i64: 8, 1>}, {pipeline_mode = #tpu.pipeline_mode<synchronous>, transform_indices = @transform_4, window_bounds = array<i64: 4, 8>}, {pipeline_mode = #tpu.pipeline_mode<synchronous>, transform_indices = @transform_5, window_bounds = array<i64: 4, 1>}, {pipeline_mode = #tpu.pipeline_mode<synchronous>, transform_indices = @transform_6, window_bounds = array<i64: 4, 8>}, {pipeline_mode = #tpu.pipeline_mode<synchronous>, transform_indices = @transform_7, window_bounds = array<i64: 4, 1>}, {pipeline_mode = #tpu.pipeline_mode<synchronous>, transform_indices = @transform_8, window_bounds = array<i64: 2, 8, 512>}]} {
    %c0 = arith.constant 0 : index
    %c0_0 = arith.constant 0 : index
    %0 = vector.load %arg1[%c0, %c0_0] : memref<16x512xf32, #tpu.memory_space<vmem>>, vector<16x512xf32>
    %cst = arith.constant 0.000000e+00 : f32
    %1 = vector.broadcast %cst : f32 to vector<16x512xf32>
    %2 = arith.maximumf %0, %1 : vector<16x512xf32>
    %3 = arith.truncf %2 : vector<16x512xf32> to vector<16x512xbf16>
    %c0_1 = arith.constant 0 : index
    %c0_2 = arith.constant 0 : index
    %4 = vector.load %arg2[%c0_1, %c0_2] : memref<16x512xf32, #tpu.memory_space<vmem>>, vector<16x512xf32>
    %cst_3 = arith.constant 0.000000e+00 : f32
    %5 = vector.broadcast %cst_3 : f32 to vector<16x512xf32>
    %6 = arith.maximumf %4, %5 : vector<16x512xf32>
    %c0_4 = arith.constant 0 : index
    %c0_5 = arith.constant 0 : index
    %7 = vector.load %arg3[%c0_4, %c0_5] : memref<8x16xbf16, #tpu.memory_space<vmem>>, vector<8x16xbf16>
    %cst_6 = arith.constant dense<0.000000e+00> : vector<8x512xf32>
    %8 = tpu.matmul %7, %3, %cst_6 {dimension_numbers = #tpu.dot_dimension_numbers<[1], [0], [0], [1], [0, 0, 1, 1], [], []>} : vector<8x16xbf16>, vector<16x512xbf16>, vector<8x512xf32> -> vector<8x512xf32>
    %c0_7 = arith.constant 0 : index
    %c0_8 = arith.constant 0 : index
    %9 = vector.load %arg4[%c0_7, %c0_8] : memref<8x1xf32, #tpu.memory_space<vmem>>, vector<8x1xf32>
    %10 = vector.broadcast %9 : vector<8x1xf32> to vector<8x512xf32>
    %11 = arith.addf %8, %10 : vector<8x512xf32>
    %c0_9 = arith.constant 0 : index
    %c0_10 = arith.constant 0 : index
    %12 = vector.load %arg5[%c0_9, %c0_10] : memref<4x8xbf16, #tpu.memory_space<vmem>>, vector<4x8xbf16>
    %13 = vector.extract_strided_slice %6 {offsets = [0, 0], sizes = [8, 512], strides = [1, 1]} : vector<16x512xf32> to vector<8x512xf32>
    %14 = arith.truncf %13 : vector<8x512xf32> to vector<8x512xbf16>
    %cst_11 = arith.constant dense<0.000000e+00> : vector<4x512xf32>
    %15 = tpu.matmul %12, %14, %cst_11 {dimension_numbers = #tpu.dot_dimension_numbers<[1], [0], [0], [1], [0, 0, 1, 1], [], []>} : vector<4x8xbf16>, vector<8x512xbf16>, vector<4x512xf32> -> vector<4x512xf32>
    %c0_12 = arith.constant 0 : index
    %c0_13 = arith.constant 0 : index
    %16 = vector.load %arg6[%c0_12, %c0_13] : memref<4x1xf32, #tpu.memory_space<vmem>>, vector<4x1xf32>
    %17 = vector.broadcast %16 : vector<4x1xf32> to vector<4x512xf32>
    %18 = arith.addf %15, %17 : vector<4x512xf32>
    %c0_14 = arith.constant 0 : index
    %c0_15 = arith.constant 0 : index
    %19 = vector.load %arg7[%c0_14, %c0_15] : memref<4x8xbf16, #tpu.memory_space<vmem>>, vector<4x8xbf16>
    %20 = vector.extract_strided_slice %6 {offsets = [8, 0], sizes = [8, 512], strides = [1, 1]} : vector<16x512xf32> to vector<8x512xf32>
    %21 = arith.truncf %20 : vector<8x512xf32> to vector<8x512xbf16>
    %cst_16 = arith.constant dense<0.000000e+00> : vector<4x512xf32>
    %22 = tpu.matmul %19, %21, %cst_16 {dimension_numbers = #tpu.dot_dimension_numbers<[1], [0], [0], [1], [0, 0, 1, 1], [], []>} : vector<4x8xbf16>, vector<8x512xbf16>, vector<4x512xf32> -> vector<4x512xf32>
    %c0_17 = arith.constant 0 : index
    %c0_18 = arith.constant 0 : index
    %23 = vector.load %arg8[%c0_17, %c0_18] : memref<4x1xf32, #tpu.memory_space<vmem>>, vector<4x1xf32>
    %24 = vector.broadcast %23 : vector<4x1xf32> to vector<4x512xf32>
    %25 = arith.addf %22, %24 : vector<4x512xf32>
    %c0_19 = arith.constant 0 : index
    %c0_20 = arith.constant 0 : index
    %c0_21 = arith.constant 0 : index
    %26 = vector.load %arg9[%c0_19, %c0_20, %c0_21] : memref<2x8x512xf32, #tpu.memory_space<vmem>>, vector<1x4x512xf32>
    %27 = vector.shape_cast %26 : vector<1x4x512xf32> to vector<4x512xf32>
    %28 = vector.shape_cast %18 : vector<4x512xf32> to vector<1x4x512xf32>
    tpu.vector_store %arg9[%c0_19, %c0_20, %c0_21], %28 {strides = array<i32>} : memref<2x8x512xf32, #tpu.memory_space<vmem>>, vector<1x4x512xf32>,
    %c0_22 = arith.constant 0 : index
    %c4 = arith.constant 4 : index
    %c0_23 = arith.constant 0 : index
    %29 = vector.load %arg9[%c0_22, %c4, %c0_23] : memref<2x8x512xf32, #tpu.memory_space<vmem>>, vector<1x4x512xf32>
    %30 = vector.shape_cast %29 : vector<1x4x512xf32> to vector<4x512xf32>
    %31 = vector.shape_cast %25 : vector<4x512xf32> to vector<1x4x512xf32>
    tpu.vector_store %arg9[%c0_22, %c4, %c0_23], %31 {strides = array<i32>} : memref<2x8x512xf32, #tpu.memory_space<vmem>>, vector<1x4x512xf32>,
    %c1 = arith.constant 1 : index
    %c0_24 = arith.constant 0 : index
    %c0_25 = arith.constant 0 : index
    %32 = vector.load %arg9[%c1, %c0_24, %c0_25] : memref<2x8x512xf32, #tpu.memory_space<vmem>>, vector<1x8x512xf32>
    %33 = vector.shape_cast %32 : vector<1x8x512xf32> to vector<8x512xf32>
    %34 = vector.shape_cast %11 : vector<8x512xf32> to vector<1x8x512xf32>
    tpu.vector_store %arg9[%c1, %c0_24, %c0_25], %34 {strides = array<i32>} : memref<2x8x512xf32, #tpu.memory_space<vmem>>, vector<1x8x512xf32>,
    return
  }
  func.func @transform_0(%arg0: i32) -> (i32, i32) {
    %c0_i32 = arith.constant 0 : i32
    %c0_i32_0 = arith.constant 0 : i32
    %c0_i32_1 = arith.constant 0 : i32
    return %c0_i32, %c0_i32_0 : i32, i32
  }
  func.func @transform_1(%arg0: i32) -> (i32, i32) {
    %c0_i32 = arith.constant 0 : i32
    %c0_i32_0 = arith.constant 0 : i32
    %c0_i32_1 = arith.constant 0 : i32
    return %c0_i32, %c0_i32_0 : i32, i32
  }
  func.func @transform_2(%arg0: i32) -> (i32, i32) {
    %c0_i32 = arith.constant 0 : i32
    %c0_i32_0 = arith.constant 0 : i32
    %c0_i32_1 = arith.constant 0 : i32
    return %c0_i32, %c0_i32_0 : i32, i32
  }
  func.func @transform_3(%arg0: i32) -> (i32, i32) {
    %c0_i32 = arith.constant 0 : i32
    %c0_i32_0 = arith.constant 0 : i32
    %c0_i32_1 = arith.constant 0 : i32
    return %c0_i32, %c0_i32_0 : i32, i32
  }
  func.func @transform_4(%arg0: i32) -> (i32, i32) {
    %c0_i32 = arith.constant 0 : i32
    %c0_i32_0 = arith.constant 0 : i32
    %c0_i32_1 = arith.constant 0 : i32
    return %c0_i32, %c0_i32_0 : i32, i32
  }
  func.func @transform_5(%arg0: i32) -> (i32, i32) {
    %c0_i32 = arith.constant 0 : i32
    %c0_i32_0 = arith.constant 0 : i32
    %c0_i32_1 = arith.constant 0 : i32
    return %c0_i32, %c0_i32_0 : i32, i32
  }
  func.func @transform_6(%arg0: i32) -> (i32, i32) {
    %c0_i32 = arith.constant 0 : i32
    %c0_i32_0 = arith.constant 0 : i32
    %c0_i32_1 = arith.constant 0 : i32
    return %c0_i32, %c0_i32_0 : i32, i32
  }
  func.func @transform_7(%arg0: i32) -> (i32, i32) {
    %c0_i32 = arith.constant 0 : i32
    %c0_i32_0 = arith.constant 0 : i32
    %c0_i32_1 = arith.constant 0 : i32
    return %c0_i32, %c0_i32_0 : i32, i32
  }
  func.func @transform_8(%arg0: i32) -> (i32, i32, i32) {
    %c0_i32 = arith.constant 0 : i32
    %c0_i32_0 = arith.constant 0 : i32
    %c0_i32_1 = arith.constant 0 : i32
    %c0_i32_2 = arith.constant 0 : i32
    return %c0_i32, %c0_i32_0, %c0_i32_1 : i32, i32, i32
  }
}

module attributes {stable_mosaic.version = 11 : i64} {
  func.func @_combine_kernel(%arg0: i32, %arg1: memref<2x8x512xf32, #tpu.memory_space<vmem>>, %arg2: memref<5x8x512xf32, #tpu.memory_space<vmem>>, %arg3: memref<3x512xf32, #tpu.memory_space<vmem>>, %arg4: memref<3x512xf32, #tpu.memory_space<vmem>>, %arg5: memref<1x512xf32, #tpu.memory_space<vmem>>, %arg6: memref<48x512xf32, #tpu.memory_space<vmem>>) attributes {dimension_semantics = [#tpu.dimension_semantics<arbitrary>], iteration_bounds = array<i64: 1>, scalar_prefetch = 0 : i64, scratch_operands = 0 : i64, tpu.core_type = #tpu.core_type<tc>, window_params = [{pipeline_mode = #tpu.pipeline_mode<synchronous>, transform_indices = @transform_0, window_bounds = array<i64: 2, 8, 512>}, {pipeline_mode = #tpu.pipeline_mode<synchronous>, transform_indices = @transform_1, window_bounds = array<i64: 5, 8, 512>}, {pipeline_mode = #tpu.pipeline_mode<synchronous>, transform_indices = @transform_2, window_bounds = array<i64: 3, 512>}, {pipeline_mode = #tpu.pipeline_mode<synchronous>, transform_indices = @transform_3, window_bounds = array<i64: 3, 512>}, {pipeline_mode = #tpu.pipeline_mode<synchronous>, transform_indices = @transform_4, window_bounds = array<i64: 1, 512>}, {pipeline_mode = #tpu.pipeline_mode<synchronous>, transform_indices = @transform_5, window_bounds = array<i64: 48, 512>}]} {
    %c0 = arith.constant 0 : index
    %c0_0 = arith.constant 0 : index
    %c0_1 = arith.constant 0 : index
    %0 = vector.load %arg1[%c0, %c0_0, %c0_1] : memref<2x8x512xf32, #tpu.memory_space<vmem>>, vector<1x8x512xf32>
    %1 = vector.shape_cast %0 : vector<1x8x512xf32> to vector<8x512xf32>
    %c1 = arith.constant 1 : index
    %c0_2 = arith.constant 0 : index
    %c0_3 = arith.constant 0 : index
    %2 = vector.load %arg1[%c1, %c0_2, %c0_3] : memref<2x8x512xf32, #tpu.memory_space<vmem>>, vector<1x8x512xf32>
    %3 = vector.shape_cast %2 : vector<1x8x512xf32> to vector<8x512xf32>
    %c0_4 = arith.constant 0 : index
    %c0_5 = arith.constant 0 : index
    %4 = vector.load %arg3[%c0_4, %c0_5] : memref<3x512xf32, #tpu.memory_space<vmem>>, vector<3x512xf32>
    %c0_6 = arith.constant 0 : index
    %c0_7 = arith.constant 0 : index
    %5 = vector.load %arg4[%c0_6, %c0_7] : memref<3x512xf32, #tpu.memory_space<vmem>>, vector<3x512xf32>
    %c0_8 = arith.constant 0 : index
    %c0_9 = arith.constant 0 : index
    %6 = vector.load %arg5[%c0_8, %c0_9] : memref<1x512xf32, #tpu.memory_space<vmem>>, vector<1x512xf32>
    %c1_i32 = arith.constant 1 : i32
    %7 = tpu.dynamic_rotate %1 by %c1_i32 dim 1 : vector<8x512xf32>, i32 -> vector<8x512xf32>
    %8 = vector.extract_strided_slice %4 {offsets = [0, 0], sizes = [1, 512], strides = [1, 1]} : vector<3x512xf32> to vector<1x512xf32>
    %9 = vector.broadcast %8 : vector<1x512xf32> to vector<8x512xf32>
    %10 = arith.mulf %7, %9 : vector<8x512xf32>
    %11 = vector.extract_strided_slice %4 {offsets = [1, 0], sizes = [1, 512], strides = [1, 1]} : vector<3x512xf32> to vector<1x512xf32>
    %12 = vector.broadcast %11 : vector<1x512xf32> to vector<8x512xf32>
    %13 = arith.mulf %1, %12 : vector<8x512xf32>
    %14 = arith.addf %10, %13 : vector<8x512xf32>
    %c511_i32 = arith.constant 511 : i32
    %15 = tpu.dynamic_rotate %1 by %c511_i32 dim 1 : vector<8x512xf32>, i32 -> vector<8x512xf32>
    %16 = vector.extract_strided_slice %4 {offsets = [2, 0], sizes = [1, 512], strides = [1, 1]} : vector<3x512xf32> to vector<1x512xf32>
    %17 = vector.broadcast %16 : vector<1x512xf32> to vector<8x512xf32>
    %18 = arith.mulf %15, %17 : vector<8x512xf32>
    %19 = arith.addf %14, %18 : vector<8x512xf32>
    %c16_i32 = arith.constant 16 : i32
    %20 = tpu.dynamic_rotate %19 by %c16_i32 dim 1 : vector<8x512xf32>, i32 -> vector<8x512xf32>
    %21 = vector.extract_strided_slice %5 {offsets = [0, 0], sizes = [1, 512], strides = [1, 1]} : vector<3x512xf32> to vector<1x512xf32>
    %22 = vector.broadcast %21 : vector<1x512xf32> to vector<8x512xf32>
    %23 = arith.mulf %20, %22 : vector<8x512xf32>
    %24 = vector.extract_strided_slice %5 {offsets = [1, 0], sizes = [1, 512], strides = [1, 1]} : vector<3x512xf32> to vector<1x512xf32>
    %25 = vector.broadcast %24 : vector<1x512xf32> to vector<8x512xf32>
    %26 = arith.mulf %19, %25 : vector<8x512xf32>
    %27 = arith.addf %23, %26 : vector<8x512xf32>
    %c496_i32 = arith.constant 496 : i32
    %28 = tpu.dynamic_rotate %19 by %c496_i32 dim 1 : vector<8x512xf32>, i32 -> vector<8x512xf32>
    %29 = vector.extract_strided_slice %5 {offsets = [2, 0], sizes = [1, 512], strides = [1, 1]} : vector<3x512xf32> to vector<1x512xf32>
    %30 = vector.broadcast %29 : vector<1x512xf32> to vector<8x512xf32>
    %31 = arith.mulf %28, %30 : vector<8x512xf32>
    %32 = arith.addf %27, %31 : vector<8x512xf32>
    %33 = vector.broadcast %6 : vector<1x512xf32> to vector<8x512xf32>
    %34 = arith.mulf %32, %33 : vector<8x512xf32>
    %c1_i32_10 = arith.constant 1 : i32
    %35 = tpu.dynamic_rotate %3 by %c1_i32_10 dim 1 : vector<8x512xf32>, i32 -> vector<8x512xf32>
    %36 = vector.extract_strided_slice %4 {offsets = [0, 0], sizes = [1, 512], strides = [1, 1]} : vector<3x512xf32> to vector<1x512xf32>
    %37 = vector.broadcast %36 : vector<1x512xf32> to vector<8x512xf32>
    %38 = arith.mulf %35, %37 : vector<8x512xf32>
    %39 = vector.extract_strided_slice %4 {offsets = [1, 0], sizes = [1, 512], strides = [1, 1]} : vector<3x512xf32> to vector<1x512xf32>
    %40 = vector.broadcast %39 : vector<1x512xf32> to vector<8x512xf32>
    %41 = arith.mulf %3, %40 : vector<8x512xf32>
    %42 = arith.addf %38, %41 : vector<8x512xf32>
    %c511_i32_11 = arith.constant 511 : i32
    %43 = tpu.dynamic_rotate %3 by %c511_i32_11 dim 1 : vector<8x512xf32>, i32 -> vector<8x512xf32>
    %44 = vector.extract_strided_slice %4 {offsets = [2, 0], sizes = [1, 512], strides = [1, 1]} : vector<3x512xf32> to vector<1x512xf32>
    %45 = vector.broadcast %44 : vector<1x512xf32> to vector<8x512xf32>
    %46 = arith.mulf %43, %45 : vector<8x512xf32>
    %47 = arith.addf %42, %46 : vector<8x512xf32>
    %c16_i32_12 = arith.constant 16 : i32
    %48 = tpu.dynamic_rotate %47 by %c16_i32_12 dim 1 : vector<8x512xf32>, i32 -> vector<8x512xf32>
    %49 = vector.extract_strided_slice %5 {offsets = [0, 0], sizes = [1, 512], strides = [1, 1]} : vector<3x512xf32> to vector<1x512xf32>
    %50 = vector.broadcast %49 : vector<1x512xf32> to vector<8x512xf32>
    %51 = arith.mulf %48, %50 : vector<8x512xf32>
    %52 = vector.extract_strided_slice %5 {offsets = [1, 0], sizes = [1, 512], strides = [1, 1]} : vector<3x512xf32> to vector<1x512xf32>
    %53 = vector.broadcast %52 : vector<1x512xf32> to vector<8x512xf32>
    %54 = arith.mulf %47, %53 : vector<8x512xf32>
    %55 = arith.addf %51, %54 : vector<8x512xf32>
    %c496_i32_13 = arith.constant 496 : i32
    %56 = tpu.dynamic_rotate %47 by %c496_i32_13 dim 1 : vector<8x512xf32>, i32 -> vector<8x512xf32>
    %57 = vector.extract_strided_slice %5 {offsets = [2, 0], sizes = [1, 512], strides = [1, 1]} : vector<3x512xf32> to vector<1x512xf32>
    %58 = vector.broadcast %57 : vector<1x512xf32> to vector<8x512xf32>
    %59 = arith.mulf %56, %58 : vector<8x512xf32>
    %60 = arith.addf %55, %59 : vector<8x512xf32>
    %61 = vector.broadcast %6 : vector<1x512xf32> to vector<8x512xf32>
    %62 = arith.mulf %60, %61 : vector<8x512xf32>
    %c0_14 = arith.constant 0 : index
    %c0_15 = arith.constant 0 : index
    %63 = vector.load %arg6[%c0_14, %c0_15] : memref<48x512xf32, #tpu.memory_space<vmem>>, vector<8x512xf32>
    tpu.vector_store %arg6[%c0_14, %c0_15], %1 {strides = array<i32>} : memref<48x512xf32, #tpu.memory_space<vmem>>, vector<8x512xf32>,
    %c0_16 = arith.constant 0 : index
    %c0_17 = arith.constant 0 : index
    %c0_18 = arith.constant 0 : index
    %64 = vector.load %arg2[%c0_16, %c0_17, %c0_18] : memref<5x8x512xf32, #tpu.memory_space<vmem>>, vector<1x8x512xf32>
    %65 = vector.shape_cast %64 : vector<1x8x512xf32> to vector<8x512xf32>
    %c1_19 = arith.constant 1 : index
    %c0_20 = arith.constant 0 : index
    %c0_21 = arith.constant 0 : index
    %66 = vector.load %arg2[%c1_19, %c0_20, %c0_21] : memref<5x8x512xf32, #tpu.memory_space<vmem>>, vector<1x8x512xf32>
    %67 = vector.shape_cast %66 : vector<1x8x512xf32> to vector<8x512xf32>
    %68 = arith.addf %65, %67 : vector<8x512xf32>
    %c8 = arith.constant 8 : index
    %c0_22 = arith.constant 0 : index
    %69 = vector.load %arg6[%c8, %c0_22] : memref<48x512xf32, #tpu.memory_space<vmem>>, vector<8x512xf32>
    tpu.vector_store %arg6[%c8, %c0_22], %68 {strides = array<i32>} : memref<48x512xf32, #tpu.memory_space<vmem>>, vector<8x512xf32>,
    %c2 = arith.constant 2 : index
    %c0_23 = arith.constant 0 : index
    %c0_24 = arith.constant 0 : index
    %70 = vector.load %arg2[%c2, %c0_23, %c0_24] : memref<5x8x512xf32, #tpu.memory_space<vmem>>, vector<1x8x512xf32>
    %71 = vector.shape_cast %70 : vector<1x8x512xf32> to vector<8x512xf32>
    %c3 = arith.constant 3 : index
    %c0_25 = arith.constant 0 : index
    %c0_26 = arith.constant 0 : index
    %72 = vector.load %arg2[%c3, %c0_25, %c0_26] : memref<5x8x512xf32, #tpu.memory_space<vmem>>, vector<1x8x512xf32>
    %73 = vector.shape_cast %72 : vector<1x8x512xf32> to vector<8x512xf32>
    %74 = arith.addf %71, %73 : vector<8x512xf32>
    %c16 = arith.constant 16 : index
    %c0_27 = arith.constant 0 : index
    %75 = vector.load %arg6[%c16, %c0_27] : memref<48x512xf32, #tpu.memory_space<vmem>>, vector<8x512xf32>
    tpu.vector_store %arg6[%c16, %c0_27], %74 {strides = array<i32>} : memref<48x512xf32, #tpu.memory_space<vmem>>, vector<8x512xf32>,
    %76 = arith.addf %62, %1 : vector<8x512xf32>
    %c24 = arith.constant 24 : index
    %c0_28 = arith.constant 0 : index
    %77 = vector.load %arg6[%c24, %c0_28] : memref<48x512xf32, #tpu.memory_space<vmem>>, vector<8x512xf32>
    tpu.vector_store %arg6[%c24, %c0_28], %76 {strides = array<i32>} : memref<48x512xf32, #tpu.memory_space<vmem>>, vector<8x512xf32>,
    %cst = arith.constant 2.000000e+00 : f32
    %78 = vector.broadcast %cst : f32 to vector<8x512xf32>
    %79 = arith.mulf %78, %34 : vector<8x512xf32>
    %c32 = arith.constant 32 : index
    %c0_29 = arith.constant 0 : index
    %80 = vector.load %arg6[%c32, %c0_29] : memref<48x512xf32, #tpu.memory_space<vmem>>, vector<8x512xf32>
    tpu.vector_store %arg6[%c32, %c0_29], %79 {strides = array<i32>} : memref<48x512xf32, #tpu.memory_space<vmem>>, vector<8x512xf32>,
    %c4 = arith.constant 4 : index
    %c0_30 = arith.constant 0 : index
    %c0_31 = arith.constant 0 : index
    %81 = vector.load %arg2[%c4, %c0_30, %c0_31] : memref<5x8x512xf32, #tpu.memory_space<vmem>>, vector<1x8x512xf32>
    %82 = vector.shape_cast %81 : vector<1x8x512xf32> to vector<8x512xf32>
    %83 = arith.addf %82, %3 : vector<8x512xf32>
    %c40 = arith.constant 40 : index
    %c0_32 = arith.constant 0 : index
    %84 = vector.load %arg6[%c40, %c0_32] : memref<48x512xf32, #tpu.memory_space<vmem>>, vector<8x512xf32>
    tpu.vector_store %arg6[%c40, %c0_32], %83 {strides = array<i32>} : memref<48x512xf32, #tpu.memory_space<vmem>>, vector<8x512xf32>,
    return
  }
  func.func @transform_0(%arg0: i32) -> (i32, i32, i32) {
    %c0_i32 = arith.constant 0 : i32
    %c0_i32_0 = arith.constant 0 : i32
    %c0_i32_1 = arith.constant 0 : i32
    %c0_i32_2 = arith.constant 0 : i32
    return %c0_i32, %c0_i32_0, %c0_i32_1 : i32, i32, i32
  }
  func.func @transform_1(%arg0: i32) -> (i32, i32, i32) {
    %c0_i32 = arith.constant 0 : i32
    %c0_i32_0 = arith.constant 0 : i32
    %c0_i32_1 = arith.constant 0 : i32
    %c0_i32_2 = arith.constant 0 : i32
    return %c0_i32, %c0_i32_0, %c0_i32_1 : i32, i32, i32
  }
  func.func @transform_2(%arg0: i32) -> (i32, i32) {
    %c0_i32 = arith.constant 0 : i32
    %c0_i32_0 = arith.constant 0 : i32
    %c0_i32_1 = arith.constant 0 : i32
    return %c0_i32, %c0_i32_0 : i32, i32
  }
  func.func @transform_3(%arg0: i32) -> (i32, i32) {
    %c0_i32 = arith.constant 0 : i32
    %c0_i32_0 = arith.constant 0 : i32
    %c0_i32_1 = arith.constant 0 : i32
    return %c0_i32, %c0_i32_0 : i32, i32
  }
  func.func @transform_4(%arg0: i32) -> (i32, i32) {
    %c0_i32 = arith.constant 0 : i32
    %c0_i32_0 = arith.constant 0 : i32
    %c0_i32_1 = arith.constant 0 : i32
    return %c0_i32, %c0_i32_0 : i32, i32
  }
  func.func @transform_5(%arg0: i32) -> (i32, i32) {
    %c0_i32 = arith.constant 0 : i32
    %c0_i32_0 = arith.constant 0 : i32
    %c0_i32_1 = arith.constant 0 : i32
    return %c0_i32, %c0_i32_0 : i32, i32
  }
}

module attributes {stable_mosaic.version = 11 : i64} {
  func.func @_branch_kernel(%arg0: i32, %arg1: memref<5xi32, #tpu.memory_space<smem>>, %arg2: memref<5x512xf32, #tpu.memory_space<vmem>>, %arg3: memref<5x512xf32, #tpu.memory_space<vmem>>, %arg4: memref<1x8x512xf32, #tpu.memory_space<vmem>>, %arg5: memref<1x8x25xf32, #tpu.memory_space<vmem>>, %arg6: memref<1x8x8xbf16, #tpu.memory_space<vmem>>, %arg7: memref<1x8x1xf32, #tpu.memory_space<vmem>>, %arg8: memref<1x8x25xf32, #tpu.memory_space<vmem>>, %arg9: memref<1x8x8xbf16, #tpu.memory_space<vmem>>, %arg10: memref<1x8x1xf32, #tpu.memory_space<vmem>>, %arg11: memref<1x8x512xf32, #tpu.memory_space<vmem>>) attributes {dimension_semantics = [#tpu.dimension_semantics<parallel>], iteration_bounds = array<i64: 5>, scalar_prefetch = 1 : i64, scratch_operands = 0 : i64, tpu.core_type = #tpu.core_type<tc>, window_params = [{pipeline_mode = #tpu.pipeline_mode<synchronous>, transform_indices = @transform_0, window_bounds = array<i64: 5, 512>}, {pipeline_mode = #tpu.pipeline_mode<synchronous>, transform_indices = @transform_1, window_bounds = array<i64: 5, 512>}, {transform_indices = @transform_2, window_bounds = array<i64: 1, 8, 512>}, {transform_indices = @transform_3, window_bounds = array<i64: 1, 8, 25>}, {transform_indices = @transform_4, window_bounds = array<i64: 1, 8, 8>}, {transform_indices = @transform_5, window_bounds = array<i64: 1, 8, 1>}, {transform_indices = @transform_6, window_bounds = array<i64: 1, 8, 25>}, {transform_indices = @transform_7, window_bounds = array<i64: 1, 8, 8>}, {transform_indices = @transform_8, window_bounds = array<i64: 1, 8, 1>}, {transform_indices = @transform_9, window_bounds = array<i64: 1, 8, 512>}]} {
    %c0 = arith.constant 0 : index
    %c0_0 = arith.constant 0 : index
    %0 = vector.load %arg2[%c0, %c0_0] : memref<5x512xf32, #tpu.memory_space<vmem>>, vector<5x512xf32>
    %c0_1 = arith.constant 0 : index
    %c0_2 = arith.constant 0 : index
    %1 = vector.load %arg3[%c0_1, %c0_2] : memref<5x512xf32, #tpu.memory_space<vmem>>, vector<5x512xf32>
    %c0_3 = arith.constant 0 : index
    %c0_4 = arith.constant 0 : index
    %c0_5 = arith.constant 0 : index
    %2 = vector.load %arg4[%c0_3, %c0_4, %c0_5] : memref<1x8x512xf32, #tpu.memory_space<vmem>>, vector<1x8x512xf32>
    %3 = vector.shape_cast %2 : vector<1x8x512xf32> to vector<8x512xf32>
    %cst = arith.constant 0.000000e+00 : f32
    %4 = vector.broadcast %cst : f32 to vector<8x512xf32>
    %5 = arith.maximumf %3, %4 : vector<8x512xf32>
    %c0_6 = arith.constant 0 : index
    %c0_7 = arith.constant 0 : index
    %c0_8 = arith.constant 0 : index
    %6 = vector.load %arg5[%c0_6, %c0_7, %c0_8] : memref<1x8x25xf32, #tpu.memory_space<vmem>>, vector<1x8x25xf32>
    %7 = vector.shape_cast %6 : vector<1x8x25xf32> to vector<8x25xf32>
    %c2_i32 = arith.constant 2 : i32
    %8 = tpu.dynamic_rotate %5 by %c2_i32 dim 1 : vector<8x512xf32>, i32 -> vector<8x512xf32>
    %9 = vector.extract_strided_slice %0 {offsets = [0, 0], sizes = [1, 512], strides = [1, 1]} : vector<5x512xf32> to vector<1x512xf32>
    %10 = vector.broadcast %9 : vector<1x512xf32> to vector<8x512xf32>
    %11 = arith.mulf %8, %10 : vector<8x512xf32>
    %c1_i32 = arith.constant 1 : i32
    %12 = tpu.dynamic_rotate %5 by %c1_i32 dim 1 : vector<8x512xf32>, i32 -> vector<8x512xf32>
    %13 = vector.extract_strided_slice %0 {offsets = [1, 0], sizes = [1, 512], strides = [1, 1]} : vector<5x512xf32> to vector<1x512xf32>
    %14 = vector.broadcast %13 : vector<1x512xf32> to vector<8x512xf32>
    %15 = arith.mulf %12, %14 : vector<8x512xf32>
    %16 = vector.extract_strided_slice %0 {offsets = [2, 0], sizes = [1, 512], strides = [1, 1]} : vector<5x512xf32> to vector<1x512xf32>
    %17 = vector.broadcast %16 : vector<1x512xf32> to vector<8x512xf32>
    %18 = arith.mulf %5, %17 : vector<8x512xf32>
    %c511_i32 = arith.constant 511 : i32
    %19 = tpu.dynamic_rotate %5 by %c511_i32 dim 1 : vector<8x512xf32>, i32 -> vector<8x512xf32>
    %20 = vector.extract_strided_slice %0 {offsets = [3, 0], sizes = [1, 512], strides = [1, 1]} : vector<5x512xf32> to vector<1x512xf32>
    %21 = vector.broadcast %20 : vector<1x512xf32> to vector<8x512xf32>
    %22 = arith.mulf %19, %21 : vector<8x512xf32>
    %c510_i32 = arith.constant 510 : i32
    %23 = tpu.dynamic_rotate %5 by %c510_i32 dim 1 : vector<8x512xf32>, i32 -> vector<8x512xf32>
    %24 = vector.extract_strided_slice %0 {offsets = [4, 0], sizes = [1, 512], strides = [1, 1]} : vector<5x512xf32> to vector<1x512xf32>
    %25 = vector.broadcast %24 : vector<1x512xf32> to vector<8x512xf32>
    %26 = arith.mulf %23, %25 : vector<8x512xf32>
    %27 = vector.extract_strided_slice %7 {offsets = [0, 0], sizes = [8, 1], strides = [1, 1]} : vector<8x25xf32> to vector<8x1xf32>
    %28 = vector.broadcast %27 : vector<8x1xf32> to vector<8x512xf32>
    %29 = arith.mulf %11, %28 : vector<8x512xf32>
    %30 = vector.extract_strided_slice %7 {offsets = [0, 1], sizes = [8, 1], strides = [1, 1]} : vector<8x25xf32> to vector<8x1xf32>
    %31 = vector.broadcast %30 : vector<8x1xf32> to vector<8x512xf32>
    %32 = arith.mulf %15, %31 : vector<8x512xf32>
    %33 = arith.addf %29, %32 : vector<8x512xf32>
    %34 = vector.extract_strided_slice %7 {offsets = [0, 2], sizes = [8, 1], strides = [1, 1]} : vector<8x25xf32> to vector<8x1xf32>
    %35 = vector.broadcast %34 : vector<8x1xf32> to vector<8x512xf32>
    %36 = arith.mulf %18, %35 : vector<8x512xf32>
    %37 = arith.addf %33, %36 : vector<8x512xf32>
    %38 = vector.extract_strided_slice %7 {offsets = [0, 3], sizes = [8, 1], strides = [1, 1]} : vector<8x25xf32> to vector<8x1xf32>
    %39 = vector.broadcast %38 : vector<8x1xf32> to vector<8x512xf32>
    %40 = arith.mulf %22, %39 : vector<8x512xf32>
    %41 = arith.addf %37, %40 : vector<8x512xf32>
    %42 = vector.extract_strided_slice %7 {offsets = [0, 4], sizes = [8, 1], strides = [1, 1]} : vector<8x25xf32> to vector<8x1xf32>
    %43 = vector.broadcast %42 : vector<8x1xf32> to vector<8x512xf32>
    %44 = arith.mulf %26, %43 : vector<8x512xf32>
    %45 = arith.addf %41, %44 : vector<8x512xf32>
    %c32_i32 = arith.constant 32 : i32
    %46 = tpu.dynamic_rotate %45 by %c32_i32 dim 1 : vector<8x512xf32>, i32 -> vector<8x512xf32>
    %47 = vector.extract_strided_slice %1 {offsets = [0, 0], sizes = [1, 512], strides = [1, 1]} : vector<5x512xf32> to vector<1x512xf32>
    %48 = vector.broadcast %47 : vector<1x512xf32> to vector<8x512xf32>
    %49 = arith.mulf %46, %48 : vector<8x512xf32>
    %50 = vector.extract_strided_slice %7 {offsets = [0, 5], sizes = [8, 1], strides = [1, 1]} : vector<8x25xf32> to vector<8x1xf32>
    %51 = vector.broadcast %50 : vector<8x1xf32> to vector<8x512xf32>
    %52 = arith.mulf %11, %51 : vector<8x512xf32>
    %53 = vector.extract_strided_slice %7 {offsets = [0, 6], sizes = [8, 1], strides = [1, 1]} : vector<8x25xf32> to vector<8x1xf32>
    %54 = vector.broadcast %53 : vector<8x1xf32> to vector<8x512xf32>
    %55 = arith.mulf %15, %54 : vector<8x512xf32>
    %56 = arith.addf %52, %55 : vector<8x512xf32>
    %57 = vector.extract_strided_slice %7 {offsets = [0, 7], sizes = [8, 1], strides = [1, 1]} : vector<8x25xf32> to vector<8x1xf32>
    %58 = vector.broadcast %57 : vector<8x1xf32> to vector<8x512xf32>
    %59 = arith.mulf %18, %58 : vector<8x512xf32>
    %60 = arith.addf %56, %59 : vector<8x512xf32>
    %61 = vector.extract_strided_slice %7 {offsets = [0, 8], sizes = [8, 1], strides = [1, 1]} : vector<8x25xf32> to vector<8x1xf32>
    %62 = vector.broadcast %61 : vector<8x1xf32> to vector<8x512xf32>
    %63 = arith.mulf %22, %62 : vector<8x512xf32>
    %64 = arith.addf %60, %63 : vector<8x512xf32>
    %65 = vector.extract_strided_slice %7 {offsets = [0, 9], sizes = [8, 1], strides = [1, 1]} : vector<8x25xf32> to vector<8x1xf32>
    %66 = vector.broadcast %65 : vector<8x1xf32> to vector<8x512xf32>
    %67 = arith.mulf %26, %66 : vector<8x512xf32>
    %68 = arith.addf %64, %67 : vector<8x512xf32>
    %c16_i32 = arith.constant 16 : i32
    %69 = tpu.dynamic_rotate %68 by %c16_i32 dim 1 : vector<8x512xf32>, i32 -> vector<8x512xf32>
    %70 = vector.extract_strided_slice %1 {offsets = [1, 0], sizes = [1, 512], strides = [1, 1]} : vector<5x512xf32> to vector<1x512xf32>
    %71 = vector.broadcast %70 : vector<1x512xf32> to vector<8x512xf32>
    %72 = arith.mulf %69, %71 : vector<8x512xf32>
    %73 = arith.addf %49, %72 : vector<8x512xf32>
    %74 = vector.extract_strided_slice %7 {offsets = [0, 10], sizes = [8, 1], strides = [1, 1]} : vector<8x25xf32> to vector<8x1xf32>
    %75 = vector.broadcast %74 : vector<8x1xf32> to vector<8x512xf32>
    %76 = arith.mulf %11, %75 : vector<8x512xf32>
    %77 = vector.extract_strided_slice %7 {offsets = [0, 11], sizes = [8, 1], strides = [1, 1]} : vector<8x25xf32> to vector<8x1xf32>
    %78 = vector.broadcast %77 : vector<8x1xf32> to vector<8x512xf32>
    %79 = arith.mulf %15, %78 : vector<8x512xf32>
    %80 = arith.addf %76, %79 : vector<8x512xf32>
    %81 = vector.extract_strided_slice %7 {offsets = [0, 12], sizes = [8, 1], strides = [1, 1]} : vector<8x25xf32> to vector<8x1xf32>
    %82 = vector.broadcast %81 : vector<8x1xf32> to vector<8x512xf32>
    %83 = arith.mulf %18, %82 : vector<8x512xf32>
    %84 = arith.addf %80, %83 : vector<8x512xf32>
    %85 = vector.extract_strided_slice %7 {offsets = [0, 13], sizes = [8, 1], strides = [1, 1]} : vector<8x25xf32> to vector<8x1xf32>
    %86 = vector.broadcast %85 : vector<8x1xf32> to vector<8x512xf32>
    %87 = arith.mulf %22, %86 : vector<8x512xf32>
    %88 = arith.addf %84, %87 : vector<8x512xf32>
    %89 = vector.extract_strided_slice %7 {offsets = [0, 14], sizes = [8, 1], strides = [1, 1]} : vector<8x25xf32> to vector<8x1xf32>
    %90 = vector.broadcast %89 : vector<8x1xf32> to vector<8x512xf32>
    %91 = arith.mulf %26, %90 : vector<8x512xf32>
    %92 = arith.addf %88, %91 : vector<8x512xf32>
    %93 = vector.extract_strided_slice %1 {offsets = [2, 0], sizes = [1, 512], strides = [1, 1]} : vector<5x512xf32> to vector<1x512xf32>
    %94 = vector.broadcast %93 : vector<1x512xf32> to vector<8x512xf32>
    %95 = arith.mulf %92, %94 : vector<8x512xf32>
    %96 = arith.addf %73, %95 : vector<8x512xf32>
    %97 = vector.extract_strided_slice %7 {offsets = [0, 15], sizes = [8, 1], strides = [1, 1]} : vector<8x25xf32> to vector<8x1xf32>
    %98 = vector.broadcast %97 : vector<8x1xf32> to vector<8x512xf32>
    %99 = arith.mulf %11, %98 : vector<8x512xf32>
    %100 = vector.extract_strided_slice %7 {offsets = [0, 16], sizes = [8, 1], strides = [1, 1]} : vector<8x25xf32> to vector<8x1xf32>
    %101 = vector.broadcast %100 : vector<8x1xf32> to vector<8x512xf32>
    %102 = arith.mulf %15, %101 : vector<8x512xf32>
    %103 = arith.addf %99, %102 : vector<8x512xf32>
    %104 = vector.extract_strided_slice %7 {offsets = [0, 17], sizes = [8, 1], strides = [1, 1]} : vector<8x25xf32> to vector<8x1xf32>
    %105 = vector.broadcast %104 : vector<8x1xf32> to vector<8x512xf32>
    %106 = arith.mulf %18, %105 : vector<8x512xf32>
    %107 = arith.addf %103, %106 : vector<8x512xf32>
    %108 = vector.extract_strided_slice %7 {offsets = [0, 18], sizes = [8, 1], strides = [1, 1]} : vector<8x25xf32> to vector<8x1xf32>
    %109 = vector.broadcast %108 : vector<8x1xf32> to vector<8x512xf32>
    %110 = arith.mulf %22, %109 : vector<8x512xf32>
    %111 = arith.addf %107, %110 : vector<8x512xf32>
    %112 = vector.extract_strided_slice %7 {offsets = [0, 19], sizes = [8, 1], strides = [1, 1]} : vector<8x25xf32> to vector<8x1xf32>
    %113 = vector.broadcast %112 : vector<8x1xf32> to vector<8x512xf32>
    %114 = arith.mulf %26, %113 : vector<8x512xf32>
    %115 = arith.addf %111, %114 : vector<8x512xf32>
    %c496_i32 = arith.constant 496 : i32
    %116 = tpu.dynamic_rotate %115 by %c496_i32 dim 1 : vector<8x512xf32>, i32 -> vector<8x512xf32>
    %117 = vector.extract_strided_slice %1 {offsets = [3, 0], sizes = [1, 512], strides = [1, 1]} : vector<5x512xf32> to vector<1x512xf32>
    %118 = vector.broadcast %117 : vector<1x512xf32> to vector<8x512xf32>
    %119 = arith.mulf %116, %118 : vector<8x512xf32>
    %120 = arith.addf %96, %119 : vector<8x512xf32>
    %121 = vector.extract_strided_slice %7 {offsets = [0, 20], sizes = [8, 1], strides = [1, 1]} : vector<8x25xf32> to vector<8x1xf32>
    %122 = vector.broadcast %121 : vector<8x1xf32> to vector<8x512xf32>
    %123 = arith.mulf %11, %122 : vector<8x512xf32>
    %124 = vector.extract_strided_slice %7 {offsets = [0, 21], sizes = [8, 1], strides = [1, 1]} : vector<8x25xf32> to vector<8x1xf32>
    %125 = vector.broadcast %124 : vector<8x1xf32> to vector<8x512xf32>
    %126 = arith.mulf %15, %125 : vector<8x512xf32>
    %127 = arith.addf %123, %126 : vector<8x512xf32>
    %128 = vector.extract_strided_slice %7 {offsets = [0, 22], sizes = [8, 1], strides = [1, 1]} : vector<8x25xf32> to vector<8x1xf32>
    %129 = vector.broadcast %128 : vector<8x1xf32> to vector<8x512xf32>
    %130 = arith.mulf %18, %129 : vector<8x512xf32>
    %131 = arith.addf %127, %130 : vector<8x512xf32>
    %132 = vector.extract_strided_slice %7 {offsets = [0, 23], sizes = [8, 1], strides = [1, 1]} : vector<8x25xf32> to vector<8x1xf32>
    %133 = vector.broadcast %132 : vector<8x1xf32> to vector<8x512xf32>
    %134 = arith.mulf %22, %133 : vector<8x512xf32>
    %135 = arith.addf %131, %134 : vector<8x512xf32>
    %136 = vector.extract_strided_slice %7 {offsets = [0, 24], sizes = [8, 1], strides = [1, 1]} : vector<8x25xf32> to vector<8x1xf32>
    %137 = vector.broadcast %136 : vector<8x1xf32> to vector<8x512xf32>
    %138 = arith.mulf %26, %137 : vector<8x512xf32>
    %139 = arith.addf %135, %138 : vector<8x512xf32>
    %c480_i32 = arith.constant 480 : i32
    %140 = tpu.dynamic_rotate %139 by %c480_i32 dim 1 : vector<8x512xf32>, i32 -> vector<8x512xf32>
    %141 = vector.extract_strided_slice %1 {offsets = [4, 0], sizes = [1, 512], strides = [1, 1]} : vector<5x512xf32> to vector<1x512xf32>
    %142 = vector.broadcast %141 : vector<1x512xf32> to vector<8x512xf32>
    %143 = arith.mulf %140, %142 : vector<8x512xf32>
    %144 = arith.addf %120, %143 : vector<8x512xf32>
    %c0_9 = arith.constant 0 : index
    %c0_10 = arith.constant 0 : index
    %c0_11 = arith.constant 0 : index
    %145 = vector.load %arg6[%c0_9, %c0_10, %c0_11] : memref<1x8x8xbf16, #tpu.memory_space<vmem>>, vector<1x8x8xbf16>
    %146 = vector.shape_cast %145 : vector<1x8x8xbf16> to vector<8x8xbf16>
    %147 = arith.truncf %144 : vector<8x512xf32> to vector<8x512xbf16>
    %cst_12 = arith.constant dense<0.000000e+00> : vector<8x512xf32>
    %148 = tpu.matmul %146, %147, %cst_12 {dimension_numbers = #tpu.dot_dimension_numbers<[1], [0], [0], [1], [0, 0, 1, 1], [], []>} : vector<8x8xbf16>, vector<8x512xbf16>, vector<8x512xf32> -> vector<8x512xf32>
    %c0_13 = arith.constant 0 : index
    %c0_14 = arith.constant 0 : index
    %c0_15 = arith.constant 0 : index
    %149 = vector.load %arg7[%c0_13, %c0_14, %c0_15] : memref<1x8x1xf32, #tpu.memory_space<vmem>>, vector<1x8x1xf32>
    %150 = vector.shape_cast %149 : vector<1x8x1xf32> to vector<8x1xf32>
    %151 = vector.broadcast %150 : vector<8x1xf32> to vector<8x512xf32>
    %152 = arith.addf %148, %151 : vector<8x512xf32>
    %cst_16 = arith.constant 0.000000e+00 : f32
    %153 = vector.broadcast %cst_16 : f32 to vector<8x512xf32>
    %154 = arith.maximumf %152, %153 : vector<8x512xf32>
    %c0_17 = arith.constant 0 : index
    %c0_18 = arith.constant 0 : index
    %c0_19 = arith.constant 0 : index
    %155 = vector.load %arg8[%c0_17, %c0_18, %c0_19] : memref<1x8x25xf32, #tpu.memory_space<vmem>>, vector<1x8x25xf32>
    %156 = vector.shape_cast %155 : vector<1x8x25xf32> to vector<8x25xf32>
    %c2_i32_20 = arith.constant 2 : i32
    %157 = tpu.dynamic_rotate %154 by %c2_i32_20 dim 1 : vector<8x512xf32>, i32 -> vector<8x512xf32>
    %158 = vector.extract_strided_slice %0 {offsets = [0, 0], sizes = [1, 512], strides = [1, 1]} : vector<5x512xf32> to vector<1x512xf32>
    %159 = vector.broadcast %158 : vector<1x512xf32> to vector<8x512xf32>
    %160 = arith.mulf %157, %159 : vector<8x512xf32>
    %c1_i32_21 = arith.constant 1 : i32
    %161 = tpu.dynamic_rotate %154 by %c1_i32_21 dim 1 : vector<8x512xf32>, i32 -> vector<8x512xf32>
    %162 = vector.extract_strided_slice %0 {offsets = [1, 0], sizes = [1, 512], strides = [1, 1]} : vector<5x512xf32> to vector<1x512xf32>
    %163 = vector.broadcast %162 : vector<1x512xf32> to vector<8x512xf32>
    %164 = arith.mulf %161, %163 : vector<8x512xf32>
    %165 = vector.extract_strided_slice %0 {offsets = [2, 0], sizes = [1, 512], strides = [1, 1]} : vector<5x512xf32> to vector<1x512xf32>
    %166 = vector.broadcast %165 : vector<1x512xf32> to vector<8x512xf32>
    %167 = arith.mulf %154, %166 : vector<8x512xf32>
    %c511_i32_22 = arith.constant 511 : i32
    %168 = tpu.dynamic_rotate %154 by %c511_i32_22 dim 1 : vector<8x512xf32>, i32 -> vector<8x512xf32>
    %169 = vector.extract_strided_slice %0 {offsets = [3, 0], sizes = [1, 512], strides = [1, 1]} : vector<5x512xf32> to vector<1x512xf32>
    %170 = vector.broadcast %169 : vector<1x512xf32> to vector<8x512xf32>
    %171 = arith.mulf %168, %170 : vector<8x512xf32>
    %c510_i32_23 = arith.constant 510 : i32
    %172 = tpu.dynamic_rotate %154 by %c510_i32_23 dim 1 : vector<8x512xf32>, i32 -> vector<8x512xf32>
    %173 = vector.extract_strided_slice %0 {offsets = [4, 0], sizes = [1, 512], strides = [1, 1]} : vector<5x512xf32> to vector<1x512xf32>
    %174 = vector.broadcast %173 : vector<1x512xf32> to vector<8x512xf32>
    %175 = arith.mulf %172, %174 : vector<8x512xf32>
    %176 = vector.extract_strided_slice %156 {offsets = [0, 0], sizes = [8, 1], strides = [1, 1]} : vector<8x25xf32> to vector<8x1xf32>
    %177 = vector.broadcast %176 : vector<8x1xf32> to vector<8x512xf32>
    %178 = arith.mulf %160, %177 : vector<8x512xf32>
    %179 = vector.extract_strided_slice %156 {offsets = [0, 1], sizes = [8, 1], strides = [1, 1]} : vector<8x25xf32> to vector<8x1xf32>
    %180 = vector.broadcast %179 : vector<8x1xf32> to vector<8x512xf32>
    %181 = arith.mulf %164, %180 : vector<8x512xf32>
    %182 = arith.addf %178, %181 : vector<8x512xf32>
    %183 = vector.extract_strided_slice %156 {offsets = [0, 2], sizes = [8, 1], strides = [1, 1]} : vector<8x25xf32> to vector<8x1xf32>
    %184 = vector.broadcast %183 : vector<8x1xf32> to vector<8x512xf32>
    %185 = arith.mulf %167, %184 : vector<8x512xf32>
    %186 = arith.addf %182, %185 : vector<8x512xf32>
    %187 = vector.extract_strided_slice %156 {offsets = [0, 3], sizes = [8, 1], strides = [1, 1]} : vector<8x25xf32> to vector<8x1xf32>
    %188 = vector.broadcast %187 : vector<8x1xf32> to vector<8x512xf32>
    %189 = arith.mulf %171, %188 : vector<8x512xf32>
    %190 = arith.addf %186, %189 : vector<8x512xf32>
    %191 = vector.extract_strided_slice %156 {offsets = [0, 4], sizes = [8, 1], strides = [1, 1]} : vector<8x25xf32> to vector<8x1xf32>
    %192 = vector.broadcast %191 : vector<8x1xf32> to vector<8x512xf32>
    %193 = arith.mulf %175, %192 : vector<8x512xf32>
    %194 = arith.addf %190, %193 : vector<8x512xf32>
    %c32_i32_24 = arith.constant 32 : i32
    %195 = tpu.dynamic_rotate %194 by %c32_i32_24 dim 1 : vector<8x512xf32>, i32 -> vector<8x512xf32>
    %196 = vector.extract_strided_slice %1 {offsets = [0, 0], sizes = [1, 512], strides = [1, 1]} : vector<5x512xf32> to vector<1x512xf32>
    %197 = vector.broadcast %196 : vector<1x512xf32> to vector<8x512xf32>
    %198 = arith.mulf %195, %197 : vector<8x512xf32>
    %199 = vector.extract_strided_slice %156 {offsets = [0, 5], sizes = [8, 1], strides = [1, 1]} : vector<8x25xf32> to vector<8x1xf32>
    %200 = vector.broadcast %199 : vector<8x1xf32> to vector<8x512xf32>
    %201 = arith.mulf %160, %200 : vector<8x512xf32>
    %202 = vector.extract_strided_slice %156 {offsets = [0, 6], sizes = [8, 1], strides = [1, 1]} : vector<8x25xf32> to vector<8x1xf32>
    %203 = vector.broadcast %202 : vector<8x1xf32> to vector<8x512xf32>
    %204 = arith.mulf %164, %203 : vector<8x512xf32>
    %205 = arith.addf %201, %204 : vector<8x512xf32>
    %206 = vector.extract_strided_slice %156 {offsets = [0, 7], sizes = [8, 1], strides = [1, 1]} : vector<8x25xf32> to vector<8x1xf32>
    %207 = vector.broadcast %206 : vector<8x1xf32> to vector<8x512xf32>
    %208 = arith.mulf %167, %207 : vector<8x512xf32>
    %209 = arith.addf %205, %208 : vector<8x512xf32>
    %210 = vector.extract_strided_slice %156 {offsets = [0, 8], sizes = [8, 1], strides = [1, 1]} : vector<8x25xf32> to vector<8x1xf32>
    %211 = vector.broadcast %210 : vector<8x1xf32> to vector<8x512xf32>
    %212 = arith.mulf %171, %211 : vector<8x512xf32>
    %213 = arith.addf %209, %212 : vector<8x512xf32>
    %214 = vector.extract_strided_slice %156 {offsets = [0, 9], sizes = [8, 1], strides = [1, 1]} : vector<8x25xf32> to vector<8x1xf32>
    %215 = vector.broadcast %214 : vector<8x1xf32> to vector<8x512xf32>
    %216 = arith.mulf %175, %215 : vector<8x512xf32>
    %217 = arith.addf %213, %216 : vector<8x512xf32>
    %c16_i32_25 = arith.constant 16 : i32
    %218 = tpu.dynamic_rotate %217 by %c16_i32_25 dim 1 : vector<8x512xf32>, i32 -> vector<8x512xf32>
    %219 = vector.extract_strided_slice %1 {offsets = [1, 0], sizes = [1, 512], strides = [1, 1]} : vector<5x512xf32> to vector<1x512xf32>
    %220 = vector.broadcast %219 : vector<1x512xf32> to vector<8x512xf32>
    %221 = arith.mulf %218, %220 : vector<8x512xf32>
    %222 = arith.addf %198, %221 : vector<8x512xf32>
    %223 = vector.extract_strided_slice %156 {offsets = [0, 10], sizes = [8, 1], strides = [1, 1]} : vector<8x25xf32> to vector<8x1xf32>
    %224 = vector.broadcast %223 : vector<8x1xf32> to vector<8x512xf32>
    %225 = arith.mulf %160, %224 : vector<8x512xf32>
    %226 = vector.extract_strided_slice %156 {offsets = [0, 11], sizes = [8, 1], strides = [1, 1]} : vector<8x25xf32> to vector<8x1xf32>
    %227 = vector.broadcast %226 : vector<8x1xf32> to vector<8x512xf32>
    %228 = arith.mulf %164, %227 : vector<8x512xf32>
    %229 = arith.addf %225, %228 : vector<8x512xf32>
    %230 = vector.extract_strided_slice %156 {offsets = [0, 12], sizes = [8, 1], strides = [1, 1]} : vector<8x25xf32> to vector<8x1xf32>
    %231 = vector.broadcast %230 : vector<8x1xf32> to vector<8x512xf32>
    %232 = arith.mulf %167, %231 : vector<8x512xf32>
    %233 = arith.addf %229, %232 : vector<8x512xf32>
    %234 = vector.extract_strided_slice %156 {offsets = [0, 13], sizes = [8, 1], strides = [1, 1]} : vector<8x25xf32> to vector<8x1xf32>
    %235 = vector.broadcast %234 : vector<8x1xf32> to vector<8x512xf32>
    %236 = arith.mulf %171, %235 : vector<8x512xf32>
    %237 = arith.addf %233, %236 : vector<8x512xf32>
    %238 = vector.extract_strided_slice %156 {offsets = [0, 14], sizes = [8, 1], strides = [1, 1]} : vector<8x25xf32> to vector<8x1xf32>
    %239 = vector.broadcast %238 : vector<8x1xf32> to vector<8x512xf32>
    %240 = arith.mulf %175, %239 : vector<8x512xf32>
    %241 = arith.addf %237, %240 : vector<8x512xf32>
    %242 = vector.extract_strided_slice %1 {offsets = [2, 0], sizes = [1, 512], strides = [1, 1]} : vector<5x512xf32> to vector<1x512xf32>
    %243 = vector.broadcast %242 : vector<1x512xf32> to vector<8x512xf32>
    %244 = arith.mulf %241, %243 : vector<8x512xf32>
    %245 = arith.addf %222, %244 : vector<8x512xf32>
    %246 = vector.extract_strided_slice %156 {offsets = [0, 15], sizes = [8, 1], strides = [1, 1]} : vector<8x25xf32> to vector<8x1xf32>
    %247 = vector.broadcast %246 : vector<8x1xf32> to vector<8x512xf32>
    %248 = arith.mulf %160, %247 : vector<8x512xf32>
    %249 = vector.extract_strided_slice %156 {offsets = [0, 16], sizes = [8, 1], strides = [1, 1]} : vector<8x25xf32> to vector<8x1xf32>
    %250 = vector.broadcast %249 : vector<8x1xf32> to vector<8x512xf32>
    %251 = arith.mulf %164, %250 : vector<8x512xf32>
    %252 = arith.addf %248, %251 : vector<8x512xf32>
    %253 = vector.extract_strided_slice %156 {offsets = [0, 17], sizes = [8, 1], strides = [1, 1]} : vector<8x25xf32> to vector<8x1xf32>
    %254 = vector.broadcast %253 : vector<8x1xf32> to vector<8x512xf32>
    %255 = arith.mulf %167, %254 : vector<8x512xf32>
    %256 = arith.addf %252, %255 : vector<8x512xf32>
    %257 = vector.extract_strided_slice %156 {offsets = [0, 18], sizes = [8, 1], strides = [1, 1]} : vector<8x25xf32> to vector<8x1xf32>
    %258 = vector.broadcast %257 : vector<8x1xf32> to vector<8x512xf32>
    %259 = arith.mulf %171, %258 : vector<8x512xf32>
    %260 = arith.addf %256, %259 : vector<8x512xf32>
    %261 = vector.extract_strided_slice %156 {offsets = [0, 19], sizes = [8, 1], strides = [1, 1]} : vector<8x25xf32> to vector<8x1xf32>
    %262 = vector.broadcast %261 : vector<8x1xf32> to vector<8x512xf32>
    %263 = arith.mulf %175, %262 : vector<8x512xf32>
    %264 = arith.addf %260, %263 : vector<8x512xf32>
    %c496_i32_26 = arith.constant 496 : i32
    %265 = tpu.dynamic_rotate %264 by %c496_i32_26 dim 1 : vector<8x512xf32>, i32 -> vector<8x512xf32>
    %266 = vector.extract_strided_slice %1 {offsets = [3, 0], sizes = [1, 512], strides = [1, 1]} : vector<5x512xf32> to vector<1x512xf32>
    %267 = vector.broadcast %266 : vector<1x512xf32> to vector<8x512xf32>
    %268 = arith.mulf %265, %267 : vector<8x512xf32>
    %269 = arith.addf %245, %268 : vector<8x512xf32>
    %270 = vector.extract_strided_slice %156 {offsets = [0, 20], sizes = [8, 1], strides = [1, 1]} : vector<8x25xf32> to vector<8x1xf32>
    %271 = vector.broadcast %270 : vector<8x1xf32> to vector<8x512xf32>
    %272 = arith.mulf %160, %271 : vector<8x512xf32>
    %273 = vector.extract_strided_slice %156 {offsets = [0, 21], sizes = [8, 1], strides = [1, 1]} : vector<8x25xf32> to vector<8x1xf32>
    %274 = vector.broadcast %273 : vector<8x1xf32> to vector<8x512xf32>
    %275 = arith.mulf %164, %274 : vector<8x512xf32>
    %276 = arith.addf %272, %275 : vector<8x512xf32>
    %277 = vector.extract_strided_slice %156 {offsets = [0, 22], sizes = [8, 1], strides = [1, 1]} : vector<8x25xf32> to vector<8x1xf32>
    %278 = vector.broadcast %277 : vector<8x1xf32> to vector<8x512xf32>
    %279 = arith.mulf %167, %278 : vector<8x512xf32>
    %280 = arith.addf %276, %279 : vector<8x512xf32>
    %281 = vector.extract_strided_slice %156 {offsets = [0, 23], sizes = [8, 1], strides = [1, 1]} : vector<8x25xf32> to vector<8x1xf32>
    %282 = vector.broadcast %281 : vector<8x1xf32> to vector<8x512xf32>
    %283 = arith.mulf %171, %282 : vector<8x512xf32>
    %284 = arith.addf %280, %283 : vector<8x512xf32>
    %285 = vector.extract_strided_slice %156 {offsets = [0, 24], sizes = [8, 1], strides = [1, 1]} : vector<8x25xf32> to vector<8x1xf32>
    %286 = vector.broadcast %285 : vector<8x1xf32> to vector<8x512xf32>
    %287 = arith.mulf %175, %286 : vector<8x512xf32>
    %288 = arith.addf %284, %287 : vector<8x512xf32>
    %c480_i32_27 = arith.constant 480 : i32
    %289 = tpu.dynamic_rotate %288 by %c480_i32_27 dim 1 : vector<8x512xf32>, i32 -> vector<8x512xf32>
    %290 = vector.extract_strided_slice %1 {offsets = [4, 0], sizes = [1, 512], strides = [1, 1]} : vector<5x512xf32> to vector<1x512xf32>
    %291 = vector.broadcast %290 : vector<1x512xf32> to vector<8x512xf32>
    %292 = arith.mulf %289, %291 : vector<8x512xf32>
    %293 = arith.addf %269, %292 : vector<8x512xf32>
    %c0_28 = arith.constant 0 : index
    %c0_29 = arith.constant 0 : index
    %c0_30 = arith.constant 0 : index
    %294 = vector.load %arg9[%c0_28, %c0_29, %c0_30] : memref<1x8x8xbf16, #tpu.memory_space<vmem>>, vector<1x8x8xbf16>
    %295 = vector.shape_cast %294 : vector<1x8x8xbf16> to vector<8x8xbf16>
    %296 = arith.truncf %293 : vector<8x512xf32> to vector<8x512xbf16>
    %cst_31 = arith.constant dense<0.000000e+00> : vector<8x512xf32>
    %297 = tpu.matmul %295, %296, %cst_31 {dimension_numbers = #tpu.dot_dimension_numbers<[1], [0], [0], [1], [0, 0, 1, 1], [], []>} : vector<8x8xbf16>, vector<8x512xbf16>, vector<8x512xf32> -> vector<8x512xf32>
    %c0_32 = arith.constant 0 : index
    %c0_33 = arith.constant 0 : index
    %c0_34 = arith.constant 0 : index
    %298 = vector.load %arg10[%c0_32, %c0_33, %c0_34] : memref<1x8x1xf32, #tpu.memory_space<vmem>>, vector<1x8x1xf32>
    %299 = vector.shape_cast %298 : vector<1x8x1xf32> to vector<8x1xf32>
    %300 = vector.broadcast %299 : vector<8x1xf32> to vector<8x512xf32>
    %301 = arith.addf %297, %300 : vector<8x512xf32>
    %c0_35 = arith.constant 0 : index
    %c0_36 = arith.constant 0 : index
    %c0_37 = arith.constant 0 : index
    %302 = vector.load %arg11[%c0_35, %c0_36, %c0_37] : memref<1x8x512xf32, #tpu.memory_space<vmem>>, vector<1x8x512xf32>
    %303 = vector.shape_cast %302 : vector<1x8x512xf32> to vector<8x512xf32>
    %304 = vector.shape_cast %301 : vector<8x512xf32> to vector<1x8x512xf32>
    tpu.vector_store %arg11[%c0_35, %c0_36, %c0_37], %304 {strides = array<i32>} : memref<1x8x512xf32, #tpu.memory_space<vmem>>, vector<1x8x512xf32>,
    return
  }
  func.func @transform_0(%arg0: i32, %arg1: memref<5xi32, #tpu.memory_space<smem>>) -> (i32, i32) {
    %c0_i32 = arith.constant 0 : i32
    %c0_i32_0 = arith.constant 0 : i32
    %c0_i32_1 = arith.constant 0 : i32
    return %c0_i32, %c0_i32_0 : i32, i32
  }
  func.func @transform_1(%arg0: i32, %arg1: memref<5xi32, #tpu.memory_space<smem>>) -> (i32, i32) {
    %c0_i32 = arith.constant 0 : i32
    %c0_i32_0 = arith.constant 0 : i32
    %c0_i32_1 = arith.constant 0 : i32
    return %c0_i32, %c0_i32_0 : i32, i32
  }
  func.func @transform_2(%arg0: i32, %arg1: memref<5xi32, #tpu.memory_space<smem>>) -> (i32, i32, i32) {
    %0 = arith.index_cast %arg0 : i32 to index
    %1 = memref.load %arg1[%0] : memref<5xi32, #tpu.memory_space<smem>>
    %c0_i32 = arith.constant 0 : i32
    %c0_i32_0 = arith.constant 0 : i32
    %c0_i32_1 = arith.constant 0 : i32
    return %1, %c0_i32, %c0_i32_0 : i32, i32, i32
  }
  func.func @transform_3(%arg0: i32, %arg1: memref<5xi32, #tpu.memory_space<smem>>) -> (i32, i32, i32) {
    %c0_i32 = arith.constant 0 : i32
    %c0_i32_0 = arith.constant 0 : i32
    %c0_i32_1 = arith.constant 0 : i32
    return %arg0, %c0_i32, %c0_i32_0 : i32, i32, i32
  }
  func.func @transform_4(%arg0: i32, %arg1: memref<5xi32, #tpu.memory_space<smem>>) -> (i32, i32, i32) {
    %c0_i32 = arith.constant 0 : i32
    %c0_i32_0 = arith.constant 0 : i32
    %c0_i32_1 = arith.constant 0 : i32
    return %arg0, %c0_i32, %c0_i32_0 : i32, i32, i32
  }
  func.func @transform_5(%arg0: i32, %arg1: memref<5xi32, #tpu.memory_space<smem>>) -> (i32, i32, i32) {
    %c0_i32 = arith.constant 0 : i32
    %c0_i32_0 = arith.constant 0 : i32
    %c0_i32_1 = arith.constant 0 : i32
    return %arg0, %c0_i32, %c0_i32_0 : i32, i32, i32
  }
  func.func @transform_6(%arg0: i32, %arg1: memref<5xi32, #tpu.memory_space<smem>>) -> (i32, i32, i32) {
    %c0_i32 = arith.constant 0 : i32
    %c0_i32_0 = arith.constant 0 : i32
    %c0_i32_1 = arith.constant 0 : i32
    return %arg0, %c0_i32, %c0_i32_0 : i32, i32, i32
  }
  func.func @transform_7(%arg0: i32, %arg1: memref<5xi32, #tpu.memory_space<smem>>) -> (i32, i32, i32) {
    %c0_i32 = arith.constant 0 : i32
    %c0_i32_0 = arith.constant 0 : i32
    %c0_i32_1 = arith.constant 0 : i32
    return %arg0, %c0_i32, %c0_i32_0 : i32, i32, i32
  }
  func.func @transform_8(%arg0: i32, %arg1: memref<5xi32, #tpu.memory_space<smem>>) -> (i32, i32, i32) {
    %c0_i32 = arith.constant 0 : i32
    %c0_i32_0 = arith.constant 0 : i32
    %c0_i32_1 = arith.constant 0 : i32
    return %arg0, %c0_i32, %c0_i32_0 : i32, i32, i32
  }
  func.func @transform_9(%arg0: i32, %arg1: memref<5xi32, #tpu.memory_space<smem>>) -> (i32, i32, i32) {
    %c0_i32 = arith.constant 0 : i32
    %c0_i32_0 = arith.constant 0 : i32
    %c0_i32_1 = arith.constant 0 : i32
    return %arg0, %c0_i32, %c0_i32_0 : i32, i32, i32
  }
}

</mosaic_0001>

<llo_original>
// kernel: first_cell_forward.3
$region0: #{first_cell_forward.3}
  #allocation0 [shape = 'u32[]', space=smem, size = 0x4, offset = 0x4, fixed_abs, tag = 'smem constant byte address 0x4 - core index']
  #allocation1 [shape = 'u32[72,128]{1,0:T(1,128)}', space=vmem, size = 0x9000, scoped, tag = 'internal scratch']
  %s0 = inlined_call_operand.vmem [shape: f32[16,512], index: 0, kind: input, shape index: {}]
  %s1 = inlined_call_operand.vmem [shape: f32[16,512], index: 1, kind: input, shape index: {}]
  %s2 = inlined_call_operand.vmem [shape: bf16[8,16], index: 2, kind: input, shape index: {}]
  %s3 = inlined_call_operand.vmem [shape: f32[8,1], index: 3, kind: input, shape index: {}]
  %s4 = inlined_call_operand.vmem [shape: bf16[4,8], index: 4, kind: input, shape index: {}]
  %s5 = inlined_call_operand.vmem [shape: f32[4,1], index: 5, kind: input, shape index: {}]
  %s6 = inlined_call_operand.vmem [shape: bf16[4,8], index: 6, kind: input, shape index: {}]
  %s7 = inlined_call_operand.vmem [shape: f32[4,1], index: 7, kind: input, shape index: {}]
  %s8 = inlined_call_operand.vmem [shape: f32[2,8,512], index: 8, kind: output, shape index: {}]
  %s9 = sld [smem:[#allocation0]]
  $region42: #{first_cell_forward.3} parent=0
    _
  %s11 = ssub.s32 1, %s9
  %s12 = scalar_select 0, %s11, %s9
  // Predicated region
  $region2: #{first_cell_forward.3} parent=0 // pred_check
    _
  $region3: #{first_cell_forward.3} parent=0 // pred_check_branch
    %14 = sbr.rel (0) target = $region5
  $region4: #{first_cell_forward.3} parent=0 // pred_region
    _
  $region5: #{first_cell_forward.3} parent=0 // pred_fallthru
    _
  // Predicated region
  $region6: #{first_cell_forward.3} parent=0 // pred_check
    _
  $region7: #{first_cell_forward.3} parent=0 // pred_check_branch
    %16 = sbr.rel (0) target = $region9
  $region8: #{first_cell_forward.3} parent=0 // pred_region
    _
  $region9: #{first_cell_forward.3} parent=0 // pred_fallthru
    _
  // Predicated region
  $region10: #{first_cell_forward.3} parent=0 // pred_check
    _
  $region11: #{first_cell_forward.3} parent=0 // pred_check_branch
    %18 = sbr.rel (0) target = $region13
  $region12: #{first_cell_forward.3} parent=0 // pred_region
    _
  $region13: #{first_cell_forward.3} parent=0 // pred_fallthru
    _
  // Predicated region
  $region14: #{first_cell_forward.3} parent=0 // pred_check
    _
  $region15: #{first_cell_forward.3} parent=0 // pred_check_branch
    %20 = sbr.rel (0) target = $region17
  $region16: #{first_cell_forward.3} parent=0 // pred_region
    _
  $region17: #{first_cell_forward.3} parent=0 // pred_fallthru
    _
  // Predicated region
  $region18: #{first_cell_forward.3} parent=0 // pred_check
    _
  $region19: #{first_cell_forward.3} parent=0 // pred_check_branch
    %22 = sbr.rel (0) target = $region21
  $region20: #{first_cell_forward.3} parent=0 // pred_region
    _
  $region21: #{first_cell_forward.3} parent=0 // pred_fallthru
    _
  // Predicated region
  $region22: #{first_cell_forward.3} parent=0 // pred_check
    _
  $region23: #{first_cell_forward.3} parent=0 // pred_check_branch
    %24 = sbr.rel (0) target = $region25
  $region24: #{first_cell_forward.3} parent=0 // pred_region
    _
  $region25: #{first_cell_forward.3} parent=0 // pred_fallthru
    _
  // Predicated region
  $region26: #{first_cell_forward.3} parent=0 // pred_check
    _
  $region27: #{first_cell_forward.3} parent=0 // pred_check_branch
    %26 = sbr.rel (0) target = $region29
  $region28: #{first_cell_forward.3} parent=0 // pred_region
    _
  $region29: #{first_cell_forward.3} parent=0 // pred_fallthru
    _
  // Predicated region
  $region30: #{first_cell_forward.3} parent=0 // pred_check
    _
  $region31: #{first_cell_forward.3} parent=0 // pred_check_branch
    %28 = sbr.rel (0) target = $region33
  $region32: #{first_cell_forward.3} parent=0 // pred_region
    _
  $region33: #{first_cell_forward.3} parent=0 // pred_fallthru
    _
  %v30 = vld [vmem:[%s0] sm:$0xff]
  %v31 = vld [vmem:[%s0 + $0x8] sm:$0xff]
  %v32 = vld [vmem:[%s0 + $0x10] sm:$0xff]
  %v33 = vld [vmem:[%s0 + $0x18] sm:$0xff]
  %v34 = vld [vmem:[%s0 + $0x20] sm:$0xff]
  %v35 = vld [vmem:[%s0 + $0x28] sm:$0xff]
  %v36 = vld [vmem:[%s0 + $0x30] sm:$0xff]
  %v37 = vld [vmem:[%s0 + $0x38] sm:$0xff]
  %v38 = vmax.f32 %v30, 0.0
  %v39 = vmax.f32 %v31, 0.0
  %v40 = vmax.f32 %v32, 0.0
  %v41 = vmax.f32 %v33, 0.0
  %v42 = vmax.f32 %v34, 0.0
  %v43 = vmax.f32 %v35, 0.0
  %v44 = vmax.f32 %v36, 0.0
  %v45 = vmax.f32 %v37, 0.0
  %v46 = vpack.c.bf16 %v42, %v38
  %v47 = vpack.c.bf16 %v43, %v39
  %v48 = vpack.c.bf16 %v44, %v40
  %v49 = vpack.c.bf16 %v45, %v41
  %v50 = vld [vmem:[%s1] sm:$0xff]
  %v51 = vld [vmem:[%s1 + $0x8] sm:$0xff]
  %v52 = vld [vmem:[%s1 + $0x10] sm:$0xff]
  %v53 = vld [vmem:[%s1 + $0x18] sm:$0xff]
  %v54 = vld [vmem:[%s1 + $0x20] sm:$0xff]
  %v55 = vld [vmem:[%s1 + $0x28] sm:$0xff]
  %v56 = vld [vmem:[%s1 + $0x30] sm:$0xff]
  %v57 = vld [vmem:[%s1 + $0x38] sm:$0xff]
  %v58 = vmax.f32 %v50, 0.0
  %v59 = vmax.f32 %v51, 0.0
  %v60 = vmax.f32 %v52, 0.0
  %v61 = vmax.f32 %v53, 0.0
  %v62 = vmax.f32 %v54, 0.0
  %v63 = vmax.f32 %v55, 0.0
  %v64 = vmax.f32 %v56, 0.0
  %v65 = vmax.f32 %v57, 0.0
  %v66 = vld [vmem:[%s2] sm:$0xf]
  %v67 = vld [vmem:[%s3] sm:$0xff]
  %69 = vset.pattern.permute.xlu0 0
  %70 = vperm.xlu0 %69, %v67
  %v71 = vpop.permute.xlu0 %70
  %vm73 = vcmask 130048
  %v75 = vsel %vm73, %v66, 0
  %77 = vmatpush.bf16.msra.mxu0 0
  %78 = vmatpush.bf16.msra.mxu0 0
  %79 = vmatpush.bf16.msra.mxu0 0
  %80 = vmatpush.bf16.msra.mxu0 0
  %81 = vmatpush.bf16.msra.mxu0 0
  %82 = vmatpush.bf16.msra.mxu0 0
  %83 = vmatpush.bf16.msra.mxu0 0
  %84 = vmatpush.bf16.msra.mxu0 %v46
  %85 = vmatmul.bf16.gmra.mxu0 %v75
  %v86 = vpop.f32.mrf.mxu0
  %v87 = vadd.f32 %v71, %v86
  %v88 = vpop.f32.mrf.mxu0
  %89 = vdwg.mxu0
  %90 = vmatpush.bf16.msra.mxu0 0
  %91 = vmatpush.bf16.msra.mxu0 0
  %92 = vmatpush.bf16.msra.mxu0 0
  %93 = vmatpush.bf16.msra.mxu0 0
  %94 = vmatpush.bf16.msra.mxu0 0
  %95 = vmatpush.bf16.msra.mxu0 0
  %96 = vmatpush.bf16.msra.mxu0 0
  %97 = vmatpush.bf16.msra.mxu0 %v47
  %98 = vmatmul.bf16.gmra.mxu0 %v75
  %v99 = vpop.f32.mrf.mxu0
  %v100 = vadd.f32 %v71, %v99
  %v101 = vpop.f32.mrf.mxu0
  %102 = vdwg.mxu0
  %103 = vmatpush.bf16.msra.mxu0 0
  %104 = vmatpush.bf16.msra.mxu0 0
  %105 = vmatpush.bf16.msra.mxu0 0
  %106 = vmatpush.bf16.msra.mxu0 0
  %107 = vmatpush.bf16.msra.mxu0 0
  %108 = vmatpush.bf16.msra.mxu0 0
  %109 = vmatpush.bf16.msra.mxu0 0
  %110 = vmatpush.bf16.msra.mxu0 %v48
  %111 = vmatmul.bf16.gmra.mxu0 %v75
  %v112 = vpop.f32.mrf.mxu0
  %v113 = vadd.f32 %v71, %v112
  %v114 = vpop.f32.mrf.mxu0
  %115 = vdwg.mxu0
  %116 = vmatpush.bf16.msra.mxu0 0
  %117 = vmatpush.bf16.msra.mxu0 0
  %118 = vmatpush.bf16.msra.mxu0 0
  %119 = vmatpush.bf16.msra.mxu0 0
  %120 = vmatpush.bf16.msra.mxu0 0
  %121 = vmatpush.bf16.msra.mxu0 0
  %122 = vmatpush.bf16.msra.mxu0 0
  %123 = vmatpush.bf16.msra.mxu0 %v49
  %124 = vmatmul.bf16.gmra.mxu0 %v75
  %v125 = vpop.f32.mrf.mxu0
  %v126 = vadd.f32 %v71, %v125
  %v127 = vpop.f32.mrf.mxu0
  %128 = vdwg.mxu0
  %v129 = vld [vmem:[%s4] sm:$0x3]
  %v130 = vpack.c.bf16 %v58, %v58
  %v131 = vpack.c.bf16 %v59, %v59
  %v132 = vpack.c.bf16 %v60, %v60
  %v133 = vpack.c.bf16 %v61, %v61
  %v134 = vld [vmem:[%s5] sm:$0xf]
  %136 = vset.pattern.permute.xlu0 0
  %137 = vperm.xlu0 %136, %v134
  %v138 = vpop.permute.xlu0 %137
  %vm140 = vcmask 64512
  %v142 = vsel %vm140, %v129, 0
  %vm144 = vcmask 1043456
  %v146 = vsel %vm144, %v130, 0
  %v149 = vsel %vm144, %v131, 0
  %v152 = vsel %vm144, %v132, 0
  %v155 = vsel %vm144, %v133, 0
  %157 = vmatpush.bf16.msra.mxu0 0
  %158 = vmatpush.bf16.msra.mxu0 0
  %159 = vmatpush.bf16.msra.mxu0 0
  %160 = vmatpush.bf16.msra.mxu0 0
  %161 = vmatpush.bf16.msra.mxu0 0
  %162 = vmatpush.bf16.msra.mxu0 0
  %163 = vmatpush.bf16.msra.mxu0 0
  %164 = vmatpush.bf16.msra.mxu0 %v146
  %165 = vmatmul.bf16.gmra.mxu0 %v142
  %v166 = vpop.f32.mrf.mxu0
  %v167 = vadd.f32 %v138, %v166
  %v168 = vpop.f32.mrf.mxu0
  %169 = vdwg.mxu0
  %170 = vmatpush.bf16.msra.mxu0 0
  %171 = vmatpush.bf16.msra.mxu0 0
  %172 = vmatpush.bf16.msra.mxu0 0
  %173 = vmatpush.bf16.msra.mxu0 0
  %174 = vmatpush.bf16.msra.mxu0 0
  %175 = vmatpush.bf16.msra.mxu0 0
  %176 = vmatpush.bf16.msra.mxu0 0
  %177 = vmatpush.bf16.msra.mxu0 %v149
  %178 = vmatmul.bf16.gmra.mxu0 %v142
  %v179 = vpop.f32.mrf.mxu0
  %v180 = vadd.f32 %v138, %v179
  %v181 = vpop.f32.mrf.mxu0
  %182 = vdwg.mxu0
  %183 = vmatpush.bf16.msra.mxu0 0
  %184 = vmatpush.bf16.msra.mxu0 0
  %185 = vmatpush.bf16.msra.mxu0 0
  %186 = vmatpush.bf16.msra.mxu0 0
  %187 = vmatpush.bf16.msra.mxu0 0
  %188 = vmatpush.bf16.msra.mxu0 0
  %189 = vmatpush.bf16.msra.mxu0 0
  %190 = vmatpush.bf16.msra.mxu0 %v152
  %191 = vmatmul.bf16.gmra.mxu0 %v142
  %v192 = vpop.f32.mrf.mxu0
  %v193 = vadd.f32 %v138, %v192
  %v194 = vpop.f32.mrf.mxu0
  %195 = vdwg.mxu0
  %196 = vmatpush.bf16.msra.mxu0 0
  %197 = vmatpush.bf16.msra.mxu0 0
  %198 = vmatpush.bf16.msra.mxu0 0
  %199 = vmatpush.bf16.msra.mxu0 0
  %200 = vmatpush.bf16.msra.mxu0 0
  %201 = vmatpush.bf16.msra.mxu0 0
  %202 = vmatpush.bf16.msra.mxu0 0
  %203 = vmatpush.bf16.msra.mxu0 %v155
  %204 = vmatmul.bf16.gmra.mxu0 %v142
  %v205 = vpop.f32.mrf.mxu0
  %v206 = vadd.f32 %v138, %v205
  %v207 = vpop.f32.mrf.mxu0
  %208 = vdwg.mxu0
  %v209 = vld [vmem:[%s6] sm:$0x3]
  %v210 = vpack.c.bf16 %v62, %v62
  %v211 = vpack.c.bf16 %v63, %v63
  %v212 = vpack.c.bf16 %v64, %v64
  %v213 = vpack.c.bf16 %v65, %v65
  %v214 = vld [vmem:[%s7] sm:$0xf]
  %216 = vset.pattern.permute.xlu0 0
  %217 = vperm.xlu0 %216, %v214
  %v218 = vpop.permute.xlu0 %217
  %v221 = vsel %vm140, %v209, 0
  %v224 = vsel %vm144, %v210, 0
  %v227 = vsel %vm144, %v211, 0
  %v230 = vsel %vm144, %v212, 0
  %v233 = vsel %vm144, %v213, 0
  %235 = vmatpush.bf16.msra.mxu0 0
  %236 = vmatpush.bf16.msra.mxu0 0
  %237 = vmatpush.bf16.msra.mxu0 0
  %238 = vmatpush.bf16.msra.mxu0 0
  %239 = vmatpush.bf16.msra.mxu0 0
  %240 = vmatpush.bf16.msra.mxu0 0
  %241 = vmatpush.bf16.msra.mxu0 0
  %242 = vmatpush.bf16.msra.mxu0 %v224
  %243 = vmatmul.bf16.gmra.mxu0 %v221
  %v244 = vpop.f32.mrf.mxu0
  %v245 = vadd.f32 %v218, %v244
  %v246 = vpop.f32.mrf.mxu0
  %247 = vdwg.mxu0
  %248 = vmatpush.bf16.msra.mxu0 0
  %249 = vmatpush.bf16.msra.mxu0 0
  %250 = vmatpush.bf16.msra.mxu0 0
  %251 = vmatpush.bf16.msra.mxu0 0
  %252 = vmatpush.bf16.msra.mxu0 0
  %253 = vmatpush.bf16.msra.mxu0 0
  %254 = vmatpush.bf16.msra.mxu0 0
  %255 = vmatpush.bf16.msra.mxu0 %v227
  %256 = vmatmul.bf16.gmra.mxu0 %v221
  %v257 = vpop.f32.mrf.mxu0
  %v258 = vadd.f32 %v218, %v257
  %v259 = vpop.f32.mrf.mxu0
  %260 = vdwg.mxu0
  %261 = vmatpush.bf16.msra.mxu0 0
  %262 = vmatpush.bf16.msra.mxu0 0
  %263 = vmatpush.bf16.msra.mxu0 0
  %264 = vmatpush.bf16.msra.mxu0 0
  %265 = vmatpush.bf16.msra.mxu0 0
  %266 = vmatpush.bf16.msra.mxu0 0
  %267 = vmatpush.bf16.msra.mxu0 0
  %268 = vmatpush.bf16.msra.mxu0 %v230
  %269 = vmatmul.bf16.gmra.mxu0 %v221
  %v270 = vpop.f32.mrf.mxu0
  %v271 = vadd.f32 %v218, %v270
  %v272 = vpop.f32.mrf.mxu0
  %273 = vdwg.mxu0
  %274 = vmatpush.bf16.msra.mxu0 0
  %275 = vmatpush.bf16.msra.mxu0 0
  %276 = vmatpush.bf16.msra.mxu0 0
  %277 = vmatpush.bf16.msra.mxu0 0
  %278 = vmatpush.bf16.msra.mxu0 0
  %279 = vmatpush.bf16.msra.mxu0 0
  %280 = vmatpush.bf16.msra.mxu0 0
  %281 = vmatpush.bf16.msra.mxu0 %v233
  %282 = vmatmul.bf16.gmra.mxu0 %v221
  %v283 = vpop.f32.mrf.mxu0
  %v284 = vadd.f32 %v218, %v283
  %v285 = vpop.f32.mrf.mxu0
  %286 = vdwg.mxu0
  %287 = vst [vmem:[%s8] sm:$0xf] %v167
  %288 = vst [vmem:[%s8 + $0x8] sm:$0xf] %v180
  %289 = vst [vmem:[%s8 + $0x10] sm:$0xf] %v193
  %290 = vst [vmem:[%s8 + $0x18] sm:$0xf] %v206
  %v295 = vrot.slane %v245, 4
  %v296 = vrot.slane %v258, 4
  %v297 = vrot.slane %v271, 4
  %v298 = vrot.slane %v284, 4
  %303 = vst [vmem:[%s8] sm:$0xf0] %v295
  %304 = vst [vmem:[%s8 + $0x8] sm:$0xf0] %v296
  %305 = vst [vmem:[%s8 + $0x10] sm:$0xf0] %v297
  %306 = vst [vmem:[%s8 + $0x18] sm:$0xf0] %v298
  %s307 = scalar_lea.vmem %s8, 32
  %308 = vst [vmem:[%s307] sm:$0xff] %v87
  %309 = vst [vmem:[%s307 + $0x8] sm:$0xff] %v100
  %310 = vst [vmem:[%s307 + $0x10] sm:$0xff] %v113
  %311 = vst [vmem:[%s307 + $0x18] sm:$0xff] %v126
  // Predicated region
  $region34: #{first_cell_forward.3} parent=0 // pred_check
    _
  $region35: #{first_cell_forward.3} parent=0 // pred_check_branch
    %313 = sbr.rel (0) target = $region37
  $region36: #{first_cell_forward.3} parent=0 // pred_region
    _
  $region37: #{first_cell_forward.3} parent=0 // pred_fallthru
    _
  // Predicated region
  $region38: #{first_cell_forward.3} parent=0 // pred_check
    _
  $region39: #{first_cell_forward.3} parent=0 // pred_check_branch
    %315 = sbr.rel (0) target = $region41
  $region40: #{first_cell_forward.3} parent=0 // pred_region
    _
  $region41: #{first_cell_forward.3} parent=0 // pred_fallthru
    _

// kernel: first_cell_forward.5
$region0: #{first_cell_forward.5}
  #allocation0 [shape = 'u32[]', space=smem, size = 0x4, offset = 0x4, fixed_abs, tag = 'smem constant byte address 0x4 - core index']
  #allocation1 [shape = 'u32[72,128]{1,0:T(1,128)}', space=vmem, size = 0x9000, scoped, tag = 'internal scratch']
  %s0 = inlined_call_operand.vmem [shape: f32[2,8,512], index: 0, kind: input, shape index: {}]
  %s1 = inlined_call_operand.vmem [shape: f32[5,8,512], index: 1, kind: input, shape index: {}]
  %s2 = inlined_call_operand.vmem [shape: f32[3,512], index: 2, kind: input, shape index: {}]
  %s3 = inlined_call_operand.vmem [shape: f32[3,512], index: 3, kind: input, shape index: {}]
  %s4 = inlined_call_operand.vmem [shape: f32[1,512], index: 4, kind: input, shape index: {}]
  %s5 = inlined_call_operand.vmem [shape: f32[48,512], index: 5, kind: output, shape index: {}]
  %s6 = sld [smem:[#allocation0]]
  $region30: #{first_cell_forward.5} parent=0
    _
  %s8 = ssub.s32 1, %s6
  %s9 = scalar_select 0, %s8, %s6
  // Predicated region
  $region2: #{first_cell_forward.5} parent=0 // pred_check
    _
  $region3: #{first_cell_forward.5} parent=0 // pred_check_branch
    %11 = sbr.rel (0) target = $region5
  $region4: #{first_cell_forward.5} parent=0 // pred_region
    _
  $region5: #{first_cell_forward.5} parent=0 // pred_fallthru
    _
  // Predicated region
  $region6: #{first_cell_forward.5} parent=0 // pred_check
    _
  $region7: #{first_cell_forward.5} parent=0 // pred_check_branch
    %13 = sbr.rel (0) target = $region9
  $region8: #{first_cell_forward.5} parent=0 // pred_region
    _
  $region9: #{first_cell_forward.5} parent=0 // pred_fallthru
    _
  // Predicated region
  $region10: #{first_cell_forward.5} parent=0 // pred_check
    _
  $region11: #{first_cell_forward.5} parent=0 // pred_check_branch
    %15 = sbr.rel (0) target = $region13
  $region12: #{first_cell_forward.5} parent=0 // pred_region
    _
  $region13: #{first_cell_forward.5} parent=0 // pred_fallthru
    _
  // Predicated region
  $region14: #{first_cell_forward.5} parent=0 // pred_check
    _
  $region15: #{first_cell_forward.5} parent=0 // pred_check_branch
    %17 = sbr.rel (0) target = $region17
  $region16: #{first_cell_forward.5} parent=0 // pred_region
    _
  $region17: #{first_cell_forward.5} parent=0 // pred_fallthru
    _
  // Predicated region
  $region18: #{first_cell_forward.5} parent=0 // pred_check
    _
  $region19: #{first_cell_forward.5} parent=0 // pred_check_branch
    %19 = sbr.rel (0) target = $region21
  $region20: #{first_cell_forward.5} parent=0 // pred_region
    _
  $region21: #{first_cell_forward.5} parent=0 // pred_fallthru
    _
  %v20 = vld [vmem:[%s0] sm:$0xff]
  %v21 = vld [vmem:[%s0 + $0x8] sm:$0xff]
  %v22 = vld [vmem:[%s0 + $0x10] sm:$0xff]
  %v23 = vld [vmem:[%s0 + $0x18] sm:$0xff]
  %s24 = scalar_lea.vmem %s0, 32
  %v25 = vld [vmem:[%s24] sm:$0xff]
  %v26 = vld [vmem:[%s24 + $0x8] sm:$0xff]
  %v27 = vld [vmem:[%s24 + $0x10] sm:$0xff]
  %v28 = vld [vmem:[%s24 + $0x18] sm:$0xff]
  %v29 = vld [vmem:[%s2] sm:$0x77]
  %v30 = vld [vmem:[%s2 + $0x8] sm:$0x77]
  %v31 = vld [vmem:[%s3] sm:$0x77]
  %v32 = vld [vmem:[%s3 + $0x8] sm:$0x77]
  %v33 = vld [vmem:[%s4] sm:$0xf]
  %34 = vrot.lane.b32.xlu0 %v20, 1
  %v35 = vpop.permute.xlu0 %34
  %36 = vrot.lane.b32.xlu0 %v21, 1
  %v37 = vpop.permute.xlu0 %36
  %38 = vrot.lane.b32.xlu0 %v22, 1
  %v39 = vpop.permute.xlu0 %38
  %40 = vrot.lane.b32.xlu0 %v23, 1
  %v41 = vpop.permute.xlu0 %40
  %v42 = vlaneseq
  %v43 = vand.u32 %v42, 127
  %vm44 = vcmp.lt.s32.totalorder %v43, 1
  %v45 = vsel %vm44, %v39, %v41
  %v46 = vsel %vm44, %v37, %v39
  %v47 = vsel %vm44, %v35, %v37
  %v48 = vsel %vm44, %v41, %v35
  %v51 = vperm.slane %v29, 0
  %v52 = vperm.slane %v29, 4
  %v53 = vperm.slane %v30, 0
  %v54 = vperm.slane %v30, 4
  %v59 = vperm.slane %v51, 0
  %v60 = vperm.slane %v52, 0
  %v61 = vperm.slane %v53, 0
  %v62 = vperm.slane %v54, 0
  %v63 = vmul.f32 %v48, %v59
  %v64 = vmul.f32 %v47, %v60
  %v65 = vmul.f32 %v46, %v61
  %v66 = vmul.f32 %v45, %v62
  %v67 = vperm.slane %v29, 1
  %v68 = vperm.slane %v29, 5
  %v69 = vperm.slane %v30, 1
  %v70 = vperm.slane %v30, 5
  %v75 = vperm.slane %v67, 1
  %v76 = vperm.slane %v68, 1
  %v77 = vperm.slane %v69, 1
  %v78 = vperm.slane %v70, 1
  %v79 = vmul.f32 %v20, %v75
  %v80 = vmul.f32 %v21, %v76
  %v81 = vmul.f32 %v22, %v77
  %v82 = vmul.f32 %v23, %v78
  %v83 = vadd.f32 %v63, %v79
  %v84 = vadd.f32 %v64, %v80
  %v85 = vadd.f32 %v65, %v81
  %v86 = vadd.f32 %v66, %v82
  %87 = vrot.lane.b32.xlu0 %v20, 127
  %v88 = vpop.permute.xlu0 %87
  %89 = vrot.lane.b32.xlu0 %v21, 127
  %v90 = vpop.permute.xlu0 %89
  %91 = vrot.lane.b32.xlu0 %v22, 127
  %v92 = vpop.permute.xlu0 %91
  %93 = vrot.lane.b32.xlu0 %v23, 127
  %v94 = vpop.permute.xlu0 %93
  %vm95 = vcmp.lt.s32.totalorder %v43, 127
  %v96 = vsel %vm95, %v92, %v94
  %v97 = vsel %vm95, %v90, %v92
  %v98 = vsel %vm95, %v88, %v90
  %v99 = vsel %vm95, %v94, %v88
  %v100 = vperm.slane %v29, 2
  %v101 = vperm.slane %v29, 6
  %v102 = vperm.slane %v30, 2
  %v103 = vperm.slane %v30, 6
  %v108 = vperm.slane %v100, 2
  %v109 = vperm.slane %v101, 2
  %v110 = vperm.slane %v102, 2
  %v111 = vperm.slane %v103, 2
  %v112 = vmul.f32 %v98, %v108
  %v113 = vmul.f32 %v97, %v109
  %v114 = vmul.f32 %v96, %v110
  %v115 = vmul.f32 %v99, %v111
  %v116 = vadd.f32 %v83, %v112
  %v117 = vadd.f32 %v84, %v113
  %v118 = vadd.f32 %v85, %v114
  %v119 = vadd.f32 %v86, %v115
  %120 = vrot.lane.b32.xlu0 %v116, 16
  %v121 = vpop.permute.xlu0 %120
  %122 = vrot.lane.b32.xlu0 %v117, 16
  %v123 = vpop.permute.xlu0 %122
  %124 = vrot.lane.b32.xlu0 %v118, 16
  %v125 = vpop.permute.xlu0 %124
  %126 = vrot.lane.b32.xlu0 %v119, 16
  %v127 = vpop.permute.xlu0 %126
  %vm128 = vcmp.lt.s32.totalorder %v43, 16
  %v129 = vsel %vm128, %v125, %v127
  %v130 = vsel %vm128, %v123, %v125
  %v131 = vsel %vm128, %v121, %v123
  %v132 = vsel %vm128, %v127, %v121
  %v135 = vperm.slane %v31, 0
  %v136 = vperm.slane %v31, 4
  %v137 = vperm.slane %v32, 0
  %v138 = vperm.slane %v32, 4
  %v143 = vperm.slane %v135, 0
  %v144 = vperm.slane %v136, 0
  %v145 = vperm.slane %v137, 0
  %v146 = vperm.slane %v138, 0
  %v147 = vmul.f32 %v132, %v143
  %v148 = vmul.f32 %v131, %v144
  %v149 = vmul.f32 %v130, %v145
  %v150 = vmul.f32 %v129, %v146
  %v151 = vperm.slane %v31, 1
  %v152 = vperm.slane %v31, 5
  %v153 = vperm.slane %v32, 1
  %v154 = vperm.slane %v32, 5
  %v159 = vperm.slane %v151, 1
  %v160 = vperm.slane %v152, 1
  %v161 = vperm.slane %v153, 1
  %v162 = vperm.slane %v154, 1
  %v163 = vmul.f32 %v116, %v159
  %v164 = vmul.f32 %v117, %v160
  %v165 = vmul.f32 %v118, %v161
  %v166 = vmul.f32 %v119, %v162
  %v167 = vadd.f32 %v147, %v163
  %v168 = vadd.f32 %v148, %v164
  %v169 = vadd.f32 %v149, %v165
  %v170 = vadd.f32 %v150, %v166
  %171 = vrot.lane.b32.xlu0 %v116, 112
  %v172 = vpop.permute.xlu0 %171
  %173 = vrot.lane.b32.xlu0 %v117, 112
  %v174 = vpop.permute.xlu0 %173
  %175 = vrot.lane.b32.xlu0 %v118, 112
  %v176 = vpop.permute.xlu0 %175
  %177 = vrot.lane.b32.xlu0 %v119, 112
  %v178 = vpop.permute.xlu0 %177
  %vm179 = vcmp.lt.s32.totalorder %v43, 112
  %v180 = vsel %vm179, %v176, %v178
  %v181 = vsel %vm179, %v174, %v176
  %v182 = vsel %vm179, %v172, %v174
  %v183 = vsel %vm179, %v178, %v172
  %v184 = vperm.slane %v31, 2
  %v185 = vperm.slane %v31, 6
  %v186 = vperm.slane %v32, 2
  %v187 = vperm.slane %v32, 6
  %v192 = vperm.slane %v184, 2
  %v193 = vperm.slane %v185, 2
  %v194 = vperm.slane %v186, 2
  %v195 = vperm.slane %v187, 2
  %v196 = vmul.f32 %v182, %v192
  %v197 = vmul.f32 %v181, %v193
  %v198 = vmul.f32 %v180, %v194
  %v199 = vmul.f32 %v183, %v195
  %v200 = vadd.f32 %v167, %v196
  %v201 = vadd.f32 %v168, %v197
  %v202 = vadd.f32 %v169, %v198
  %v203 = vadd.f32 %v170, %v199
  %v205 = vperm.slane %v33, 0
  %v206 = vperm.slane %v33, 1
  %v207 = vperm.slane %v33, 2
  %v208 = vperm.slane %v33, 3
  %v213 = vmul.f32 %v200, %v205
  %v214 = vmul.f32 %v201, %v206
  %v215 = vmul.f32 %v202, %v207
  %v216 = vmul.f32 %v203, %v208
  %217 = vrot.lane.b32.xlu0 %v25, 1
  %v218 = vpop.permute.xlu0 %217
  %219 = vrot.lane.b32.xlu0 %v26, 1
  %v220 = vpop.permute.xlu0 %219
  %221 = vrot.lane.b32.xlu0 %v27, 1
  %v222 = vpop.permute.xlu0 %221
  %223 = vrot.lane.b32.xlu0 %v28, 1
  %v224 = vpop.permute.xlu0 %223
  %v225 = vsel %vm44, %v222, %v224
  %v226 = vsel %vm44, %v220, %v222
  %v227 = vsel %vm44, %v218, %v220
  %v228 = vsel %vm44, %v224, %v218
  %v229 = vmul.f32 %v228, %v59
  %v230 = vmul.f32 %v227, %v60
  %v231 = vmul.f32 %v226, %v61
  %v232 = vmul.f32 %v225, %v62
  %v233 = vmul.f32 %v25, %v75
  %v234 = vmul.f32 %v26, %v76
  %v235 = vmul.f32 %v27, %v77
  %v236 = vmul.f32 %v28, %v78
  %v237 = vadd.f32 %v229, %v233
  %v238 = vadd.f32 %v230, %v234
  %v239 = vadd.f32 %v231, %v235
  %v240 = vadd.f32 %v232, %v236
  %241 = vrot.lane.b32.xlu0 %v25, 127
  %v242 = vpop.permute.xlu0 %241
  %243 = vrot.lane.b32.xlu0 %v26, 127
  %v244 = vpop.permute.xlu0 %243
  %245 = vrot.lane.b32.xlu0 %v27, 127
  %v246 = vpop.permute.xlu0 %245
  %247 = vrot.lane.b32.xlu0 %v28, 127
  %v248 = vpop.permute.xlu0 %247
  %v249 = vsel %vm95, %v246, %v248
  %v250 = vsel %vm95, %v244, %v246
  %v251 = vsel %vm95, %v242, %v244
  %v252 = vsel %vm95, %v248, %v242
  %v253 = vmul.f32 %v251, %v108
  %v254 = vmul.f32 %v250, %v109
  %v255 = vmul.f32 %v249, %v110
  %v256 = vmul.f32 %v252, %v111
  %v257 = vadd.f32 %v237, %v253
  %v258 = vadd.f32 %v238, %v254
  %v259 = vadd.f32 %v239, %v255
  %v260 = vadd.f32 %v240, %v256
  %261 = vrot.lane.b32.xlu0 %v257, 16
  %v262 = vpop.permute.xlu0 %261
  %263 = vrot.lane.b32.xlu0 %v258, 16
  %v264 = vpop.permute.xlu0 %263
  %265 = vrot.lane.b32.xlu0 %v259, 16
  %v266 = vpop.permute.xlu0 %265
  %267 = vrot.lane.b32.xlu0 %v260, 16
  %v268 = vpop.permute.xlu0 %267
  %v269 = vsel %vm128, %v266, %v268
  %v270 = vsel %vm128, %v264, %v266
  %v271 = vsel %vm128, %v262, %v264
  %v272 = vsel %vm128, %v268, %v262
  %v273 = vmul.f32 %v272, %v143
  %v274 = vmul.f32 %v271, %v144
  %v275 = vmul.f32 %v270, %v145
  %v276 = vmul.f32 %v269, %v146
  %v277 = vmul.f32 %v257, %v159
  %v278 = vmul.f32 %v258, %v160
  %v279 = vmul.f32 %v259, %v161
  %v280 = vmul.f32 %v260, %v162
  %v281 = vadd.f32 %v273, %v277
  %v282 = vadd.f32 %v274, %v278
  %v283 = vadd.f32 %v275, %v279
  %v284 = vadd.f32 %v276, %v280
  %285 = vrot.lane.b32.xlu0 %v257, 112
  %v286 = vpop.permute.xlu0 %285
  %287 = vrot.lane.b32.xlu0 %v258, 112
  %v288 = vpop.permute.xlu0 %287
  %289 = vrot.lane.b32.xlu0 %v259, 112
  %v290 = vpop.permute.xlu0 %289
  %291 = vrot.lane.b32.xlu0 %v260, 112
  %v292 = vpop.permute.xlu0 %291
  %v293 = vsel %vm179, %v290, %v292
  %v294 = vsel %vm179, %v288, %v290
  %v295 = vsel %vm179, %v286, %v288
  %v296 = vsel %vm179, %v292, %v286
  %v297 = vmul.f32 %v295, %v192
  %v298 = vmul.f32 %v294, %v193
  %v299 = vmul.f32 %v293, %v194
  %v300 = vmul.f32 %v296, %v195
  %v301 = vadd.f32 %v281, %v297
  %v302 = vadd.f32 %v282, %v298
  %v303 = vadd.f32 %v283, %v299
  %v304 = vadd.f32 %v284, %v300
  %v305 = vmul.f32 %v301, %v205
  %v306 = vmul.f32 %v302, %v206
  %v307 = vmul.f32 %v303, %v207
  %v308 = vmul.f32 %v304, %v208
  %309 = vst [vmem:[%s5] sm:$0xff] %v20
  %310 = vst [vmem:[%s5 + $0x8] sm:$0xff] %v21
  %311 = vst [vmem:[%s5 + $0x10] sm:$0xff] %v22
  %312 = vst [vmem:[%s5 + $0x18] sm:$0xff] %v23
  %v313 = vld [vmem:[%s1] sm:$0xff]
  %v314 = vld [vmem:[%s1 + $0x8] sm:$0xff]
  %v315 = vld [vmem:[%s1 + $0x10] sm:$0xff]
  %v316 = vld [vmem:[%s1 + $0x18] sm:$0xff]
  %s317 = scalar_lea.vmem %s1, 32
  %v318 = vld [vmem:[%s317] sm:$0xff]
  %v319 = vld [vmem:[%s317 + $0x8] sm:$0xff]
  %v320 = vld [vmem:[%s317 + $0x10] sm:$0xff]
  %v321 = vld [vmem:[%s317 + $0x18] sm:$0xff]
  %v322 = vadd.f32 %v313, %v318
  %v323 = vadd.f32 %v314, %v319
  %v324 = vadd.f32 %v315, %v320
  %v325 = vadd.f32 %v316, %v321
  %326 = vst [vmem:[%s5 + $0x20] sm:$0xff] %v322
  %327 = vst [vmem:[%s5 + $0x28] sm:$0xff] %v323
  %328 = vst [vmem:[%s5 + $0x30] sm:$0xff] %v324
  %329 = vst [vmem:[%s5 + $0x38] sm:$0xff] %v325
  %s330 = scalar_lea.vmem %s1, 64
  %v331 = vld [vmem:[%s330] sm:$0xff]
  %v332 = vld [vmem:[%s330 + $0x8] sm:$0xff]
  %v333 = vld [vmem:[%s330 + $0x10] sm:$0xff]
  %v334 = vld [vmem:[%s330 + $0x18] sm:$0xff]
  %s335 = scalar_lea.vmem %s1, 96
  %v336 = vld [vmem:[%s335] sm:$0xff]
  %v337 = vld [vmem:[%s335 + $0x8] sm:$0xff]
  %v338 = vld [vmem:[%s335 + $0x10] sm:$0xff]
  %v339 = vld [vmem:[%s335 + $0x18] sm:$0xff]
  %v340 = vadd.f32 %v331, %v336
  %v341 = vadd.f32 %v332, %v337
  %v342 = vadd.f32 %v333, %v338
  %v343 = vadd.f32 %v334, %v339
  %344 = vst [vmem:[%s5 + $0x40] sm:$0xff] %v340
  %345 = vst [vmem:[%s5 + $0x48] sm:$0xff] %v341
  %346 = vst [vmem:[%s5 + $0x50] sm:$0xff] %v342
  %347 = vst [vmem:[%s5 + $0x58] sm:$0xff] %v343
  %v348 = vadd.f32 %v305, %v20
  %v349 = vadd.f32 %v306, %v21
  %v350 = vadd.f32 %v307, %v22
  %v351 = vadd.f32 %v308, %v23
  %352 = vst [vmem:[%s5 + $0x60] sm:$0xff] %v348
  %353 = vst [vmem:[%s5 + $0x68] sm:$0xff] %v349
  %354 = vst [vmem:[%s5 + $0x70] sm:$0xff] %v350
  %355 = vst [vmem:[%s5 + $0x78] sm:$0xff] %v351
  %v356 = vmul.f32 %v213, 2.0
  %v357 = vmul.f32 %v214, 2.0
  %v358 = vmul.f32 %v215, 2.0
  %v359 = vmul.f32 %v216, 2.0
  %360 = vst [vmem:[%s5 + $0x80] sm:$0xff] %v356
  %361 = vst [vmem:[%s5 + $0x88] sm:$0xff] %v357
  %362 = vst [vmem:[%s5 + $0x90] sm:$0xff] %v358
  %363 = vst [vmem:[%s5 + $0x98] sm:$0xff] %v359
  %s364 = scalar_lea.vmem %s1, 128
  %v365 = vld [vmem:[%s364] sm:$0xff]
  %v366 = vld [vmem:[%s364 + $0x8] sm:$0xff]
  %v367 = vld [vmem:[%s364 + $0x10] sm:$0xff]
  %v368 = vld [vmem:[%s364 + $0x18] sm:$0xff]
  %v369 = vadd.f32 %v365, %v25
  %v370 = vadd.f32 %v366, %v26
  %v371 = vadd.f32 %v367, %v27
  %v372 = vadd.f32 %v368, %v28
  %373 = vst [vmem:[%s5 + $0xa0] sm:$0xff] %v369
  %374 = vst [vmem:[%s5 + $0xa8] sm:$0xff] %v370
  %375 = vst [vmem:[%s5 + $0xb0] sm:$0xff] %v371
  %376 = vst [vmem:[%s5 + $0xb8] sm:$0xff] %v372
  // Predicated region
  $region22: #{first_cell_forward.5} parent=0 // pred_check
    _
  $region23: #{first_cell_forward.5} parent=0 // pred_check_branch
    %378 = sbr.rel (0) target = $region25
  $region24: #{first_cell_forward.5} parent=0 // pred_region
    _
  $region25: #{first_cell_forward.5} parent=0 // pred_fallthru
    _
  // Predicated region
  $region26: #{first_cell_forward.5} parent=0 // pred_check
    _
  $region27: #{first_cell_forward.5} parent=0 // pred_check_branch
    %380 = sbr.rel (0) target = $region29
  $region28: #{first_cell_forward.5} parent=0 // pred_region
    _
  $region29: #{first_cell_forward.5} parent=0 // pred_fallthru
    _

// kernel: first_cell_forward.4
$region0: #{first_cell_forward.4}
  #allocation0 [shape = 'u32[]', space=smem, size = 0x4, offset = 0x4, fixed_abs, tag = 'smem constant byte address 0x4 - core index']
  #allocation1 [shape = 'u32[72,128]{1,0:T(1,128)}', space=vmem, size = 0x9000, scoped, tag = 'internal scratch']
  #allocation2 [shape = 's32[1]{0}', space=sflag, size = 0x4, scoped, tag = 'scoped memory for first_cell_forward.4']
  #allocation3 [shape = 'u8[512]{0}', space=smem, size = 0x200, scoped, tag = 'prefetched SMEM operand 0']
  %s0 = inlined_call_operand.vmem [shape: s32[5], index: 0, kind: input, shape index: {}]
  %s1 = inlined_call_operand.vmem [shape: f32[5,512], index: 1, kind: input, shape index: {}]
  %s2 = inlined_call_operand.vmem [shape: f32[5,512], index: 2, kind: input, shape index: {}]
  %s3 = inlined_call_operand.vmem [shape: f32[2,8,512], index: 3, kind: input, shape index: {}]
  %s4 = inlined_call_operand.vmem [shape: f32[5,8,25], index: 4, kind: input, shape index: {}]
  %s5 = inlined_call_operand.vmem [shape: bf16[5,8,8], index: 5, kind: input, shape index: {}]
  %s6 = inlined_call_operand.vmem [shape: f32[5,8,1], index: 6, kind: input, shape index: {}]
  %s7 = inlined_call_operand.vmem [shape: f32[5,8,25], index: 7, kind: input, shape index: {}]
  %s8 = inlined_call_operand.vmem [shape: bf16[5,8,8], index: 8, kind: input, shape index: {}]
  %s9 = inlined_call_operand.vmem [shape: f32[5,8,1], index: 9, kind: input, shape index: {}]
  %s10 = inlined_call_operand.vmem [shape: f32[5,8,512], index: 10, kind: output, shape index: {}]
  %s11 = sld [smem:[#allocation0]]
  $region69: #{first_cell_forward.4} parent=0
    _
  %s13 = ssub.s32 1, %s11
  %s14 = scalar_select 0, %s13, %s11
  %s16 = sshll.u32 %s0, 4
  %s17 = int_to_ptr.vmem [resolvable:$true] %s16
  %19 = dma.vmem_to_smem %s17, 16, [#allocation3], [#allocation2]
  %21 = dma.done [#allocation2], 16
  %22 = sfence
  loop: start=0, step=1, limit=7
  $region2: #{first_cell_forward.4} parent=0 // loop_pre_header
    _
  $region3: #{first_cell_forward.4} parent=0 // loop_header
    %s24 = sphi 0, %s28
    %p25 = scmp.ge.s32.totalorder %s24, 7
    %s32 = sphi 0, %s32
    %s34 = sphi 0, %s32
    %s35 = sphi 0, %s34
    %s49 = sphi 0, %s35
    %s53 = sphi 0, %s53
    %s55 = sphi 0, %s53
    %s56 = sphi 0, %s55
    %s70 = sphi 0, %s56
    %s78 = sphi 0, %s80
    %s81 = sphi 0, %s78
    %s82 = sphi 0, %s81
    %s98 = sphi 0, %s82
    %s104 = sphi 0, %s106
    %s107 = sphi 0, %s104
    %s108 = sphi 0, %s107
    %s124 = sphi 0, %s108
    %s130 = sphi 0, %s132
    %s133 = sphi 0, %s130
    %s134 = sphi 0, %s133
    %s150 = sphi 0, %s134
    %s156 = sphi 0, %s158
    %s159 = sphi 0, %s156
    %s160 = sphi 0, %s159
    %s176 = sphi 0, %s160
    %s182 = sphi 0, %s184
    %s185 = sphi 0, %s182
    %s186 = sphi 0, %s185
    %s202 = sphi 0, %s186
    %s208 = sphi 0, %s210
    %s211 = sphi 0, %s208
    %s212 = sphi 0, %s211
    %s228 = sphi 0, %s212
    %s234 = sphi 0, %s236
    %s237 = sphi 0, %s234
    %s238 = sphi 0, %s237
    %s254 = sphi 0, %s238
    %s260 = sphi 0, %s262
    %s263 = sphi 0, %s260
    %s264 = sphi 0, %s263
    %s280 = sphi 0, %s264
  $region4: #{first_cell_forward.4} parent=0 // loop_header_branch
    %27 = sbr.rel (%p25) target = $region8
  $region5: #{first_cell_forward.4} parent=0 // loop_body
    %s29 = ssub.s32 %s24, 1
    %s30 = ssub.s32 %s24, 2
    %s31 = sadd.s32 %s24, 1
    %s33 = sadd.s32 %s32, 1
    %p36 = scmp.eq.s32.totalorder %s24, 4
    %p37 = scmp.ne.s32.totalorder %s32, %s34
    %p38 = scmp.eq.s32.totalorder %s24, 0
    %p39 = por %p37, %p38
    %p40 = scmp.ne.s32.totalorder %s32, %s34
    %p41 = scmp.eq.s32.totalorder %s29, 4
    %p42 = por %p40, %p41
    %p43 = scmp.ne.s32.totalorder %s34, %s35
    %p44 = scmp.eq.s32.totalorder %s29, 0
    %p45 = por %p43, %p44
    %p46 = scmp.ne.s32.totalorder %s34, %s35
    %p47 = scmp.eq.s32.totalorder %s30, 4
    %p48 = por %p46, %p47
    %p50 = scmp.ne.s32.totalorder %s35, %s49
    %p51 = scmp.eq.s32.totalorder %s30, 0
    %p52 = por %p50, %p51
    %s54 = sadd.s32 %s53, 1
    %p57 = scmp.eq.s32.totalorder %s24, 4
    %p58 = scmp.ne.s32.totalorder %s53, %s55
    %p59 = scmp.eq.s32.totalorder %s24, 0
    %p60 = por %p58, %p59
    %p61 = scmp.ne.s32.totalorder %s53, %s55
    %p62 = scmp.eq.s32.totalorder %s29, 4
    %p63 = por %p61, %p62
    %p64 = scmp.ne.s32.totalorder %s55, %s56
    %p65 = scmp.eq.s32.totalorder %s29, 0
    %p66 = por %p64, %p65
    %p67 = scmp.ne.s32.totalorder %s55, %s56
    %p68 = scmp.eq.s32.totalorder %s30, 4
    %p69 = por %p67, %p68
    %p71 = scmp.ne.s32.totalorder %s56, %s70
    %p72 = scmp.eq.s32.totalorder %s30, 0
    %p73 = por %p71, %p72
    %s74 = sld [smem:[#allocation3 + %s24]]
    %s75 = sld [smem:[#allocation3 + %s31]]
    %s76 = ssub.s32 %s74, %s75
    %p77 = scmp.eq.s32.totalorder %s76, 0
    %s79 = sadd.s32 %s78, 1
    %s80 = scalar_select %p77, %s78, %s79
    %p83 = pneg %p77
    %p84 = scmp.eq.s32.totalorder %s24, 4
    %p85 = por %p83, %p84
    %p86 = scmp.ne.s32.totalorder %s78, %s81
    %p87 = scmp.eq.s32.totalorder %s24, 0
    %p88 = por %p86, %p87
    %p89 = scmp.ne.s32.totalorder %s78, %s81
    %p90 = scmp.eq.s32.totalorder %s29, 4
    %p91 = por %p89, %p90
    %p92 = scmp.ne.s32.totalorder %s81, %s82
    %p93 = scmp.eq.s32.totalorder %s29, 0
    %p94 = por %p92, %p93
    %p95 = scmp.ne.s32.totalorder %s81, %s82
    %p96 = scmp.eq.s32.totalorder %s30, 4
    %p97 = por %p95, %p96
    %p99 = scmp.ne.s32.totalorder %s82, %s98
    %p100 = scmp.eq.s32.totalorder %s30, 0
    %p101 = por %p99, %p100
    %s102 = ssub.s32 %s24, %s31
    %p103 = scmp.eq.s32.totalorder %s102, 0
    %s105 = sadd.s32 %s104, 1
    %s106 = scalar_select %p103, %s104, %s105
    %p109 = pneg %p103
    %p110 = scmp.eq.s32.totalorder %s24, 4
    %p111 = por %p109, %p110
    %p112 = scmp.ne.s32.totalorder %s104, %s107
    %p113 = scmp.eq.s32.totalorder %s24, 0
    %p114 = por %p112, %p113
    %p115 = scmp.ne.s32.totalorder %s104, %s107
    %p116 = scmp.eq.s32.totalorder %s29, 4
    %p117 = por %p115, %p116
    %p118 = scmp.ne.s32.totalorder %s107, %s108
    %p119 = scmp.eq.s32.totalorder %s29, 0
    %p120 = por %p118, %p119
    %p121 = scmp.ne.s32.totalorder %s107, %s108
    %p122 = scmp.eq.s32.totalorder %s30, 4
    %p123 = por %p121, %p122
    %p125 = scmp.ne.s32.totalorder %s108, %s124
    %p126 = scmp.eq.s32.totalorder %s30, 0
    %p127 = por %p125, %p126
    %s128 = ssub.s32 %s24, %s31
    %p129 = scmp.eq.s32.totalorder %s128, 0
    %s131 = sadd.s32 %s130, 1
    %s132 = scalar_select %p129, %s130, %s131
    %p135 = pneg %p129
    %p136 = scmp.eq.s32.totalorder %s24, 4
    %p137 = por %p135, %p136
    %p138 = scmp.ne.s32.totalorder %s130, %s133
    %p139 = scmp.eq.s32.totalorder %s24, 0
    %p140 = por %p138, %p139
    %p141 = scmp.ne.s32.totalorder %s130, %s133
    %p142 = scmp.eq.s32.totalorder %s29, 4
    %p143 = por %p141, %p142
    %p144 = scmp.ne.s32.totalorder %s133, %s134
    %p145 = scmp.eq.s32.totalorder %s29, 0
    %p146 = por %p144, %p145
    %p147 = scmp.ne.s32.totalorder %s133, %s134
    %p148 = scmp.eq.s32.totalorder %s30, 4
    %p149 = por %p147, %p148
    %p151 = scmp.ne.s32.totalorder %s134, %s150
    %p152 = scmp.eq.s32.totalorder %s30, 0
    %p153 = por %p151, %p152
    %s154 = ssub.s32 %s24, %s31
    %p155 = scmp.eq.s32.totalorder %s154, 0
    %s157 = sadd.s32 %s156, 1
    %s158 = scalar_select %p155, %s156, %s157
    %p161 = pneg %p155
    %p162 = scmp.eq.s32.totalorder %s24, 4
    %p163 = por %p161, %p162
    %p164 = scmp.ne.s32.totalorder %s156, %s159
    %p165 = scmp.eq.s32.totalorder %s24, 0
    %p166 = por %p164, %p165
    %p167 = scmp.ne.s32.totalorder %s156, %s159
    %p168 = scmp.eq.s32.totalorder %s29, 4
    %p169 = por %p167, %p168
    %p170 = scmp.ne.s32.totalorder %s159, %s160
    %p171 = scmp.eq.s32.totalorder %s29, 0
    %p172 = por %p170, %p171
    %p173 = scmp.ne.s32.totalorder %s159, %s160
    %p174 = scmp.eq.s32.totalorder %s30, 4
    %p175 = por %p173, %p174
    %p177 = scmp.ne.s32.totalorder %s160, %s176
    %p178 = scmp.eq.s32.totalorder %s30, 0
    %p179 = por %p177, %p178
    %s180 = ssub.s32 %s24, %s31
    %p181 = scmp.eq.s32.totalorder %s180, 0
    %s183 = sadd.s32 %s182, 1
    %s184 = scalar_select %p181, %s182, %s183
    %p187 = pneg %p181
    %p188 = scmp.eq.s32.totalorder %s24, 4
    %p189 = por %p187, %p188
    %p190 = scmp.ne.s32.totalorder %s182, %s185
    %p191 = scmp.eq.s32.totalorder %s24, 0
    %p192 = por %p190, %p191
    %p193 = scmp.ne.s32.totalorder %s182, %s185
    %p194 = scmp.eq.s32.totalorder %s29, 4
    %p195 = por %p193, %p194
    %p196 = scmp.ne.s32.totalorder %s185, %s186
    %p197 = scmp.eq.s32.totalorder %s29, 0
    %p198 = por %p196, %p197
    %p199 = scmp.ne.s32.totalorder %s185, %s186
    %p200 = scmp.eq.s32.totalorder %s30, 4
    %p201 = por %p199, %p200
    %p203 = scmp.ne.s32.totalorder %s186, %s202
    %p204 = scmp.eq.s32.totalorder %s30, 0
    %p205 = por %p203, %p204
    %s206 = ssub.s32 %s24, %s31
    %p207 = scmp.eq.s32.totalorder %s206, 0
    %s209 = sadd.s32 %s208, 1
    %s210 = scalar_select %p207, %s208, %s209
    %p213 = pneg %p207
    %p214 = scmp.eq.s32.totalorder %s24, 4
    %p215 = por %p213, %p214
    %p216 = scmp.ne.s32.totalorder %s208, %s211
    %p217 = scmp.eq.s32.totalorder %s24, 0
    %p218 = por %p216, %p217
    %p219 = scmp.ne.s32.totalorder %s208, %s211
    %p220 = scmp.eq.s32.totalorder %s29, 4
    %p221 = por %p219, %p220
    %p222 = scmp.ne.s32.totalorder %s211, %s212
    %p223 = scmp.eq.s32.totalorder %s29, 0
    %p224 = por %p222, %p223
    %p225 = scmp.ne.s32.totalorder %s211, %s212
    %p226 = scmp.eq.s32.totalorder %s30, 4
    %p227 = por %p225, %p226
    %p229 = scmp.ne.s32.totalorder %s212, %s228
    %p230 = scmp.eq.s32.totalorder %s30, 0
    %p231 = por %p229, %p230
    %s232 = ssub.s32 %s24, %s31
    %p233 = scmp.eq.s32.totalorder %s232, 0
    %s235 = sadd.s32 %s234, 1
    %s236 = scalar_select %p233, %s234, %s235
    %p239 = pneg %p233
    %p240 = scmp.eq.s32.totalorder %s24, 4
    %p241 = por %p239, %p240
    %p242 = scmp.ne.s32.totalorder %s234, %s237
    %p243 = scmp.eq.s32.totalorder %s24, 0
    %p244 = por %p242, %p243
    %p245 = scmp.ne.s32.totalorder %s234, %s237
    %p246 = scmp.eq.s32.totalorder %s29, 4
    %p247 = por %p245, %p246
    %p248 = scmp.ne.s32.totalorder %s237, %s238
    %p249 = scmp.eq.s32.totalorder %s29, 0
    %p250 = por %p248, %p249
    %p251 = scmp.ne.s32.totalorder %s237, %s238
    %p252 = scmp.eq.s32.totalorder %s30, 4
    %p253 = por %p251, %p252
    %p255 = scmp.ne.s32.totalorder %s238, %s254
    %p256 = scmp.eq.s32.totalorder %s30, 0
    %p257 = por %p255, %p256
    %s258 = ssub.s32 %s24, %s31
    %p259 = scmp.eq.s32.totalorder %s258, 0
    %s261 = sadd.s32 %s260, 1
    %s262 = scalar_select %p259, %s260, %s261
    %p265 = pneg %p259
    %p266 = scmp.eq.s32.totalorder %s24, 4
    %p267 = por %p265, %p266
    %p268 = scmp.ne.s32.totalorder %s260, %s263
    %p269 = scmp.eq.s32.totalorder %s24, 0
    %p270 = por %p268, %p269
    %p271 = scmp.ne.s32.totalorder %s260, %s263
    %p272 = scmp.eq.s32.totalorder %s29, 4
    %p273 = por %p271, %p272
    %p274 = scmp.ne.s32.totalorder %s263, %s264
    %p275 = scmp.eq.s32.totalorder %s29, 0
    %p276 = por %p274, %p275
    %p277 = scmp.ne.s32.totalorder %s263, %s264
    %p278 = scmp.eq.s32.totalorder %s30, 4
    %p279 = por %p277, %p278
    %p281 = scmp.ne.s32.totalorder %s264, %s280
    %p282 = scmp.eq.s32.totalorder %s30, 0
    %p283 = por %p281, %p282
    %p284 = scmp.le.s32.totalorder 1, %s24
    %p285 = scmp.lt.s32.totalorder %s24, 6
    %p286 = pnand %p284, %p285
    %p287 = pneg %p286
    // Predicated region
    $region9: #{first_cell_forward.4} parent=5 // pred_check
      _
    $region10: #{first_cell_forward.4} parent=5 // pred_check_branch
      %289 = sbr.rel (%p286) target = $region12
    $region11: #{first_cell_forward.4} parent=5 // pred_region
      %s290 = ssub.s32 %s24, 1
      // Predicated region
      $region13: #{first_cell_forward.4} parent=11 // pred_check
        %p291 = pneg %p45
      $region14: #{first_cell_forward.4} parent=11 // pred_check_branch
        %293 = sbr.rel (%p291) target = $region16
      $region15: #{first_cell_forward.4} parent=11 // pred_region
        _
      $region16: #{first_cell_forward.4} parent=11 // pred_fallthru
        _
      // Predicated region
      $region17: #{first_cell_forward.4} parent=11 // pred_check
        %p294 = pneg %p66
      $region18: #{first_cell_forward.4} parent=11 // pred_check_branch
        %296 = sbr.rel (%p294) target = $region20
      $region19: #{first_cell_forward.4} parent=11 // pred_region
        _
      $region20: #{first_cell_forward.4} parent=11 // pred_fallthru
        _
    $region12: #{first_cell_forward.4} parent=5 // pred_fallthru
      _
    %p297 = scmp.lt.s32.totalorder %s24, 5
    // Predicated region
    $region21: #{first_cell_forward.4} parent=5 // pred_check
      %p298 = pneg %p297
    $region22: #{first_cell_forward.4} parent=5 // pred_check_branch
      %300 = sbr.rel (%p298) target = $region24
    $region23: #{first_cell_forward.4} parent=5 // pred_region
      // Predicated region
      $region25: #{first_cell_forward.4} parent=23 // pred_check
        %p301 = pneg %p88
      $region26: #{first_cell_forward.4} parent=23 // pred_check_branch
        %303 = sbr.rel (%p301) target = $region28
      $region27: #{first_cell_forward.4} parent=23 // pred_region
        %s304 = sld [smem:[#allocation3 + %s24]]
        %p305 = scmp.lt.s32.totalorder %s304, 1
        %s306 = scalar_select %p305, %s304, 1
        %s307 = smul.addr %s306, 4
        %s308 = smul.addr %s307, 8
        %s309 = scalar_lea.vmem %s3, %s308
        %s310 = sld [smem:[#allocation3 + %s24]]
      $region28: #{first_cell_forward.4} parent=23 // pred_fallthru
        _
      // Predicated region
      $region29: #{first_cell_forward.4} parent=23 // pred_check
        %p311 = pneg %p114
      $region30: #{first_cell_forward.4} parent=23 // pred_check_branch
        %313 = sbr.rel (%p311) target = $region32
      $region31: #{first_cell_forward.4} parent=23 // pred_region
        %p314 = scmp.lt.s32.totalorder %s24, 4
        %s315 = scalar_select %p314, %s24, 4
        %s316 = smul.addr %s315, 8
        %s317 = scalar_lea.vmem %s4, %s316
      $region32: #{first_cell_forward.4} parent=23 // pred_fallthru
        _
      // Predicated region
      $region33: #{first_cell_forward.4} parent=23 // pred_check
        %p318 = pneg %p140
      $region34: #{first_cell_forward.4} parent=23 // pred_check_branch
        %320 = sbr.rel (%p318) target = $region36
      $region35: #{first_cell_forward.4} parent=23 // pred_region
        %p321 = scmp.lt.s32.totalorder %s24, 4
        %s322 = scalar_select %p321, %s24, 4
        %s323 = smul.addr %s322, 4
        %s324 = scalar_lea.vmem %s5, %s323
      $region36: #{first_cell_forward.4} parent=23 // pred_fallthru
        _
      // Predicated region
      $region37: #{first_cell_forward.4} parent=23 // pred_check
        %p325 = pneg %p166
      $region38: #{first_cell_forward.4} parent=23 // pred_check_branch
        %327 = sbr.rel (%p325) target = $region40
      $region39: #{first_cell_forward.4} parent=23 // pred_region
        %p328 = scmp.lt.s32.totalorder %s24, 4
        %s329 = scalar_select %p328, %s24, 4
        %s330 = smul.addr %s329, 8
        %s331 = scalar_lea.vmem %s6, %s330
      $region40: #{first_cell_forward.4} parent=23 // pred_fallthru
        _
      // Predicated region
      $region41: #{first_cell_forward.4} parent=23 // pred_check
        %p332 = pneg %p192
      $region42: #{first_cell_forward.4} parent=23 // pred_check_branch
        %334 = sbr.rel (%p332) target = $region44
      $region43: #{first_cell_forward.4} parent=23 // pred_region
        %p335 = scmp.lt.s32.totalorder %s24, 4
        %s336 = scalar_select %p335, %s24, 4
        %s337 = smul.addr %s336, 8
        %s338 = scalar_lea.vmem %s7, %s337
      $region44: #{first_cell_forward.4} parent=23 // pred_fallthru
        _
      // Predicated region
      $region45: #{first_cell_forward.4} parent=23 // pred_check
        %p339 = pneg %p218
      $region46: #{first_cell_forward.4} parent=23 // pred_check_branch
        %341 = sbr.rel (%p339) target = $region48
      $region47: #{first_cell_forward.4} parent=23 // pred_region
        %p342 = scmp.lt.s32.totalorder %s24, 4
        %s343 = scalar_select %p342, %s24, 4
        %s344 = smul.addr %s343, 4
        %s345 = scalar_lea.vmem %s8, %s344
      $region48: #{first_cell_forward.4} parent=23 // pred_fallthru
        _
      // Predicated region
      $region49: #{first_cell_forward.4} parent=23 // pred_check
        %p346 = pneg %p244
      $region50: #{first_cell_forward.4} parent=23 // pred_check_branch
        %348 = sbr.rel (%p346) target = $region52
      $region51: #{first_cell_forward.4} parent=23 // pred_region
        %p349 = scmp.lt.s32.totalorder %s24, 4
        %s350 = scalar_select %p349, %s24, 4
        %s351 = smul.addr %s350, 8
        %s352 = scalar_lea.vmem %s9, %s351
      $region52: #{first_cell_forward.4} parent=23 // pred_fallthru
        _
    $region24: #{first_cell_forward.4} parent=5 // pred_fallthru
      _
    %p353 = scmp.le.s32.totalorder 1, %s24
    %p354 = scmp.lt.s32.totalorder %s24, 6
    %p355 = pnand %p353, %p354
    %p356 = pneg %p355
    // Predicated region
    $region53: #{first_cell_forward.4} parent=5 // pred_check
      _
    $region54: #{first_cell_forward.4} parent=5 // pred_check_branch
      %358 = sbr.rel (%p355) target = $region56
    $region55: #{first_cell_forward.4} parent=5 // pred_region
      %s359 = ssub.s32 %s24, 1
      %p360 = pneg %p45
      %p361 = pneg %p42
      %p362 = pneg %p66
      %p363 = pneg %p63
      %s364 = sld [smem:[#allocation3 + %s29]]
      %p365 = scmp.lt.s32.totalorder %s364, 1
      %s366 = scalar_select %p365, %s364, 1
      %s367 = smul.addr %s366, 4
      %s368 = smul.addr %s367, 8
      %s369 = scalar_lea.vmem %s3, %s368
      %p370 = pneg %p94
      %p371 = pneg %p91
      %p372 = scmp.lt.s32.totalorder %s29, 4
      %s373 = scalar_select %p372, %s29, 4
      %s374 = smul.addr %s373, 8
      %s375 = scalar_lea.vmem %s4, %s374
      %p376 = pneg %p120
      %p377 = pneg %p117
      %p378 = scmp.lt.s32.totalorder %s29, 4
      %s379 = scalar_select %p378, %s29, 4
      %s380 = smul.addr %s379, 4
      %s381 = scalar_lea.vmem %s5, %s380
      %p382 = pneg %p146
      %p383 = pneg %p143
      %p384 = scmp.lt.s32.totalorder %s29, 4
      %s385 = scalar_select %p384, %s29, 4
      %s386 = smul.addr %s385, 8
      %s387 = scalar_lea.vmem %s6, %s386
      %p388 = pneg %p172
      %p389 = pneg %p169
      %p390 = scmp.lt.s32.totalorder %s29, 4
      %s391 = scalar_select %p390, %s29, 4
      %s392 = smul.addr %s391, 8
      %s393 = scalar_lea.vmem %s7, %s392
      %p394 = pneg %p198
      %p395 = pneg %p195
      %p396 = scmp.lt.s32.totalorder %s29, 4
      %s397 = scalar_select %p396, %s29, 4
      %s398 = smul.addr %s397, 4
      %s399 = scalar_lea.vmem %s8, %s398
      %p400 = pneg %p224
      %p401 = pneg %p221
      %p402 = scmp.lt.s32.totalorder %s29, 4
      %s403 = scalar_select %p402, %s29, 4
      %s404 = smul.addr %s403, 8
      %s405 = scalar_lea.vmem %s9, %s404
      %p406 = pneg %p250
      %p407 = pneg %p247
      %p408 = pneg %p276
      %p409 = pneg %p273
      %p410 = scmp.lt.s32.totalorder %s29, 4
      %s411 = scalar_select %p410, %s29, 4
      %s412 = smul.addr %s411, 4
      %s413 = smul.addr %s412, 8
      %s414 = scalar_lea.vmem %s10, %s413
      %s415 = sld [smem:[#allocation3 + %s29]]
      %p416 = scmp.lt.s32.totalorder %s415, 1
      %s417 = scalar_select %p416, %s415, 1
      %s418 = smul.addr %s417, 4
      %s419 = smul.addr %s418, 8
      %s420 = scalar_lea.vmem %s3, %s419
      %s421 = sld [smem:[#allocation3 + %s29]]
      %p422 = scmp.lt.s32.totalorder %s29, 4
      %s423 = scalar_select %p422, %s29, 4
      %s424 = smul.addr %s423, 8
      %s425 = scalar_lea.vmem %s4, %s424
      %p426 = scmp.lt.s32.totalorder %s29, 4
      %s427 = scalar_select %p426, %s29, 4
      %s428 = smul.addr %s427, 4
      %s429 = scalar_lea.vmem %s5, %s428
      %p430 = scmp.lt.s32.totalorder %s29, 4
      %s431 = scalar_select %p430, %s29, 4
      %s432 = smul.addr %s431, 8
      %s433 = scalar_lea.vmem %s6, %s432
      %p434 = scmp.lt.s32.totalorder %s29, 4
      %s435 = scalar_select %p434, %s29, 4
      %s436 = smul.addr %s435, 8
      %s437 = scalar_lea.vmem %s7, %s436
      %p438 = scmp.lt.s32.totalorder %s29, 4
      %s439 = scalar_select %p438, %s29, 4
      %s440 = smul.addr %s439, 4
      %s441 = scalar_lea.vmem %s8, %s440
      %p442 = scmp.lt.s32.totalorder %s29, 4
      %s443 = scalar_select %p442, %s29, 4
      %s444 = smul.addr %s443, 8
      %s445 = scalar_lea.vmem %s9, %s444
      %p446 = scmp.lt.s32.totalorder %s29, 4
      %s447 = scalar_select %p446, %s29, 4
      %s448 = smul.addr %s447, 4
      %s449 = smul.addr %s448, 8
      %s450 = scalar_lea.vmem %s10, %s449
      %v452 = vld [vmem:[%s1] sm:$0x1f]
      %v453 = vld [vmem:[%s1 + $0x8] sm:$0x1f]
      %v454 = vld [vmem:[%s1 + $0x10] sm:$0x1f]
      %v455 = vld [vmem:[%s1 + $0x18] sm:$0x1f]
      %v456 = vld [vmem:[%s2] sm:$0x1f]
      %v457 = vld [vmem:[%s2 + $0x8] sm:$0x1f]
      %v458 = vld [vmem:[%s2 + $0x10] sm:$0x1f]
      %v459 = vld [vmem:[%s2 + $0x18] sm:$0x1f]
      %v460 = vld [vmem:[%s420] sm:$0xff]
      %v461 = vld [vmem:[%s420 + $0x8] sm:$0xff]
      %v462 = vld [vmem:[%s420 + $0x10] sm:$0xff]
      %v463 = vld [vmem:[%s420 + $0x18] sm:$0xff]
      %v464 = vmax.f32 %v460, 0.0
      %v465 = vmax.f32 %v461, 0.0
      %v466 = vmax.f32 %v462, 0.0
      %v467 = vmax.f32 %v463, 0.0
      %v468 = vld [vmem:[%s425] sm:$0xff]
      %469 = vrot.lane.b32.xlu0 %v464, 2
      %v470 = vpop.permute.xlu0 %469
      %471 = vrot.lane.b32.xlu0 %v465, 2
      %v472 = vpop.permute.xlu0 %471
      %473 = vrot.lane.b32.xlu0 %v466, 2
      %v474 = vpop.permute.xlu0 %473
      %475 = vrot.lane.b32.xlu0 %v467, 2
      %v476 = vpop.permute.xlu0 %475
      %v477 = vlaneseq
      %v478 = vand.u32 %v477, 127
      %vm479 = vcmp.lt.s32.totalorder %v478, 2
      %v480 = vsel %vm479, %v474, %v476
      %v481 = vsel %vm479, %v472, %v474
      %v482 = vsel %vm479, %v470, %v472
      %v483 = vsel %vm479, %v476, %v470
      %v484 = vperm.slane %v452, 0
      %v485 = vperm.slane %v453, 0
      %v486 = vperm.slane %v454, 0
      %v487 = vperm.slane %v455, 0
      %v488 = vmul.f32 %v483, %v484
      %v489 = vmul.f32 %v482, %v485
      %v490 = vmul.f32 %v481, %v486
      %v491 = vmul.f32 %v480, %v487
      %492 = vrot.lane.b32.xlu0 %v464, 1
      %v493 = vpop.permute.xlu0 %492
      %494 = vrot.lane.b32.xlu0 %v465, 1
      %v495 = vpop.permute.xlu0 %494
      %496 = vrot.lane.b32.xlu0 %v466, 1
      %v497 = vpop.permute.xlu0 %496
      %498 = vrot.lane.b32.xlu0 %v467, 1
      %v499 = vpop.permute.xlu0 %498
      %vm500 = vcmp.lt.s32.totalorder %v478, 1
      %v501 = vsel %vm500, %v497, %v499
      %v502 = vsel %vm500, %v495, %v497
      %v503 = vsel %vm500, %v493, %v495
      %v504 = vsel %vm500, %v499, %v493
      %v505 = vperm.slane %v452, 1
      %v506 = vperm.slane %v453, 1
      %v507 = vperm.slane %v454, 1
      %v508 = vperm.slane %v455, 1
      %v509 = vmul.f32 %v504, %v505
      %v510 = vmul.f32 %v503, %v506
      %v511 = vmul.f32 %v502, %v507
      %v512 = vmul.f32 %v501, %v508
      %v513 = vperm.slane %v452, 2
      %v514 = vperm.slane %v453, 2
      %v515 = vperm.slane %v454, 2
      %v516 = vperm.slane %v455, 2
      %v517 = vmul.f32 %v464, %v513
      %v518 = vmul.f32 %v465, %v514
      %v519 = vmul.f32 %v466, %v515
      %v520 = vmul.f32 %v467, %v516
      %521 = vrot.lane.b32.xlu0 %v464, 127
      %v522 = vpop.permute.xlu0 %521
      %523 = vrot.lane.b32.xlu0 %v465, 127
      %v524 = vpop.permute.xlu0 %523
      %525 = vrot.lane.b32.xlu0 %v466, 127
      %v526 = vpop.permute.xlu0 %525
      %527 = vrot.lane.b32.xlu0 %v467, 127
      %v528 = vpop.permute.xlu0 %527
      %vm529 = vcmp.lt.s32.totalorder %v478, 127
      %v530 = vsel %vm529, %v526, %v528
      %v531 = vsel %vm529, %v524, %v526
      %v532 = vsel %vm529, %v522, %v524
      %v533 = vsel %vm529, %v528, %v522
      %v534 = vperm.slane %v452, 3
      %v535 = vperm.slane %v453, 3
      %v536 = vperm.slane %v454, 3
      %v537 = vperm.slane %v455, 3
      %v538 = vmul.f32 %v532, %v534
      %v539 = vmul.f32 %v531, %v535
      %v540 = vmul.f32 %v530, %v536
      %v541 = vmul.f32 %v533, %v537
      %542 = vrot.lane.b32.xlu0 %v464, 126
      %v543 = vpop.permute.xlu0 %542
      %544 = vrot.lane.b32.xlu0 %v465, 126
      %v545 = vpop.permute.xlu0 %544
      %546 = vrot.lane.b32.xlu0 %v466, 126
      %v547 = vpop.permute.xlu0 %546
      %548 = vrot.lane.b32.xlu0 %v467, 126
      %v549 = vpop.permute.xlu0 %548
      %vm550 = vcmp.lt.s32.totalorder %v478, 126
      %v551 = vsel %vm550, %v547, %v549
      %v552 = vsel %vm550, %v545, %v547
      %v553 = vsel %vm550, %v543, %v545
      %v554 = vsel %vm550, %v549, %v543
      %v555 = vperm.slane %v452, 4
      %v556 = vperm.slane %v453, 4
      %v557 = vperm.slane %v454, 4
      %v558 = vperm.slane %v455, 4
      %v559 = vmul.f32 %v553, %v555
      %v560 = vmul.f32 %v552, %v556
      %v561 = vmul.f32 %v551, %v557
      %v562 = vmul.f32 %v554, %v558
      %564 = vset.pattern.permute.xlu0 0
      %565 = vperm.xlu0 %564, %v468
      %v566 = vpop.permute.xlu0 %565
      %v568 = vmul.f32 %v488, %v566
      %v569 = vmul.f32 %v489, %v566
      %v570 = vmul.f32 %v490, %v566
      %v571 = vmul.f32 %v491, %v566
      %572 = vset.pattern.permute.xlu0 1
      %573 = vperm.xlu0 %572, %v468
      %v574 = vpop.permute.xlu0 %573
      %v576 = vmul.f32 %v509, %v574
      %v577 = vmul.f32 %v510, %v574
      %v578 = vmul.f32 %v511, %v574
      %v579 = vmul.f32 %v512, %v574
      %v580 = vadd.f32 %v568, %v576
      %v581 = vadd.f32 %v569, %v577
      %v582 = vadd.f32 %v570, %v578
      %v583 = vadd.f32 %v571, %v579
      %584 = vset.pattern.permute.xlu0 2
      %585 = vperm.xlu0 %584, %v468
      %v586 = vpop.permute.xlu0 %585
      %v588 = vmul.f32 %v517, %v586
      %v589 = vmul.f32 %v518, %v586
      %v590 = vmul.f32 %v519, %v586
      %v591 = vmul.f32 %v520, %v586
      %v592 = vadd.f32 %v580, %v588
      %v593 = vadd.f32 %v581, %v589
      %v594 = vadd.f32 %v582, %v590
      %v595 = vadd.f32 %v583, %v591
      %596 = vset.pattern.permute.xlu0 3
      %597 = vperm.xlu0 %596, %v468
      %v598 = vpop.permute.xlu0 %597
      %v600 = vmul.f32 %v538, %v598
      %v601 = vmul.f32 %v539, %v598
      %v602 = vmul.f32 %v540, %v598
      %v603 = vmul.f32 %v541, %v598
      %v604 = vadd.f32 %v592, %v600
      %v605 = vadd.f32 %v593, %v601
      %v606 = vadd.f32 %v594, %v602
      %v607 = vadd.f32 %v595, %v603
      %608 = vset.pattern.permute.xlu0 4
      %609 = vperm.xlu0 %608, %v468
      %v610 = vpop.permute.xlu0 %609
      %v612 = vmul.f32 %v559, %v610
      %v613 = vmul.f32 %v560, %v610
      %v614 = vmul.f32 %v561, %v610
      %v615 = vmul.f32 %v562, %v610
      %v616 = vadd.f32 %v604, %v612
      %v617 = vadd.f32 %v605, %v613
      %v618 = vadd.f32 %v606, %v614
      %v619 = vadd.f32 %v607, %v615
      %620 = vrot.lane.b32.xlu0 %v616, 32
      %v621 = vpop.permute.xlu0 %620
      %622 = vrot.lane.b32.xlu0 %v617, 32
      %v623 = vpop.permute.xlu0 %622
      %624 = vrot.lane.b32.xlu0 %v618, 32
      %v625 = vpop.permute.xlu0 %624
      %626 = vrot.lane.b32.xlu0 %v619, 32
      %v627 = vpop.permute.xlu0 %626
      %vm628 = vcmp.lt.s32.totalorder %v478, 32
      %v629 = vsel %vm628, %v625, %v627
      %v630 = vsel %vm628, %v623, %v625
      %v631 = vsel %vm628, %v621, %v623
      %v632 = vsel %vm628, %v627, %v621
      %v633 = vperm.slane %v456, 0
      %v634 = vperm.slane %v457, 0
      %v635 = vperm.slane %v458, 0
      %v636 = vperm.slane %v459, 0
      %v637 = vmul.f32 %v632, %v633
      %v638 = vmul.f32 %v631, %v634
      %v639 = vmul.f32 %v630, %v635
      %v640 = vmul.f32 %v629, %v636
      %641 = vset.pattern.permute.xlu0 5
      %642 = vperm.xlu0 %641, %v468
      %v643 = vpop.permute.xlu0 %642
      %v645 = vmul.f32 %v488, %v643
      %v646 = vmul.f32 %v489, %v643
      %v647 = vmul.f32 %v490, %v643
      %v648 = vmul.f32 %v491, %v643
      %649 = vset.pattern.permute.xlu0 6
      %650 = vperm.xlu0 %649, %v468
      %v651 = vpop.permute.xlu0 %650
      %v653 = vmul.f32 %v509, %v651
      %v654 = vmul.f32 %v510, %v651
      %v655 = vmul.f32 %v511, %v651
      %v656 = vmul.f32 %v512, %v651
      %v657 = vadd.f32 %v645, %v653
      %v658 = vadd.f32 %v646, %v654
      %v659 = vadd.f32 %v647, %v655
      %v660 = vadd.f32 %v648, %v656
      %661 = vset.pattern.permute.xlu0 7
      %662 = vperm.xlu0 %661, %v468
      %v663 = vpop.permute.xlu0 %662
      %v665 = vmul.f32 %v517, %v663
      %v666 = vmul.f32 %v518, %v663
      %v667 = vmul.f32 %v519, %v663
      %v668 = vmul.f32 %v520, %v663
      %v669 = vadd.f32 %v657, %v665
      %v670 = vadd.f32 %v658, %v666
      %v671 = vadd.f32 %v659, %v667
      %v672 = vadd.f32 %v660, %v668
      %673 = vset.pattern.permute.xlu0 8
      %674 = vperm.xlu0 %673, %v468
      %v675 = vpop.permute.xlu0 %674
      %v677 = vmul.f32 %v538, %v675
      %v678 = vmul.f32 %v539, %v675
      %v679 = vmul.f32 %v540, %v675
      %v680 = vmul.f32 %v541, %v675
      %v681 = vadd.f32 %v669, %v677
      %v682 = vadd.f32 %v670, %v678
      %v683 = vadd.f32 %v671, %v679
      %v684 = vadd.f32 %v672, %v680
      %685 = vset.pattern.permute.xlu0 9
      %686 = vperm.xlu0 %685, %v468
      %v687 = vpop.permute.xlu0 %686
      %v689 = vmul.f32 %v559, %v687
      %v690 = vmul.f32 %v560, %v687
      %v691 = vmul.f32 %v561, %v687
      %v692 = vmul.f32 %v562, %v687
      %v693 = vadd.f32 %v681, %v689
      %v694 = vadd.f32 %v682, %v690
      %v695 = vadd.f32 %v683, %v691
      %v696 = vadd.f32 %v684, %v692
      %697 = vrot.lane.b32.xlu0 %v693, 16
      %v698 = vpop.permute.xlu0 %697
      %699 = vrot.lane.b32.xlu0 %v694, 16
      %v700 = vpop.permute.xlu0 %699
      %701 = vrot.lane.b32.xlu0 %v695, 16
      %v702 = vpop.permute.xlu0 %701
      %703 = vrot.lane.b32.xlu0 %v696, 16
      %v704 = vpop.permute.xlu0 %703
      %vm705 = vcmp.lt.s32.totalorder %v478, 16
      %v706 = vsel %vm705, %v702, %v704
      %v707 = vsel %vm705, %v700, %v702
      %v708 = vsel %vm705, %v698, %v700
      %v709 = vsel %vm705, %v704, %v698
      %v710 = vperm.slane %v456, 1
      %v711 = vperm.slane %v457, 1
      %v712 = vperm.slane %v458, 1
      %v713 = vperm.slane %v459, 1
      %v714 = vmul.f32 %v709, %v710
      %v715 = vmul.f32 %v708, %v711
      %v716 = vmul.f32 %v707, %v712
      %v717 = vmul.f32 %v706, %v713
      %v718 = vadd.f32 %v637, %v714
      %v719 = vadd.f32 %v638, %v715
      %v720 = vadd.f32 %v639, %v716
      %v721 = vadd.f32 %v640, %v717
      %722 = vset.pattern.permute.xlu0 10
      %723 = vperm.xlu0 %722, %v468
      %v724 = vpop.permute.xlu0 %723
      %v726 = vmul.f32 %v488, %v724
      %v727 = vmul.f32 %v489, %v724
      %v728 = vmul.f32 %v490, %v724
      %v729 = vmul.f32 %v491, %v724
      %730 = vset.pattern.permute.xlu0 11
      %731 = vperm.xlu0 %730, %v468
      %v732 = vpop.permute.xlu0 %731
      %v734 = vmul.f32 %v509, %v732
      %v735 = vmul.f32 %v510, %v732
      %v736 = vmul.f32 %v511, %v732
      %v737 = vmul.f32 %v512, %v732
      %v738 = vadd.f32 %v726, %v734
      %v739 = vadd.f32 %v727, %v735
      %v740 = vadd.f32 %v728, %v736
      %v741 = vadd.f32 %v729, %v737
      %742 = vset.pattern.permute.xlu0 12
      %743 = vperm.xlu0 %742, %v468
      %v744 = vpop.permute.xlu0 %743
      %v746 = vmul.f32 %v517, %v744
      %v747 = vmul.f32 %v518, %v744
      %v748 = vmul.f32 %v519, %v744
      %v749 = vmul.f32 %v520, %v744
      %v750 = vadd.f32 %v738, %v746
      %v751 = vadd.f32 %v739, %v747
      %v752 = vadd.f32 %v740, %v748
      %v753 = vadd.f32 %v741, %v749
      %754 = vset.pattern.permute.xlu0 13
      %755 = vperm.xlu0 %754, %v468
      %v756 = vpop.permute.xlu0 %755
      %v758 = vmul.f32 %v538, %v756
      %v759 = vmul.f32 %v539, %v756
      %v760 = vmul.f32 %v540, %v756
      %v761 = vmul.f32 %v541, %v756
      %v762 = vadd.f32 %v750, %v758
      %v763 = vadd.f32 %v751, %v759
      %v764 = vadd.f32 %v752, %v760
      %v765 = vadd.f32 %v753, %v761
      %766 = vset.pattern.permute.xlu0 14
      %767 = vperm.xlu0 %766, %v468
      %v768 = vpop.permute.xlu0 %767
      %v770 = vmul.f32 %v559, %v768
      %v771 = vmul.f32 %v560, %v768
      %v772 = vmul.f32 %v561, %v768
      %v773 = vmul.f32 %v562, %v768
      %v774 = vadd.f32 %v762, %v770
      %v775 = vadd.f32 %v763, %v771
      %v776 = vadd.f32 %v764, %v772
      %v777 = vadd.f32 %v765, %v773
      %v778 = vperm.slane %v456, 2
      %v779 = vperm.slane %v457, 2
      %v780 = vperm.slane %v458, 2
      %v781 = vperm.slane %v459, 2
      %v782 = vmul.f32 %v774, %v778
      %v783 = vmul.f32 %v775, %v779
      %v784 = vmul.f32 %v776, %v780
      %v785 = vmul.f32 %v777, %v781
      %v786 = vadd.f32 %v718, %v782
      %v787 = vadd.f32 %v719, %v783
      %v788 = vadd.f32 %v720, %v784
      %v789 = vadd.f32 %v721, %v785
      %790 = vset.pattern.permute.xlu0 15
      %791 = vperm.xlu0 %790, %v468
      %v792 = vpop.permute.xlu0 %791
      %v794 = vmul.f32 %v488, %v792
      %v795 = vmul.f32 %v489, %v792
      %v796 = vmul.f32 %v490, %v792
      %v797 = vmul.f32 %v491, %v792
      %798 = vset.pattern.permute.xlu0 16
      %799 = vperm.xlu0 %798, %v468
      %v800 = vpop.permute.xlu0 %799
      %v802 = vmul.f32 %v509, %v800
      %v803 = vmul.f32 %v510, %v800
      %v804 = vmul.f32 %v511, %v800
      %v805 = vmul.f32 %v512, %v800
      %v806 = vadd.f32 %v794, %v802
      %v807 = vadd.f32 %v795, %v803
      %v808 = vadd.f32 %v796, %v804
      %v809 = vadd.f32 %v797, %v805
      %810 = vset.pattern.permute.xlu0 17
      %811 = vperm.xlu0 %810, %v468
      %v812 = vpop.permute.xlu0 %811
      %v814 = vmul.f32 %v517, %v812
      %v815 = vmul.f32 %v518, %v812
      %v816 = vmul.f32 %v519, %v812
      %v817 = vmul.f32 %v520, %v812
      %v818 = vadd.f32 %v806, %v814
      %v819 = vadd.f32 %v807, %v815
      %v820 = vadd.f32 %v808, %v816
      %v821 = vadd.f32 %v809, %v817
      %822 = vset.pattern.permute.xlu0 18
      %823 = vperm.xlu0 %822, %v468
      %v824 = vpop.permute.xlu0 %823
      %v826 = vmul.f32 %v538, %v824
      %v827 = vmul.f32 %v539, %v824
      %v828 = vmul.f32 %v540, %v824
      %v829 = vmul.f32 %v541, %v824
      %v830 = vadd.f32 %v818, %v826
      %v831 = vadd.f32 %v819, %v827
      %v832 = vadd.f32 %v820, %v828
      %v833 = vadd.f32 %v821, %v829
      %834 = vset.pattern.permute.xlu0 19
      %835 = vperm.xlu0 %834, %v468
      %v836 = vpop.permute.xlu0 %835
      %v838 = vmul.f32 %v559, %v836
      %v839 = vmul.f32 %v560, %v836
      %v840 = vmul.f32 %v561, %v836
      %v841 = vmul.f32 %v562, %v836
      %v842 = vadd.f32 %v830, %v838
      %v843 = vadd.f32 %v831, %v839
      %v844 = vadd.f32 %v832, %v840
      %v845 = vadd.f32 %v833, %v841
      %846 = vrot.lane.b32.xlu0 %v842, 112
      %v847 = vpop.permute.xlu0 %846
      %848 = vrot.lane.b32.xlu0 %v843, 112
      %v849 = vpop.permute.xlu0 %848
      %850 = vrot.lane.b32.xlu0 %v844, 112
      %v851 = vpop.permute.xlu0 %850
      %852 = vrot.lane.b32.xlu0 %v845, 112
      %v853 = vpop.permute.xlu0 %852
      %vm854 = vcmp.lt.s32.totalorder %v478, 112
      %v855 = vsel %vm854, %v851, %v853
      %v856 = vsel %vm854, %v849, %v851
      %v857 = vsel %vm854, %v847, %v849
      %v858 = vsel %vm854, %v853, %v847
      %v859 = vperm.slane %v456, 3
      %v860 = vperm.slane %v457, 3
      %v861 = vperm.slane %v458, 3
      %v862 = vperm.slane %v459, 3
      %v863 = vmul.f32 %v857, %v859
      %v864 = vmul.f32 %v856, %v860
      %v865 = vmul.f32 %v855, %v861
      %v866 = vmul.f32 %v858, %v862
      %v867 = vadd.f32 %v786, %v863
      %v868 = vadd.f32 %v787, %v864
      %v869 = vadd.f32 %v788, %v865
      %v870 = vadd.f32 %v789, %v866
      %871 = vset.pattern.permute.xlu0 20
      %872 = vperm.xlu0 %871, %v468
      %v873 = vpop.permute.xlu0 %872
      %v875 = vmul.f32 %v488, %v873
      %v876 = vmul.f32 %v489, %v873
      %v877 = vmul.f32 %v490, %v873
      %v878 = vmul.f32 %v491, %v873
      %879 = vset.pattern.permute.xlu0 21
      %880 = vperm.xlu0 %879, %v468
      %v881 = vpop.permute.xlu0 %880
      %v883 = vmul.f32 %v509, %v881
      %v884 = vmul.f32 %v510, %v881
      %v885 = vmul.f32 %v511, %v881
      %v886 = vmul.f32 %v512, %v881
      %v887 = vadd.f32 %v875, %v883
      %v888 = vadd.f32 %v876, %v884
      %v889 = vadd.f32 %v877, %v885
      %v890 = vadd.f32 %v878, %v886
      %891 = vset.pattern.permute.xlu0 22
      %892 = vperm.xlu0 %891, %v468
      %v893 = vpop.permute.xlu0 %892
      %v895 = vmul.f32 %v517, %v893
      %v896 = vmul.f32 %v518, %v893
      %v897 = vmul.f32 %v519, %v893
      %v898 = vmul.f32 %v520, %v893
      %v899 = vadd.f32 %v887, %v895
      %v900 = vadd.f32 %v888, %v896
      %v901 = vadd.f32 %v889, %v897
      %v902 = vadd.f32 %v890, %v898
      %903 = vset.pattern.permute.xlu0 23
      %904 = vperm.xlu0 %903, %v468
      %v905 = vpop.permute.xlu0 %904
      %v907 = vmul.f32 %v538, %v905
      %v908 = vmul.f32 %v539, %v905
      %v909 = vmul.f32 %v540, %v905
      %v910 = vmul.f32 %v541, %v905
      %v911 = vadd.f32 %v899, %v907
      %v912 = vadd.f32 %v900, %v908
      %v913 = vadd.f32 %v901, %v909
      %v914 = vadd.f32 %v902, %v910
      %915 = vset.pattern.permute.xlu0 24
      %916 = vperm.xlu0 %915, %v468
      %v917 = vpop.permute.xlu0 %916
      %v919 = vmul.f32 %v559, %v917
      %v920 = vmul.f32 %v560, %v917
      %v921 = vmul.f32 %v561, %v917
      %v922 = vmul.f32 %v562, %v917
      %v923 = vadd.f32 %v911, %v919
      %v924 = vadd.f32 %v912, %v920
      %v925 = vadd.f32 %v913, %v921
      %v926 = vadd.f32 %v914, %v922
      %927 = vrot.lane.b32.xlu0 %v923, 96
      %v928 = vpop.permute.xlu0 %927
      %929 = vrot.lane.b32.xlu0 %v924, 96
      %v930 = vpop.permute.xlu0 %929
      %931 = vrot.lane.b32.xlu0 %v925, 96
      %v932 = vpop.permute.xlu0 %931
      %933 = vrot.lane.b32.xlu0 %v926, 96
      %v934 = vpop.permute.xlu0 %933
      %vm935 = vcmp.lt.s32.totalorder %v478, 96
      %v936 = vsel %vm935, %v932, %v934
      %v937 = vsel %vm935, %v930, %v932
      %v938 = vsel %vm935, %v928, %v930
      %v939 = vsel %vm935, %v934, %v928
      %v940 = vperm.slane %v456, 4
      %v941 = vperm.slane %v457, 4
      %v942 = vperm.slane %v458, 4
      %v943 = vperm.slane %v459, 4
      %v944 = vmul.f32 %v938, %v940
      %v945 = vmul.f32 %v937, %v941
      %v946 = vmul.f32 %v936, %v942
      %v947 = vmul.f32 %v939, %v943
      %v948 = vadd.f32 %v867, %v944
      %v949 = vadd.f32 %v868, %v945
      %v950 = vadd.f32 %v869, %v946
      %v951 = vadd.f32 %v870, %v947
      %v952 = vld [vmem:[%s429] sm:$0xf]
      %v953 = vpack.c.bf16 %v948, %v948
      %v954 = vpack.c.bf16 %v949, %v949
      %v955 = vpack.c.bf16 %v950, %v950
      %v956 = vpack.c.bf16 %v951, %v951
      %v957 = vld [vmem:[%s433] sm:$0xff]
      %959 = vset.pattern.permute.xlu0 0
      %960 = vperm.xlu0 %959, %v957
      %v961 = vpop.permute.xlu0 %960
      %vm963 = vcmask 64512
      %v965 = vsel %vm963, %v952, 0
      %vm967 = vcmask 1043456
      %v969 = vsel %vm967, %v953, 0
      %v972 = vsel %vm967, %v954, 0
      %v975 = vsel %vm967, %v955, 0
      %v978 = vsel %vm967, %v956, 0
      %980 = vmatpush.bf16.msra.mxu0 0
      %981 = vmatpush.bf16.msra.mxu0 0
      %982 = vmatpush.bf16.msra.mxu0 0
      %983 = vmatpush.bf16.msra.mxu0 0
      %984 = vmatpush.bf16.msra.mxu0 0
      %985 = vmatpush.bf16.msra.mxu0 0
      %986 = vmatpush.bf16.msra.mxu0 0
      %987 = vmatpush.bf16.msra.mxu0 %v969
      %988 = vmatmul.bf16.gmra.mxu0 %v965
      %v989 = vpop.f32.mrf.mxu0
      %v990 = vadd.f32 %v961, %v989
      %v991 = vpop.f32.mrf.mxu0
      %992 = vdwg.mxu0
      %993 = vmatpush.bf16.msra.mxu0 0
      %994 = vmatpush.bf16.msra.mxu0 0
      %995 = vmatpush.bf16.msra.mxu0 0
      %996 = vmatpush.bf16.msra.mxu0 0
      %997 = vmatpush.bf16.msra.mxu0 0
      %998 = vmatpush.bf16.msra.mxu0 0
      %999 = vmatpush.bf16.msra.mxu0 0
      %1000 = vmatpush.bf16.msra.mxu0 %v972
      %1001 = vmatmul.bf16.gmra.mxu0 %v965
      %v1002 = vpop.f32.mrf.mxu0
      %v1003 = vadd.f32 %v961, %v1002
      %v1004 = vpop.f32.mrf.mxu0
      %1005 = vdwg.mxu0
      %1006 = vmatpush.bf16.msra.mxu0 0
      %1007 = vmatpush.bf16.msra.mxu0 0
      %1008 = vmatpush.bf16.msra.mxu0 0
      %1009 = vmatpush.bf16.msra.mxu0 0
      %1010 = vmatpush.bf16.msra.mxu0 0
      %1011 = vmatpush.bf16.msra.mxu0 0
      %1012 = vmatpush.bf16.msra.mxu0 0
      %1013 = vmatpush.bf16.msra.mxu0 %v975
      %1014 = vmatmul.bf16.gmra.mxu0 %v965
      %v1015 = vpop.f32.mrf.mxu0
      %v1016 = vadd.f32 %v961, %v1015
      %v1017 = vpop.f32.mrf.mxu0
      %1018 = vdwg.mxu0
      %1019 = vmatpush.bf16.msra.mxu0 0
      %1020 = vmatpush.bf16.msra.mxu0 0
      %1021 = vmatpush.bf16.msra.mxu0 0
      %1022 = vmatpush.bf16.msra.mxu0 0
      %1023 = vmatpush.bf16.msra.mxu0 0
      %1024 = vmatpush.bf16.msra.mxu0 0
      %1025 = vmatpush.bf16.msra.mxu0 0
      %1026 = vmatpush.bf16.msra.mxu0 %v978
      %1027 = vmatmul.bf16.gmra.mxu0 %v965
      %v1028 = vpop.f32.mrf.mxu0
      %v1029 = vadd.f32 %v961, %v1028
      %v1030 = vpop.f32.mrf.mxu0
      %1031 = vdwg.mxu0
      %v1032 = vmax.f32 %v990, 0.0
      %v1033 = vmax.f32 %v1003, 0.0
      %v1034 = vmax.f32 %v1016, 0.0
      %v1035 = vmax.f32 %v1029, 0.0
      %v1036 = vld [vmem:[%s437] sm:$0xff]
      %1037 = vrot.lane.b32.xlu0 %v1032, 2
      %v1038 = vpop.permute.xlu0 %1037
      %1039 = vrot.lane.b32.xlu0 %v1033, 2
      %v1040 = vpop.permute.xlu0 %1039
      %1041 = vrot.lane.b32.xlu0 %v1034, 2
      %v1042 = vpop.permute.xlu0 %1041
      %1043 = vrot.lane.b32.xlu0 %v1035, 2
      %v1044 = vpop.permute.xlu0 %1043
      %v1045 = vsel %vm479, %v1042, %v1044
      %v1046 = vsel %vm479, %v1040, %v1042
      %v1047 = vsel %vm479, %v1038, %v1040
      %v1048 = vsel %vm479, %v1044, %v1038
      %v1049 = vmul.f32 %v1048, %v484
      %v1050 = vmul.f32 %v1047, %v485
      %v1051 = vmul.f32 %v1046, %v486
      %v1052 = vmul.f32 %v1045, %v487
      %1053 = vrot.lane.b32.xlu0 %v1032, 1
      %v1054 = vpop.permute.xlu0 %1053
      %1055 = vrot.lane.b32.xlu0 %v1033, 1
      %v1056 = vpop.permute.xlu0 %1055
      %1057 = vrot.lane.b32.xlu0 %v1034, 1
      %v1058 = vpop.permute.xlu0 %1057
      %1059 = vrot.lane.b32.xlu0 %v1035, 1
      %v1060 = vpop.permute.xlu0 %1059
      %v1061 = vsel %vm500, %v1058, %v1060
      %v1062 = vsel %vm500, %v1056, %v1058
      %v1063 = vsel %vm500, %v1054, %v1056
      %v1064 = vsel %vm500, %v1060, %v1054
      %v1065 = vmul.f32 %v1064, %v505
      %v1066 = vmul.f32 %v1063, %v506
      %v1067 = vmul.f32 %v1062, %v507
      %v1068 = vmul.f32 %v1061, %v508
      %v1069 = vmul.f32 %v1032, %v513
      %v1070 = vmul.f32 %v1033, %v514
      %v1071 = vmul.f32 %v1034, %v515
      %v1072 = vmul.f32 %v1035, %v516
      %1073 = vrot.lane.b32.xlu0 %v1032, 127
      %v1074 = vpop.permute.xlu0 %1073
      %1075 = vrot.lane.b32.xlu0 %v1033, 127
      %v1076 = vpop.permute.xlu0 %1075
      %1077 = vrot.lane.b32.xlu0 %v1034, 127
      %v1078 = vpop.permute.xlu0 %1077
      %1079 = vrot.lane.b32.xlu0 %v1035, 127
      %v1080 = vpop.permute.xlu0 %1079
      %v1081 = vsel %vm529, %v1078, %v1080
      %v1082 = vsel %vm529, %v1076, %v1078
      %v1083 = vsel %vm529, %v1074, %v1076
      %v1084 = vsel %vm529, %v1080, %v1074
      %v1085 = vmul.f32 %v1083, %v534
      %v1086 = vmul.f32 %v1082, %v535
      %v1087 = vmul.f32 %v1081, %v536
      %v1088 = vmul.f32 %v1084, %v537
      %1089 = vrot.lane.b32.xlu0 %v1032, 126
      %v1090 = vpop.permute.xlu0 %1089
      %1091 = vrot.lane.b32.xlu0 %v1033, 126
      %v1092 = vpop.permute.xlu0 %1091
      %1093 = vrot.lane.b32.xlu0 %v1034, 126
      %v1094 = vpop.permute.xlu0 %1093
      %1095 = vrot.lane.b32.xlu0 %v1035, 126
      %v1096 = vpop.permute.xlu0 %1095
      %v1097 = vsel %vm550, %v1094, %v1096
      %v1098 = vsel %vm550, %v1092, %v1094
      %v1099 = vsel %vm550, %v1090, %v1092
      %v1100 = vsel %vm550, %v1096, %v1090
      %v1101 = vmul.f32 %v1099, %v555
      %v1102 = vmul.f32 %v1098, %v556
      %v1103 = vmul.f32 %v1097, %v557
      %v1104 = vmul.f32 %v1100, %v558
      %1106 = vset.pattern.permute.xlu0 0
      %1107 = vperm.xlu0 %1106, %v1036
      %v1108 = vpop.permute.xlu0 %1107
      %v1110 = vmul.f32 %v1049, %v1108
      %v1111 = vmul.f32 %v1050, %v1108
      %v1112 = vmul.f32 %v1051, %v1108
      %v1113 = vmul.f32 %v1052, %v1108
      %1114 = vset.pattern.permute.xlu0 1
      %1115 = vperm.xlu0 %1114, %v1036
      %v1116 = vpop.permute.xlu0 %1115
      %v1118 = vmul.f32 %v1065, %v1116
      %v1119 = vmul.f32 %v1066, %v1116
      %v1120 = vmul.f32 %v1067, %v1116
      %v1121 = vmul.f32 %v1068, %v1116
      %v1122 = vadd.f32 %v1110, %v1118
      %v1123 = vadd.f32 %v1111, %v1119
      %v1124 = vadd.f32 %v1112, %v1120
      %v1125 = vadd.f32 %v1113, %v1121
      %1126 = vset.pattern.permute.xlu0 2
      %1127 = vperm.xlu0 %1126, %v1036
      %v1128 = vpop.permute.xlu0 %1127
      %v1130 = vmul.f32 %v1069, %v1128
      %v1131 = vmul.f32 %v1070, %v1128
      %v1132 = vmul.f32 %v1071, %v1128
      %v1133 = vmul.f32 %v1072, %v1128
      %v1134 = vadd.f32 %v1122, %v1130
      %v1135 = vadd.f32 %v1123, %v1131
      %v1136 = vadd.f32 %v1124, %v1132
      %v1137 = vadd.f32 %v1125, %v1133
      %1138 = vset.pattern.permute.xlu0 3
      %1139 = vperm.xlu0 %1138, %v1036
      %v1140 = vpop.permute.xlu0 %1139
      %v1142 = vmul.f32 %v1085, %v1140
      %v1143 = vmul.f32 %v1086, %v1140
      %v1144 = vmul.f32 %v1087, %v1140
      %v1145 = vmul.f32 %v1088, %v1140
      %v1146 = vadd.f32 %v1134, %v1142
      %v1147 = vadd.f32 %v1135, %v1143
      %v1148 = vadd.f32 %v1136, %v1144
      %v1149 = vadd.f32 %v1137, %v1145
      %1150 = vset.pattern.permute.xlu0 4
      %1151 = vperm.xlu0 %1150, %v1036
      %v1152 = vpop.permute.xlu0 %1151
      %v1154 = vmul.f32 %v1101, %v1152
      %v1155 = vmul.f32 %v1102, %v1152
      %v1156 = vmul.f32 %v1103, %v1152
      %v1157 = vmul.f32 %v1104, %v1152
      %v1158 = vadd.f32 %v1146, %v1154
      %v1159 = vadd.f32 %v1147, %v1155
      %v1160 = vadd.f32 %v1148, %v1156
      %v1161 = vadd.f32 %v1149, %v1157
      %1162 = vrot.lane.b32.xlu0 %v1158, 32
      %v1163 = vpop.permute.xlu0 %1162
      %1164 = vrot.lane.b32.xlu0 %v1159, 32
      %v1165 = vpop.permute.xlu0 %1164
      %1166 = vrot.lane.b32.xlu0 %v1160, 32
      %v1167 = vpop.permute.xlu0 %1166
      %1168 = vrot.lane.b32.xlu0 %v1161, 32
      %v1169 = vpop.permute.xlu0 %1168
      %v1170 = vsel %vm628, %v1167, %v1169
      %v1171 = vsel %vm628, %v1165, %v1167
      %v1172 = vsel %vm628, %v1163, %v1165
      %v1173 = vsel %vm628, %v1169, %v1163
      %v1174 = vmul.f32 %v1173, %v633
      %v1175 = vmul.f32 %v1172, %v634
      %v1176 = vmul.f32 %v1171, %v635
      %v1177 = vmul.f32 %v1170, %v636
      %1178 = vset.pattern.permute.xlu0 5
      %1179 = vperm.xlu0 %1178, %v1036
      %v1180 = vpop.permute.xlu0 %1179
      %v1182 = vmul.f32 %v1049, %v1180
      %v1183 = vmul.f32 %v1050, %v1180
      %v1184 = vmul.f32 %v1051, %v1180
      %v1185 = vmul.f32 %v1052, %v1180
      %1186 = vset.pattern.permute.xlu0 6
      %1187 = vperm.xlu0 %1186, %v1036
      %v1188 = vpop.permute.xlu0 %1187
      %v1190 = vmul.f32 %v1065, %v1188
      %v1191 = vmul.f32 %v1066, %v1188
      %v1192 = vmul.f32 %v1067, %v1188
      %v1193 = vmul.f32 %v1068, %v1188
      %v1194 = vadd.f32 %v1182, %v1190
      %v1195 = vadd.f32 %v1183, %v1191
      %v1196 = vadd.f32 %v1184, %v1192
      %v1197 = vadd.f32 %v1185, %v1193
      %1198 = vset.pattern.permute.xlu0 7
      %1199 = vperm.xlu0 %1198, %v1036
      %v1200 = vpop.permute.xlu0 %1199
      %v1202 = vmul.f32 %v1069, %v1200
      %v1203 = vmul.f32 %v1070, %v1200
      %v1204 = vmul.f32 %v1071, %v1200
      %v1205 = vmul.f32 %v1072, %v1200
      %v1206 = vadd.f32 %v1194, %v1202
      %v1207 = vadd.f32 %v1195, %v1203
      %v1208 = vadd.f32 %v1196, %v1204
      %v1209 = vadd.f32 %v1197, %v1205
      %1210 = vset.pattern.permute.xlu0 8
      %1211 = vperm.xlu0 %1210, %v1036
      %v1212 = vpop.permute.xlu0 %1211
      %v1214 = vmul.f32 %v1085, %v1212
      %v1215 = vmul.f32 %v1086, %v1212
      %v1216 = vmul.f32 %v1087, %v1212
      %v1217 = vmul.f32 %v1088, %v1212
      %v1218 = vadd.f32 %v1206, %v1214
      %v1219 = vadd.f32 %v1207, %v1215
      %v1220 = vadd.f32 %v1208, %v1216
      %v1221 = vadd.f32 %v1209, %v1217
      %1222 = vset.pattern.permute.xlu0 9
      %1223 = vperm.xlu0 %1222, %v1036
      %v1224 = vpop.permute.xlu0 %1223
      %v1226 = vmul.f32 %v1101, %v1224
      %v1227 = vmul.f32 %v1102, %v1224
      %v1228 = vmul.f32 %v1103, %v1224
      %v1229 = vmul.f32 %v1104, %v1224
      %v1230 = vadd.f32 %v1218, %v1226
      %v1231 = vadd.f32 %v1219, %v1227
      %v1232 = vadd.f32 %v1220, %v1228
      %v1233 = vadd.f32 %v1221, %v1229
      %1234 = vrot.lane.b32.xlu0 %v1230, 16
      %v1235 = vpop.permute.xlu0 %1234
      %1236 = vrot.lane.b32.xlu0 %v1231, 16
      %v1237 = vpop.permute.xlu0 %1236
      %1238 = vrot.lane.b32.xlu0 %v1232, 16
      %v1239 = vpop.permute.xlu0 %1238
      %1240 = vrot.lane.b32.xlu0 %v1233, 16
      %v1241 = vpop.permute.xlu0 %1240
      %v1242 = vsel %vm705, %v1239, %v1241
      %v1243 = vsel %vm705, %v1237, %v1239
      %v1244 = vsel %vm705, %v1235, %v1237
      %v1245 = vsel %vm705, %v1241, %v1235
      %v1246 = vmul.f32 %v1245, %v710
      %v1247 = vmul.f32 %v1244, %v711
      %v1248 = vmul.f32 %v1243, %v712
      %v1249 = vmul.f32 %v1242, %v713
      %v1250 = vadd.f32 %v1174, %v1246
      %v1251 = vadd.f32 %v1175, %v1247
      %v1252 = vadd.f32 %v1176, %v1248
      %v1253 = vadd.f32 %v1177, %v1249
      %1254 = vset.pattern.permute.xlu0 10
      %1255 = vperm.xlu0 %1254, %v1036
      %v1256 = vpop.permute.xlu0 %1255
      %v1258 = vmul.f32 %v1049, %v1256
      %v1259 = vmul.f32 %v1050, %v1256
      %v1260 = vmul.f32 %v1051, %v1256
      %v1261 = vmul.f32 %v1052, %v1256
      %1262 = vset.pattern.permute.xlu0 11
      %1263 = vperm.xlu0 %1262, %v1036
      %v1264 = vpop.permute.xlu0 %1263
      %v1266 = vmul.f32 %v1065, %v1264
      %v1267 = vmul.f32 %v1066, %v1264
      %v1268 = vmul.f32 %v1067, %v1264
      %v1269 = vmul.f32 %v1068, %v1264
      %v1270 = vadd.f32 %v1258, %v1266
      %v1271 = vadd.f32 %v1259, %v1267
      %v1272 = vadd.f32 %v1260, %v1268
      %v1273 = vadd.f32 %v1261, %v1269
      %1274 = vset.pattern.permute.xlu0 12
      %1275 = vperm.xlu0 %1274, %v1036
      %v1276 = vpop.permute.xlu0 %1275
      %v1278 = vmul.f32 %v1069, %v1276
      %v1279 = vmul.f32 %v1070, %v1276
      %v1280 = vmul.f32 %v1071, %v1276
      %v1281 = vmul.f32 %v1072, %v1276
      %v1282 = vadd.f32 %v1270, %v1278
      %v1283 = vadd.f32 %v1271, %v1279
      %v1284 = vadd.f32 %v1272, %v1280
      %v1285 = vadd.f32 %v1273, %v1281
      %1286 = vset.pattern.permute.xlu0 13
      %1287 = vperm.xlu0 %1286, %v1036
      %v1288 = vpop.permute.xlu0 %1287
      %v1290 = vmul.f32 %v1085, %v1288
      %v1291 = vmul.f32 %v1086, %v1288
      %v1292 = vmul.f32 %v1087, %v1288
      %v1293 = vmul.f32 %v1088, %v1288
      %v1294 = vadd.f32 %v1282, %v1290
      %v1295 = vadd.f32 %v1283, %v1291
      %v1296 = vadd.f32 %v1284, %v1292
      %v1297 = vadd.f32 %v1285, %v1293
      %1298 = vset.pattern.permute.xlu0 14
      %1299 = vperm.xlu0 %1298, %v1036
      %v1300 = vpop.permute.xlu0 %1299
      %v1302 = vmul.f32 %v1101, %v1300
      %v1303 = vmul.f32 %v1102, %v1300
      %v1304 = vmul.f32 %v1103, %v1300
      %v1305 = vmul.f32 %v1104, %v1300
      %v1306 = vadd.f32 %v1294, %v1302
      %v1307 = vadd.f32 %v1295, %v1303
      %v1308 = vadd.f32 %v1296, %v1304
      %v1309 = vadd.f32 %v1297, %v1305
      %v1310 = vmul.f32 %v1306, %v778
      %v1311 = vmul.f32 %v1307, %v779
      %v1312 = vmul.f32 %v1308, %v780
      %v1313 = vmul.f32 %v1309, %v781
      %v1314 = vadd.f32 %v1250, %v1310
      %v1315 = vadd.f32 %v1251, %v1311
      %v1316 = vadd.f32 %v1252, %v1312
      %v1317 = vadd.f32 %v1253, %v1313
      %1318 = vset.pattern.permute.xlu0 15
      %1319 = vperm.xlu0 %1318, %v1036
      %v1320 = vpop.permute.xlu0 %1319
      %v1322 = vmul.f32 %v1049, %v1320
      %v1323 = vmul.f32 %v1050, %v1320
      %v1324 = vmul.f32 %v1051, %v1320
      %v1325 = vmul.f32 %v1052, %v1320
      %1326 = vset.pattern.permute.xlu0 16
      %1327 = vperm.xlu0 %1326, %v1036
      %v1328 = vpop.permute.xlu0 %1327
      %v1330 = vmul.f32 %v1065, %v1328
      %v1331 = vmul.f32 %v1066, %v1328
      %v1332 = vmul.f32 %v1067, %v1328
      %v1333 = vmul.f32 %v1068, %v1328
      %v1334 = vadd.f32 %v1322, %v1330
      %v1335 = vadd.f32 %v1323, %v1331
      %v1336 = vadd.f32 %v1324, %v1332
      %v1337 = vadd.f32 %v1325, %v1333
      %1338 = vset.pattern.permute.xlu0 17
      %1339 = vperm.xlu0 %1338, %v1036
      %v1340 = vpop.permute.xlu0 %1339
      %v1342 = vmul.f32 %v1069, %v1340
      %v1343 = vmul.f32 %v1070, %v1340
      %v1344 = vmul.f32 %v1071, %v1340
      %v1345 = vmul.f32 %v1072, %v1340
      %v1346 = vadd.f32 %v1334, %v1342
      %v1347 = vadd.f32 %v1335, %v1343
      %v1348 = vadd.f32 %v1336, %v1344
      %v1349 = vadd.f32 %v1337, %v1345
      %1350 = vset.pattern.permute.xlu0 18
      %1351 = vperm.xlu0 %1350, %v1036
      %v1352 = vpop.permute.xlu0 %1351
      %v1354 = vmul.f32 %v1085, %v1352
      %v1355 = vmul.f32 %v1086, %v1352
      %v1356 = vmul.f32 %v1087, %v1352
      %v1357 = vmul.f32 %v1088, %v1352
      %v1358 = vadd.f32 %v1346, %v1354
      %v1359 = vadd.f32 %v1347, %v1355
      %v1360 = vadd.f32 %v1348, %v1356
      %v1361 = vadd.f32 %v1349, %v1357
      %1362 = vset.pattern.permute.xlu0 19
      %1363 = vperm.xlu0 %1362, %v1036
      %v1364 = vpop.permute.xlu0 %1363
      %v1366 = vmul.f32 %v1101, %v1364
      %v1367 = vmul.f32 %v1102, %v1364
      %v1368 = vmul.f32 %v1103, %v1364
      %v1369 = vmul.f32 %v1104, %v1364
      %v1370 = vadd.f32 %v1358, %v1366
      %v1371 = vadd.f32 %v1359, %v1367
      %v1372 = vadd.f32 %v1360, %v1368
      %v1373 = vadd.f32 %v1361, %v1369
      %1374 = vrot.lane.b32.xlu0 %v1370, 112
      %v1375 = vpop.permute.xlu0 %1374
      %1376 = vrot.lane.b32.xlu0 %v1371, 112
      %v1377 = vpop.permute.xlu0 %1376
      %1378 = vrot.lane.b32.xlu0 %v1372, 112
      %v1379 = vpop.permute.xlu0 %1378
      %1380 = vrot.lane.b32.xlu0 %v1373, 112
      %v1381 = vpop.permute.xlu0 %1380
      %v1382 = vsel %vm854, %v1379, %v1381
      %v1383 = vsel %vm854, %v1377, %v1379
      %v1384 = vsel %vm854, %v1375, %v1377
      %v1385 = vsel %vm854, %v1381, %v1375
      %v1386 = vmul.f32 %v1384, %v859
      %v1387 = vmul.f32 %v1383, %v860
      %v1388 = vmul.f32 %v1382, %v861
      %v1389 = vmul.f32 %v1385, %v862
      %v1390 = vadd.f32 %v1314, %v1386
      %v1391 = vadd.f32 %v1315, %v1387
      %v1392 = vadd.f32 %v1316, %v1388
      %v1393 = vadd.f32 %v1317, %v1389
      %1394 = vset.pattern.permute.xlu0 20
      %1395 = vperm.xlu0 %1394, %v1036
      %v1396 = vpop.permute.xlu0 %1395
      %v1398 = vmul.f32 %v1049, %v1396
      %v1399 = vmul.f32 %v1050, %v1396
      %v1400 = vmul.f32 %v1051, %v1396
      %v1401 = vmul.f32 %v1052, %v1396
      %1402 = vset.pattern.permute.xlu0 21
      %1403 = vperm.xlu0 %1402, %v1036
      %v1404 = vpop.permute.xlu0 %1403
      %v1406 = vmul.f32 %v1065, %v1404
      %v1407 = vmul.f32 %v1066, %v1404
      %v1408 = vmul.f32 %v1067, %v1404
      %v1409 = vmul.f32 %v1068, %v1404
      %v1410 = vadd.f32 %v1398, %v1406
      %v1411 = vadd.f32 %v1399, %v1407
      %v1412 = vadd.f32 %v1400, %v1408
      %v1413 = vadd.f32 %v1401, %v1409
      %1414 = vset.pattern.permute.xlu0 22
      %1415 = vperm.xlu0 %1414, %v1036
      %v1416 = vpop.permute.xlu0 %1415
      %v1418 = vmul.f32 %v1069, %v1416
      %v1419 = vmul.f32 %v1070, %v1416
      %v1420 = vmul.f32 %v1071, %v1416
      %v1421 = vmul.f32 %v1072, %v1416
      %v1422 = vadd.f32 %v1410, %v1418
      %v1423 = vadd.f32 %v1411, %v1419
      %v1424 = vadd.f32 %v1412, %v1420
      %v1425 = vadd.f32 %v1413, %v1421
      %1426 = vset.pattern.permute.xlu0 23
      %1427 = vperm.xlu0 %1426, %v1036
      %v1428 = vpop.permute.xlu0 %1427
      %v1430 = vmul.f32 %v1085, %v1428
      %v1431 = vmul.f32 %v1086, %v1428
      %v1432 = vmul.f32 %v1087, %v1428
      %v1433 = vmul.f32 %v1088, %v1428
      %v1434 = vadd.f32 %v1422, %v1430
      %v1435 = vadd.f32 %v1423, %v1431
      %v1436 = vadd.f32 %v1424, %v1432
      %v1437 = vadd.f32 %v1425, %v1433
      %1438 = vset.pattern.permute.xlu0 24
      %1439 = vperm.xlu0 %1438, %v1036
      %v1440 = vpop.permute.xlu0 %1439
      %v1442 = vmul.f32 %v1101, %v1440
      %v1443 = vmul.f32 %v1102, %v1440
      %v1444 = vmul.f32 %v1103, %v1440
      %v1445 = vmul.f32 %v1104, %v1440
      %v1446 = vadd.f32 %v1434, %v1442
      %v1447 = vadd.f32 %v1435, %v1443
      %v1448 = vadd.f32 %v1436, %v1444
      %v1449 = vadd.f32 %v1437, %v1445
      %1450 = vrot.lane.b32.xlu0 %v1446, 96
      %v1451 = vpop.permute.xlu0 %1450
      %1452 = vrot.lane.b32.xlu0 %v1447, 96
      %v1453 = vpop.permute.xlu0 %1452
      %1454 = vrot.lane.b32.xlu0 %v1448, 96
      %v1455 = vpop.permute.xlu0 %1454
      %1456 = vrot.lane.b32.xlu0 %v1449, 96
      %v1457 = vpop.permute.xlu0 %1456
      %v1458 = vsel %vm935, %v1455, %v1457
      %v1459 = vsel %vm935, %v1453, %v1455
      %v1460 = vsel %vm935, %v1451, %v1453
      %v1461 = vsel %vm935, %v1457, %v1451
      %v1462 = vmul.f32 %v1460, %v940
      %v1463 = vmul.f32 %v1459, %v941
      %v1464 = vmul.f32 %v1458, %v942
      %v1465 = vmul.f32 %v1461, %v943
      %v1466 = vadd.f32 %v1390, %v1462
      %v1467 = vadd.f32 %v1391, %v1463
      %v1468 = vadd.f32 %v1392, %v1464
      %v1469 = vadd.f32 %v1393, %v1465
      %v1470 = vld [vmem:[%s441] sm:$0xf]
      %v1471 = vpack.c.bf16 %v1466, %v1466
      %v1472 = vpack.c.bf16 %v1467, %v1467
      %v1473 = vpack.c.bf16 %v1468, %v1468
      %v1474 = vpack.c.bf16 %v1469, %v1469
      %v1475 = vld [vmem:[%s445] sm:$0xff]
      %1477 = vset.pattern.permute.xlu0 0
      %1478 = vperm.xlu0 %1477, %v1475
      %v1479 = vpop.permute.xlu0 %1478
      %v1482 = vsel %vm963, %v1470, 0
      %v1485 = vsel %vm967, %v1471, 0
      %v1488 = vsel %vm967, %v1472, 0
      %v1491 = vsel %vm967, %v1473, 0
      %v1494 = vsel %vm967, %v1474, 0
      %1496 = vmatpush.bf16.msra.mxu0 0
      %1497 = vmatpush.bf16.msra.mxu0 0
      %1498 = vmatpush.bf16.msra.mxu0 0
      %1499 = vmatpush.bf16.msra.mxu0 0
      %1500 = vmatpush.bf16.msra.mxu0 0
      %1501 = vmatpush.bf16.msra.mxu0 0
      %1502 = vmatpush.bf16.msra.mxu0 0
      %1503 = vmatpush.bf16.msra.mxu0 %v1485
      %1504 = vmatmul.bf16.gmra.mxu0 %v1482
      %v1505 = vpop.f32.mrf.mxu0
      %v1506 = vadd.f32 %v1479, %v1505
      %v1507 = vpop.f32.mrf.mxu0
      %1508 = vdwg.mxu0
      %1509 = vmatpush.bf16.msra.mxu0 0
      %1510 = vmatpush.bf16.msra.mxu0 0
      %1511 = vmatpush.bf16.msra.mxu0 0
      %1512 = vmatpush.bf16.msra.mxu0 0
      %1513 = vmatpush.bf16.msra.mxu0 0
      %1514 = vmatpush.bf16.msra.mxu0 0
      %1515 = vmatpush.bf16.msra.mxu0 0
      %1516 = vmatpush.bf16.msra.mxu0 %v1488
      %1517 = vmatmul.bf16.gmra.mxu0 %v1482
      %v1518 = vpop.f32.mrf.mxu0
      %v1519 = vadd.f32 %v1479, %v1518
      %v1520 = vpop.f32.mrf.mxu0
      %1521 = vdwg.mxu0
      %1522 = vmatpush.bf16.msra.mxu0 0
      %1523 = vmatpush.bf16.msra.mxu0 0
      %1524 = vmatpush.bf16.msra.mxu0 0
      %1525 = vmatpush.bf16.msra.mxu0 0
      %1526 = vmatpush.bf16.msra.mxu0 0
      %1527 = vmatpush.bf16.msra.mxu0 0
      %1528 = vmatpush.bf16.msra.mxu0 0
      %1529 = vmatpush.bf16.msra.mxu0 %v1491
      %1530 = vmatmul.bf16.gmra.mxu0 %v1482
      %v1531 = vpop.f32.mrf.mxu0
      %v1532 = vadd.f32 %v1479, %v1531
      %v1533 = vpop.f32.mrf.mxu0
      %1534 = vdwg.mxu0
      %1535 = vmatpush.bf16.msra.mxu0 0
      %1536 = vmatpush.bf16.msra.mxu0 0
      %1537 = vmatpush.bf16.msra.mxu0 0
      %1538 = vmatpush.bf16.msra.mxu0 0
      %1539 = vmatpush.bf16.msra.mxu0 0
      %1540 = vmatpush.bf16.msra.mxu0 0
      %1541 = vmatpush.bf16.msra.mxu0 0
      %1542 = vmatpush.bf16.msra.mxu0 %v1494
      %1543 = vmatmul.bf16.gmra.mxu0 %v1482
      %v1544 = vpop.f32.mrf.mxu0
      %v1545 = vadd.f32 %v1479, %v1544
      %v1546 = vpop.f32.mrf.mxu0
      %1547 = vdwg.mxu0
      %1548 = vst [vmem:[%s450] sm:$0xff] %v1506
      %1549 = vst [vmem:[%s450 + $0x8] sm:$0xff] %v1519
      %1550 = vst [vmem:[%s450 + $0x10] sm:$0xff] %v1532
      %1551 = vst [vmem:[%s450 + $0x18] sm:$0xff] %v1545
      %p1552 = scmp.lt.s32.totalorder %s29, 4
      %s1553 = scalar_select %p1552, %s29, 4
      %s1554 = smul.addr %s1553, 4
      %s1555 = smul.addr %s1554, 8
      %s1556 = scalar_lea.vmem %s10, %s1555
      // Predicated region
      $region57: #{first_cell_forward.4} parent=55 // pred_check
        %p1557 = pneg %p273
      $region58: #{first_cell_forward.4} parent=55 // pred_check_branch
        %1559 = sbr.rel (%p1557) target = $region60
      $region59: #{first_cell_forward.4} parent=55 // pred_region
        _
      $region60: #{first_cell_forward.4} parent=55 // pred_fallthru
        _
    $region56: #{first_cell_forward.4} parent=5 // pred_fallthru
      _
    %p1560 = scmp.le.s32.totalorder 2, %s24
    // Predicated region
    $region61: #{first_cell_forward.4} parent=5 // pred_check
      %p1561 = pneg %p1560
    $region62: #{first_cell_forward.4} parent=5 // pred_check_branch
      %1563 = sbr.rel (%p1561) target = $region64
    $region63: #{first_cell_forward.4} parent=5 // pred_region
      %s1564 = ssub.s32 %s24, 2
      // Predicated region
      $region65: #{first_cell_forward.4} parent=63 // pred_check
        %p1565 = pneg %p279
      $region66: #{first_cell_forward.4} parent=63 // pred_check_branch
        %1567 = sbr.rel (%p1565) target = $region68
      $region67: #{first_cell_forward.4} parent=63 // pred_region
        %p1568 = scmp.lt.s32.totalorder %s30, 4
        %s1569 = scalar_select %p1568, %s30, 4
        %s1570 = smul.addr %s1569, 4
        %s1571 = smul.addr %s1570, 8
        %s1572 = scalar_lea.vmem %s10, %s1571
      $region68: #{first_cell_forward.4} parent=63 // pred_fallthru
        _
    $region64: #{first_cell_forward.4} parent=5 // pred_fallthru
      _
  $region6: #{first_cell_forward.4} parent=0 // loop_footer
    %s28 = sadd.s32 1, %s24
  $region7: #{first_cell_forward.4} parent=0 // loop_footer_branch
    %23 = sbr.rel target = $region3
  $region8: #{first_cell_forward.4} parent=0 // loop_exit
    _

</llo_original>
